<compile_context>
chip_gen: v5e
topology: v5e:2x2
jax: 0.10.0
libtpu: 0.0.40
codegen_flags: <defaults>
</compile_context>

<pallas_src>
import functools

import jax
import jax.numpy as jnp
from jax.experimental import pallas as pl
from jax.experimental.pallas import tpu as pltpu


# ----------------------------------------------------------------------------
# Per-generation tuning + tile helpers
# ----------------------------------------------------------------------------
def _conv_tuning():
    try:
        kind = jax.devices()[0].device_kind.lower()
    except Exception:
        kind = ""
    if ("v5" in kind) or ("v6" in kind):
        # 128 MiB physical VMEM, single TensorCore: biggest tiles, generous
        # scoped-VMEM limit so streaming reaches the HBM-roofline plateau.
        return dict(tile_candidates=(2048, 1024, 512, 256, 128),
                    min_blocks=1, vmem_limit=64 * 1024 * 1024)
    # v7x (64 MiB VMEM / 2 TensorCores) and unknown chips: conservative VMEM
    # cap, prefer >=2 blocks on the parallel axis so both cores get work.
    return dict(tile_candidates=(1024, 512, 256, 128),
                min_blocks=2, vmem_limit=48 * 1024 * 1024)


def _pick_tile(dim, candidates, min_blocks=1):
    """Largest candidate tile dividing `dim` (preferring >= min_blocks blocks)."""
    for c in candidates:
        if dim % c == 0 and dim // c >= min_blocks:
            return c
    for c in candidates:
        if dim % c == 0:
            return c
    return dim


def _pad_lanes(p, mult=128):
    m = p.shape[-1]
    pad = (-m) % mult
    if pad:
        p = jnp.pad(p, ((0, 0), (0, 0), (0, pad)))
    return p, m


# ----------------------------------------------------------------------------
# Fused Conv2d(3x3, pad=1) + bias + ReLU + MaxPool2d(2) kernel
# (pool quadrant on an "arbitrary" grid axis, running-max VMEM scratch)
# ----------------------------------------------------------------------------
def _conv_pool_kernel(p_ref, w_ref, b_ref, o_ref, mx_ref):
    # p_ref:  [1, Cin*9, TM] im2col slab of ONE pool quadrant (bf16)
    # w_ref:  [Cout, Cin*9] (bf16), b_ref: [Cout, 1] (f32)
    # o_ref:  [Cout, TM] bf16 = relu(maxpool2x2(conv) + b)   (M on lanes)
    # mx_ref: [Cout, TM] f32 running max across the quadrant grid axis
    q = pl.program_id(1)
    y = jnp.dot(w_ref[...], p_ref[0], preferred_element_type=jnp.float32)

    @pl.when(q == 0)
    def _init():
        mx_ref[...] = y

    @pl.when(q != 0)
    def _accum():
        mx_ref[...] = jnp.maximum(mx_ref[...], y)

    @pl.when(q == pl.num_programs(1) - 1)
    def _finalize():
        o_ref[...] = jnp.maximum(mx_ref[...] + b_ref[...], 0.0).astype(o_ref.dtype)


def _pool_im2col_cm(x):
    """x: [Cin, N, H, W] -> per-quadrant im2col [4, Cin*9, N*(H//2)*(W//2)].

    Channel-major input means taps stack directly under the Cin axis and
    flatten to patch rows with NO transpose."""
    Cin, N, H, W = x.shape
    Ho, Wo = H // 2, W // 2
    xp = jnp.pad(x, ((0, 0), (0, 0), (1, 1), (1, 1)))
    quads = []
    for qh in range(2):
        for qw in range(2):
            taps = [xp[:, :, qh + kh: qh + kh + H: 2, qw + kw: qw + kw + W: 2]
                    for kh in range(3) for kw in range(3)]     # each [Cin,N,Ho,Wo]
            quads.append(jnp.stack(taps, axis=1).reshape(Cin * 9, N * Ho * Wo))
    return jnp.stack(quads, axis=0)                            # [4, Cin*9, M]


def conv_relu_pool(x, w, b, *, tile_candidates, min_blocks, vmem_limit):
    """x:[Cin,N,H,W] bf16, w:[Cout,Cin,3,3], b:[Cout]
       -> maxpool2x2(relu(conv3x3_pad1(x)+b)) : [Cout, N, H//2, W//2] bf16."""
    Cin, N, H, W = x.shape
    assert H % 2 == 0 and W % 2 == 0, "MaxPool2d(2) expects even spatial dims"
    Cout = w.shape[0]
    Ho, Wo = H // 2, W // 2
    K = Cin * 9

    patches = _pool_im2col_cm(x.astype(jnp.bfloat16))          # bf16 BEFORE im2col
    patches, M = _pad_lanes(patches)                           # lane-dense M
    Mp = patches.shape[-1]
    wmat = w.reshape(Cout, K).astype(jnp.bfloat16)

    tm = _pick_tile(Mp, tile_candidates, min_blocks=min_blocks)
    out = pl.pallas_call(
        _conv_pool_kernel,
        out_shape=jax.ShapeDtypeStruct((Cout, Mp), jnp.bfloat16),
        grid=(Mp // tm, 4),                                    # (M tiles, quadrant)
        in_specs=[
            pl.BlockSpec((1, K, tm), lambda m, q: (q, 0, m)),
            pl.BlockSpec((Cout, K), lambda m, q: (0, 0)),
            pl.BlockSpec((Cout, 1), lambda m, q: (0, 0)),
        ],
        out_specs=pl.BlockSpec((Cout, tm), lambda m, q: (0, m)),
        scratch_shapes=[pltpu.VMEM((Cout, tm), jnp.float32)],
        compiler_params=pltpu.CompilerParams(
            dimension_semantics=("parallel", "arbitrary"),
            vmem_limit_bytes=vmem_limit),
    )(patches, wmat, b.reshape(Cout, 1).astype(jnp.float32))

    return out[:, :M].reshape(Cout, N, Ho, Wo)                 # channel-major out


# ----------------------------------------------------------------------------
# Fused input-projection + bidirectional-LSTM recurrence + classifier head
# ----------------------------------------------------------------------------
def _lstm_head_kernel(feat_ref, wcat_ref, bcat_ref, whf_ref, whb_ref,
                      w1_ref, b1_ref, w2_ref, b2_ref, o_ref, *, T, B, H):
    # feat_ref: [T*B, D] bf16 time-major CNN features (batch padded to 8)
    # wcat_ref: [D, 8H] bf16, bcat_ref: [1, 8H] f32 (both directions, order i,f,g,o)
    # whf_ref/whb_ref: [H, 4H] f32 recurrent weights
    # classifier: w1 [2H,64], b1 [1,64], w2 [64,C], b2 [1,C]; o_ref: [B, C]
    proj = jnp.dot(feat_ref[...], wcat_ref[...],
                   preferred_element_type=jnp.float32) + bcat_ref[...]   # [T*B, 8H]

    def cell(g_pre, h, c, whh):
        g = g_pre + jnp.dot(h, whh, preferred_element_type=jnp.float32)  # [B, 4H]
        sg = 1.0 / (1.0 + jnp.exp(-g))   # exact sigmoid, one full-width EUP pass
        tg = jnp.tanh(g)                 # exact tanh,   one full-width EUP pass
        i, f, o = sg[:, 0:H], sg[:, H:2 * H], sg[:, 3 * H:4 * H]
        gg = tg[:, 2 * H:3 * H]
        c_new = f * c + i * gg
        h_new = o * jnp.tanh(c_new)
        return h_new, c_new

    zeros = jnp.zeros((B, H), jnp.float32)
    whf = whf_ref[...]
    h_f, c_f = zeros, zeros
    for t in range(T):                     # static unroll: T is a trace-time const
        h_f, c_f = cell(proj[t * B:(t + 1) * B, 0:4 * H], h_f, c_f, whf)

    # Only lstm_out[:, -1, :] is consumed; its backward half is the FIRST step
    # of the reverse scan (zero initial state) applied to x[T-1].
    h_b, _ = cell(proj[(T - 1) * B:T * B, 4 * H:8 * H], zeros, zeros, whb_ref[...])

    last = jnp.concatenate([h_f, h_b], axis=-1)                           # [B, 2H]
    h1 = jnp.dot(last, w1_ref[...], preferred_element_type=jnp.float32) + b1_ref[...]
    h1 = jnp.maximum(h1, 0.0)
    # TODO(synk): nn.Dropout(0.3) treated as identity (eval mode).
    logits = jnp.dot(h1, w2_ref[...], preferred_element_type=jnp.float32) + b2_ref[...]
    o_ref[...] = logits


def lstm_head(feat_tm, w_cat, b_cat, whh_f, whh_b, w1, b1, w2, b2,
              *, T, B, H, num_classes):
    # TODO(synk): on v7x this stage is a single-program kernel (one core idle);
    # a 2-way batch-split parallel grid would feed both TensorCores.
    D = feat_tm.shape[-1]
    Bp = max(8, ((B + 7) // 8) * 8)        # pad batch to a full sublane group
    fp = jnp.pad(feat_tm, ((0, 0), (0, Bp - B), (0, 0))).reshape(T * Bp, D)
    out = pl.pallas_call(
        functools.partial(_lstm_head_kernel, T=T, B=Bp, H=H),
        out_shape=jax.ShapeDtypeStruct((Bp, num_classes), jnp.float32),
        in_specs=[pl.BlockSpec(memory_space=pltpu.MemorySpace.VMEM)] * 9,
        out_specs=pl.BlockSpec(memory_space=pltpu.MemorySpace.VMEM),
    )(fp.astype(jnp.bfloat16), w_cat.astype(jnp.bfloat16),
      b_cat.astype(jnp.float32), whh_f, whh_b, w1, b1, w2, b2)
    return out[:B]


# ----------------------------------------------------------------------------
# Model: parameters + forward
# ----------------------------------------------------------------------------
def init_params(key, num_channels, freq_bins, time_bins, hidden_dim, num_classes):
    D = 32 * (freq_bins // 4) * (time_bins // 4)   # cnn_output_dim
    H = hidden_dim
    ks = jax.random.split(key, 14)
    n = lambda k, shape, s: s * jax.random.normal(k, shape, jnp.float32)
    return {
        # Conv weights in PyTorch layout [Cout, Cin, 3, 3].
        "conv1_w": n(ks[0], (16, num_channels, 3, 3), 0.1),
        "conv1_b": n(ks[1], (16,), 0.1),
        "conv2_w": n(ks[2], (32, 16, 3, 3), 0.05),
        "conv2_b": n(ks[3], (32,), 0.05),
        # LSTM (per direction): wih = W_ih^T [D, 4H], combined bias (b_ih + b_hh)
        # [4H], whh = W_hh^T [H, 4H]; gate order i, f, g, o.
        "wih_f": n(ks[4], (D, 4 * H), 0.02),
        "b_f": n(ks[5], (4 * H,), 0.02),
        "whh_f": n(ks[6], (H, 4 * H), 0.05),
        "wih_b": n(ks[7], (D, 4 * H), 0.02),
        "b_b": n(ks[8], (4 * H,), 0.02),
        "whh_b": n(ks[9], (H, 4 * H), 0.05),
        "fc1_w": n(ks[10], (2 * H, 64), 0.1),
        "fc1_b": n(ks[11], (64,), 0.1),
        "fc2_w": n(ks[12], (64, num_classes), 0.1),
        "fc2_b": n(ks[13], (num_classes,), 0.1),
    }


def cnn_lstm_2d_forward(x, params, hidden_dim, num_classes):
    """x: [B, T, C, F, Ti] (batch, time steps, channels, freq bins, time bins)."""
    B, T, C, F_, Ti = x.shape
    H = hidden_dim
    N = B * T
    tuning = _conv_tuning()

    # Channel-major [Cin, N, H, W] bf16 end-to-end through the conv stage: one
    # relayout of the raw input replaces the two per-layer transposes.
    imgs = x.reshape(N, C, F_, Ti).transpose(1, 0, 2, 3).astype(jnp.bfloat16)
    y = conv_relu_pool(imgs, params["conv1_w"], params["conv1_b"], **tuning)
    y = conv_relu_pool(y, params["conv2_w"], params["conv2_b"], **tuning)
    Cout, _, Ho, Wo = y.shape
    D = Cout * Ho * Wo

    # Time-major [T, B, D] features, flattened per image in PyTorch (C, H, W)
    # order (n = b*T + t).  Tiny relayout (~16 KiB at the reference shapes).
    feat = (y.reshape(Cout, B, T, Ho * Wo)
              .transpose(2, 1, 0, 3)
              .reshape(T, B, D))

    # Fused bidirectional input-projection weights [D, 8H] and combined biases.
    w_cat = jnp.concatenate([params["wih_f"], params["wih_b"]], axis=1)
    b_cat = jnp.concatenate([params["b_f"], params["b_b"]]).reshape(1, 8 * H)

    logits = lstm_head(feat, w_cat, b_cat,
                       params["whh_f"], params["whh_b"],
                       params["fc1_w"], params["fc1_b"].reshape(1, -1),
                       params["fc2_w"], params["fc2_b"].reshape(1, -1),
                       T=T, B=B, H=H, num_classes=num_classes)
    return logits  # [B, num_classes]


if __name__ == "__main__":
    # Small shapes consistent with the module: B=2, T(seq)=8, C=4, F=16, Time=16,
    # hidden_dim=32, num_classes=2.
    B, T, C, F_, Ti = 2, 8, 4, 16, 16
    hidden_dim, num_classes = 32, 2

    key = jax.random.PRNGKey(0)
    kx, kp = jax.random.split(key)
    x = jax.random.normal(kx, (B, T, C, F_, Ti), jnp.float32)
    params = init_params(kp, C, F_, Ti, hidden_dim, num_classes)

    fwd = jax.jit(functools.partial(cnn_lstm_2d_forward,
                                    hidden_dim=hidden_dim,
                                    num_classes=num_classes))
    out = jax.block_until_ready(fwd(x, params))
    assert out.shape == (B, num_classes), out.shape
    assert bool(jnp.all(jnp.isfinite(out)))
    print("KERNEL_OK")
</pallas_src>

<mosaic_0001>
module attributes {stable_mosaic.version = 11 : i64} {
  func.func @_conv_pool_kernel(%arg0: i32, %arg1: i32, %arg2: memref<1x36x512xbf16, #tpu.memory_space<vmem>>, %arg3: memref<16x36xbf16, #tpu.memory_space<vmem>>, %arg4: memref<16x1xf32, #tpu.memory_space<vmem>>, %arg5: memref<16x512xbf16, #tpu.memory_space<vmem>>, %arg6: memref<16x512xf32, #tpu.memory_space<vmem>>) attributes {dimension_semantics = [#tpu.dimension_semantics<parallel>, #tpu.dimension_semantics<arbitrary>], iteration_bounds = array<i64: 2, 4>, scalar_prefetch = 0 : i64, scratch_operands = 1 : i64, tpu.core_type = #tpu.core_type<tc>, window_params = [{transform_indices = @transform_0, window_bounds = array<i64: 1, 36, 512>}, {pipeline_mode = #tpu.pipeline_mode<synchronous>, transform_indices = @transform_1, window_bounds = array<i64: 16, 36>}, {pipeline_mode = #tpu.pipeline_mode<synchronous>, transform_indices = @transform_2, window_bounds = array<i64: 16, 1>}, {transform_indices = @transform_3, window_bounds = array<i64: 16, 512>}]} {
    %c0 = arith.constant 0 : index
    %c0_0 = arith.constant 0 : index
    %0 = vector.load %arg3[%c0, %c0_0] : memref<16x36xbf16, #tpu.memory_space<vmem>>, vector<16x36xbf16>
    %c0_1 = arith.constant 0 : index
    %c0_2 = arith.constant 0 : index
    %c0_3 = arith.constant 0 : index
    %1 = vector.load %arg2[%c0_1, %c0_2, %c0_3] : memref<1x36x512xbf16, #tpu.memory_space<vmem>>, vector<1x36x512xbf16>
    %2 = vector.shape_cast %1 : vector<1x36x512xbf16> to vector<36x512xbf16>
    %cst = arith.constant dense<0.000000e+00> : vector<16x512xf32>
    %3 = tpu.matmul %0, %2, %cst {dimension_numbers = #tpu.dot_dimension_numbers<[1], [0], [0], [1], [0, 0, 1, 1], [], []>} : vector<16x36xbf16>, vector<36x512xbf16>, vector<16x512xf32> -> vector<16x512xf32>
    %c0_i32 = arith.constant 0 : i32
    %4 = arith.cmpi eq, %arg1, %c0_i32 : i32
    %5 = arith.extui %4 : i1 to i32
    %c0_i32_4 = arith.constant 0 : i32
    %6 = arith.cmpi ne, %5, %c0_i32_4 : i32
    scf.if %6 {
      %c0_8 = arith.constant 0 : index
      %c0_9 = arith.constant 0 : index
      %13 = vector.load %arg6[%c0_8, %c0_9] : memref<16x512xf32, #tpu.memory_space<vmem>>, vector<16x512xf32>
      tpu.vector_store %arg6[%c0_8, %c0_9], %3 {strides = array<i32>} : memref<16x512xf32, #tpu.memory_space<vmem>>, vector<16x512xf32>,
    } else {
    }
    %c0_i32_5 = arith.constant 0 : i32
    %7 = arith.cmpi ne, %arg1, %c0_i32_5 : i32
    %8 = arith.extui %7 : i1 to i32
    %c0_i32_6 = arith.constant 0 : i32
    %9 = arith.cmpi ne, %8, %c0_i32_6 : i32
    scf.if %9 {
      %c0_8 = arith.constant 0 : index
      %c0_9 = arith.constant 0 : index
      %13 = vector.load %arg6[%c0_8, %c0_9] : memref<16x512xf32, #tpu.memory_space<vmem>>, vector<16x512xf32>
      %14 = arith.maximumf %13, %3 : vector<16x512xf32>
      %c0_10 = arith.constant 0 : index
      %c0_11 = arith.constant 0 : index
      %15 = vector.load %arg6[%c0_10, %c0_11] : memref<16x512xf32, #tpu.memory_space<vmem>>, vector<16x512xf32>
      tpu.vector_store %arg6[%c0_10, %c0_11], %14 {strides = array<i32>} : memref<16x512xf32, #tpu.memory_space<vmem>>, vector<16x512xf32>,
    } else {
    }
    %c3_i32 = arith.constant 3 : i32
    %10 = arith.cmpi eq, %arg1, %c3_i32 : i32
    %11 = arith.extui %10 : i1 to i32
    %c0_i32_7 = arith.constant 0 : i32
    %12 = arith.cmpi ne, %11, %c0_i32_7 : i32
    scf.if %12 {
      %c0_8 = arith.constant 0 : index
      %c0_9 = arith.constant 0 : index
      %13 = vector.load %arg6[%c0_8, %c0_9] : memref<16x512xf32, #tpu.memory_space<vmem>>, vector<16x512xf32>
      %c0_10 = arith.constant 0 : index
      %c0_11 = arith.constant 0 : index
      %14 = vector.load %arg4[%c0_10, %c0_11] : memref<16x1xf32, #tpu.memory_space<vmem>>, vector<16x1xf32>
      %15 = vector.broadcast %14 : vector<16x1xf32> to vector<16x512xf32>
      %16 = arith.addf %13, %15 : vector<16x512xf32>
      %cst_12 = arith.constant 0.000000e+00 : f32
      %17 = vector.broadcast %cst_12 : f32 to vector<16x512xf32>
      %18 = arith.maximumf %16, %17 : vector<16x512xf32>
      %19 = arith.truncf %18 : vector<16x512xf32> to vector<16x512xbf16>
      %c0_13 = arith.constant 0 : index
      %c0_14 = arith.constant 0 : index
      %20 = vector.load %arg5[%c0_13, %c0_14] : memref<16x512xbf16, #tpu.memory_space<vmem>>, vector<16x512xbf16>
      tpu.vector_store %arg5[%c0_13, %c0_14], %19 {strides = array<i32>} : memref<16x512xbf16, #tpu.memory_space<vmem>>, vector<16x512xbf16>,
    } else {
    }
    return
  }
  func.func @transform_0(%arg0: i32, %arg1: i32) -> (i32, i32, i32) {
    %c0_i32 = arith.constant 0 : i32
    %c0_i32_0 = arith.constant 0 : i32
    return %arg1, %c0_i32, %arg0 : i32, i32, i32
  }
  func.func @transform_1(%arg0: i32, %arg1: i32) -> (i32, i32) {
    %c0_i32 = arith.constant 0 : i32
    %c0_i32_0 = arith.constant 0 : i32
    %c0_i32_1 = arith.constant 0 : i32
    return %c0_i32, %c0_i32_0 : i32, i32
  }
  func.func @transform_2(%arg0: i32, %arg1: i32) -> (i32, i32) {
    %c0_i32 = arith.constant 0 : i32
    %c0_i32_0 = arith.constant 0 : i32
    %c0_i32_1 = arith.constant 0 : i32
    return %c0_i32, %c0_i32_0 : i32, i32
  }
  func.func @transform_3(%arg0: i32, %arg1: i32) -> (i32, i32) {
    %c0_i32 = arith.constant 0 : i32
    %c0_i32_0 = arith.constant 0 : i32
    return %c0_i32, %arg0 : i32, i32
  }
}

module attributes {stable_mosaic.version = 11 : i64} {
  func.func @_conv_pool_kernel(%arg0: i32, %arg1: i32, %arg2: memref<1x144x128xbf16, #tpu.memory_space<vmem>>, %arg3: memref<32x144xbf16, #tpu.memory_space<vmem>>, %arg4: memref<32x1xf32, #tpu.memory_space<vmem>>, %arg5: memref<32x128xbf16, #tpu.memory_space<vmem>>, %arg6: memref<32x128xf32, #tpu.memory_space<vmem>>) attributes {dimension_semantics = [#tpu.dimension_semantics<parallel>, #tpu.dimension_semantics<arbitrary>], iteration_bounds = array<i64: 2, 4>, scalar_prefetch = 0 : i64, scratch_operands = 1 : i64, tpu.core_type = #tpu.core_type<tc>, window_params = [{transform_indices = @transform_0, window_bounds = array<i64: 1, 144, 128>}, {pipeline_mode = #tpu.pipeline_mode<synchronous>, transform_indices = @transform_1, window_bounds = array<i64: 32, 144>}, {pipeline_mode = #tpu.pipeline_mode<synchronous>, transform_indices = @transform_2, window_bounds = array<i64: 32, 1>}, {transform_indices = @transform_3, window_bounds = array<i64: 32, 128>}]} {
    %c0 = arith.constant 0 : index
    %c0_0 = arith.constant 0 : index
    %0 = vector.load %arg3[%c0, %c0_0] : memref<32x144xbf16, #tpu.memory_space<vmem>>, vector<32x144xbf16>
    %c0_1 = arith.constant 0 : index
    %c0_2 = arith.constant 0 : index
    %c0_3 = arith.constant 0 : index
    %1 = vector.load %arg2[%c0_1, %c0_2, %c0_3] : memref<1x144x128xbf16, #tpu.memory_space<vmem>>, vector<1x144x128xbf16>
    %2 = vector.shape_cast %1 : vector<1x144x128xbf16> to vector<144x128xbf16>
    %cst = arith.constant dense<0.000000e+00> : vector<32x128xf32>
    %3 = tpu.matmul %0, %2, %cst {dimension_numbers = #tpu.dot_dimension_numbers<[1], [0], [0], [1], [0, 0, 1, 1], [], []>} : vector<32x144xbf16>, vector<144x128xbf16>, vector<32x128xf32> -> vector<32x128xf32>
    %c0_i32 = arith.constant 0 : i32
    %4 = arith.cmpi eq, %arg1, %c0_i32 : i32
    %5 = arith.extui %4 : i1 to i32
    %c0_i32_4 = arith.constant 0 : i32
    %6 = arith.cmpi ne, %5, %c0_i32_4 : i32
    scf.if %6 {
      %c0_8 = arith.constant 0 : index
      %c0_9 = arith.constant 0 : index
      %13 = vector.load %arg6[%c0_8, %c0_9] : memref<32x128xf32, #tpu.memory_space<vmem>>, vector<32x128xf32>
      tpu.vector_store %arg6[%c0_8, %c0_9], %3 {strides = array<i32>} : memref<32x128xf32, #tpu.memory_space<vmem>>, vector<32x128xf32>,
    } else {
    }
    %c0_i32_5 = arith.constant 0 : i32
    %7 = arith.cmpi ne, %arg1, %c0_i32_5 : i32
    %8 = arith.extui %7 : i1 to i32
    %c0_i32_6 = arith.constant 0 : i32
    %9 = arith.cmpi ne, %8, %c0_i32_6 : i32
    scf.if %9 {
      %c0_8 = arith.constant 0 : index
      %c0_9 = arith.constant 0 : index
      %13 = vector.load %arg6[%c0_8, %c0_9] : memref<32x128xf32, #tpu.memory_space<vmem>>, vector<32x128xf32>
      %14 = arith.maximumf %13, %3 : vector<32x128xf32>
      %c0_10 = arith.constant 0 : index
      %c0_11 = arith.constant 0 : index
      %15 = vector.load %arg6[%c0_10, %c0_11] : memref<32x128xf32, #tpu.memory_space<vmem>>, vector<32x128xf32>
      tpu.vector_store %arg6[%c0_10, %c0_11], %14 {strides = array<i32>} : memref<32x128xf32, #tpu.memory_space<vmem>>, vector<32x128xf32>,
    } else {
    }
    %c3_i32 = arith.constant 3 : i32
    %10 = arith.cmpi eq, %arg1, %c3_i32 : i32
    %11 = arith.extui %10 : i1 to i32
    %c0_i32_7 = arith.constant 0 : i32
    %12 = arith.cmpi ne, %11, %c0_i32_7 : i32
    scf.if %12 {
      %c0_8 = arith.constant 0 : index
      %c0_9 = arith.constant 0 : index
      %13 = vector.load %arg6[%c0_8, %c0_9] : memref<32x128xf32, #tpu.memory_space<vmem>>, vector<32x128xf32>
      %c0_10 = arith.constant 0 : index
      %c0_11 = arith.constant 0 : index
      %14 = vector.load %arg4[%c0_10, %c0_11] : memref<32x1xf32, #tpu.memory_space<vmem>>, vector<32x1xf32>
      %15 = vector.broadcast %14 : vector<32x1xf32> to vector<32x128xf32>
      %16 = arith.addf %13, %15 : vector<32x128xf32>
      %cst_12 = arith.constant 0.000000e+00 : f32
      %17 = vector.broadcast %cst_12 : f32 to vector<32x128xf32>
      %18 = arith.maximumf %16, %17 : vector<32x128xf32>
      %19 = arith.truncf %18 : vector<32x128xf32> to vector<32x128xbf16>
      %c0_13 = arith.constant 0 : index
      %c0_14 = arith.constant 0 : index
      %20 = vector.load %arg5[%c0_13, %c0_14] : memref<32x128xbf16, #tpu.memory_space<vmem>>, vector<32x128xbf16>
      tpu.vector_store %arg5[%c0_13, %c0_14], %19 {strides = array<i32>} : memref<32x128xbf16, #tpu.memory_space<vmem>>, vector<32x128xbf16>,
    } else {
    }
    return
  }
  func.func @transform_0(%arg0: i32, %arg1: i32) -> (i32, i32, i32) {
    %c0_i32 = arith.constant 0 : i32
    %c0_i32_0 = arith.constant 0 : i32
    return %arg1, %c0_i32, %arg0 : i32, i32, i32
  }
  func.func @transform_1(%arg0: i32, %arg1: i32) -> (i32, i32) {
    %c0_i32 = arith.constant 0 : i32
    %c0_i32_0 = arith.constant 0 : i32
    %c0_i32_1 = arith.constant 0 : i32
    return %c0_i32, %c0_i32_0 : i32, i32
  }
  func.func @transform_2(%arg0: i32, %arg1: i32) -> (i32, i32) {
    %c0_i32 = arith.constant 0 : i32
    %c0_i32_0 = arith.constant 0 : i32
    %c0_i32_1 = arith.constant 0 : i32
    return %c0_i32, %c0_i32_0 : i32, i32
  }
  func.func @transform_3(%arg0: i32, %arg1: i32) -> (i32, i32) {
    %c0_i32 = arith.constant 0 : i32
    %c0_i32_0 = arith.constant 0 : i32
    return %c0_i32, %arg0 : i32, i32
  }
}

module attributes {stable_mosaic.version = 11 : i64} {
  func.func @_lstm_head_kernel(%arg0: memref<64x512xbf16, #tpu.memory_space<vmem>>, %arg1: memref<512x256xbf16, #tpu.memory_space<vmem>>, %arg2: memref<1x256xf32, #tpu.memory_space<vmem>>, %arg3: memref<32x128xf32, #tpu.memory_space<vmem>>, %arg4: memref<32x128xf32, #tpu.memory_space<vmem>>, %arg5: memref<64x64xf32, #tpu.memory_space<vmem>>, %arg6: memref<1x64xf32, #tpu.memory_space<vmem>>, %arg7: memref<64x2xf32, #tpu.memory_space<vmem>>, %arg8: memref<1x2xf32, #tpu.memory_space<vmem>>, %arg9: memref<8x2xf32, #tpu.memory_space<vmem>>) attributes {dimension_semantics = [], scalar_prefetch = 0 : i64, scratch_operands = 0 : i64, tpu.core_type = #tpu.core_type<tc>} {
    %c0 = arith.constant 0 : index
    %c0_0 = arith.constant 0 : index
    %0 = vector.load %arg0[%c0, %c0_0] : memref<64x512xbf16, #tpu.memory_space<vmem>>, vector<64x512xbf16>
    %c0_1 = arith.constant 0 : index
    %c0_2 = arith.constant 0 : index
    %1 = vector.load %arg1[%c0_1, %c0_2] : memref<512x256xbf16, #tpu.memory_space<vmem>>, vector<512x256xbf16>
    %cst = arith.constant dense<0.000000e+00> : vector<64x256xf32>
    %2 = tpu.matmul %0, %1, %cst {dimension_numbers = #tpu.dot_dimension_numbers<[1], [0], [0], [1], [0, 0, 1, 1], [], []>} : vector<64x512xbf16>, vector<512x256xbf16>, vector<64x256xf32> -> vector<64x256xf32>
    %c0_3 = arith.constant 0 : index
    %c0_4 = arith.constant 0 : index
    %3 = vector.load %arg2[%c0_3, %c0_4] : memref<1x256xf32, #tpu.memory_space<vmem>>, vector<1x256xf32>
    %4 = vector.broadcast %3 : vector<1x256xf32> to vector<64x256xf32>
    %5 = arith.addf %2, %4 : vector<64x256xf32>
    %cst_5 = arith.constant 0.000000e+00 : f32
    %6 = vector.broadcast %cst_5 : f32 to vector<8x32xf32>
    %c0_6 = arith.constant 0 : index
    %c0_7 = arith.constant 0 : index
    %7 = vector.load %arg3[%c0_6, %c0_7] : memref<32x128xf32, #tpu.memory_space<vmem>>, vector<32x128xf32>
    %8 = vector.extract_strided_slice %5 {offsets = [0, 0], sizes = [8, 128], strides = [1, 1]} : vector<64x256xf32> to vector<8x128xf32>
    %cst_8 = arith.constant dense<0.000000e+00> : vector<8x128xf32>
    %9 = tpu.matmul %6, %7, %cst_8 {dimension_numbers = #tpu.dot_dimension_numbers<[1], [0], [0], [1], [0, 0, 1, 1], [], []>} : vector<8x32xf32>, vector<32x128xf32>, vector<8x128xf32> -> vector<8x128xf32>
    %10 = arith.addf %8, %9 : vector<8x128xf32>
    %cst_9 = arith.constant 0.000000e+00 : f32
    %11 = vector.broadcast %cst_9 : f32 to vector<8x128xf32>
    %12 = arith.subf %11, %10 : vector<8x128xf32>
    %13 = math.exp %12 : vector<8x128xf32>
    %cst_10 = arith.constant 1.000000e+00 : f32
    %14 = vector.broadcast %cst_10 : f32 to vector<8x128xf32>
    %15 = arith.addf %14, %13 : vector<8x128xf32>
    %cst_11 = arith.constant 1.000000e+00 : f32
    %16 = vector.broadcast %cst_11 : f32 to vector<8x128xf32>
    %17 = arith.divf %16, %15 : vector<8x128xf32>
    %18 = math.tanh %10 : vector<8x128xf32>
    %19 = vector.extract_strided_slice %17 {offsets = [0, 0], sizes = [8, 32], strides = [1, 1]} : vector<8x128xf32> to vector<8x32xf32>
    %20 = vector.extract_strided_slice %17 {offsets = [0, 32], sizes = [8, 32], strides = [1, 1]} : vector<8x128xf32> to vector<8x32xf32>
    %21 = vector.extract_strided_slice %17 {offsets = [0, 96], sizes = [8, 32], strides = [1, 1]} : vector<8x128xf32> to vector<8x32xf32>
    %22 = vector.extract_strided_slice %18 {offsets = [0, 64], sizes = [8, 32], strides = [1, 1]} : vector<8x128xf32> to vector<8x32xf32>
    %23 = arith.mulf %20, %6 : vector<8x32xf32>
    %24 = arith.mulf %19, %22 : vector<8x32xf32>
    %25 = arith.addf %23, %24 : vector<8x32xf32>
    %26 = math.tanh %25 : vector<8x32xf32>
    %27 = arith.mulf %21, %26 : vector<8x32xf32>
    %28 = vector.extract_strided_slice %5 {offsets = [8, 0], sizes = [8, 128], strides = [1, 1]} : vector<64x256xf32> to vector<8x128xf32>
    %cst_12 = arith.constant dense<0.000000e+00> : vector<8x128xf32>
    %29 = tpu.matmul %27, %7, %cst_12 {dimension_numbers = #tpu.dot_dimension_numbers<[1], [0], [0], [1], [0, 0, 1, 1], [], []>} : vector<8x32xf32>, vector<32x128xf32>, vector<8x128xf32> -> vector<8x128xf32>
    %30 = arith.addf %28, %29 : vector<8x128xf32>
    %cst_13 = arith.constant 0.000000e+00 : f32
    %31 = vector.broadcast %cst_13 : f32 to vector<8x128xf32>
    %32 = arith.subf %31, %30 : vector<8x128xf32>
    %33 = math.exp %32 : vector<8x128xf32>
    %cst_14 = arith.constant 1.000000e+00 : f32
    %34 = vector.broadcast %cst_14 : f32 to vector<8x128xf32>
    %35 = arith.addf %34, %33 : vector<8x128xf32>
    %cst_15 = arith.constant 1.000000e+00 : f32
    %36 = vector.broadcast %cst_15 : f32 to vector<8x128xf32>
    %37 = arith.divf %36, %35 : vector<8x128xf32>
    %38 = math.tanh %30 : vector<8x128xf32>
    %39 = vector.extract_strided_slice %37 {offsets = [0, 0], sizes = [8, 32], strides = [1, 1]} : vector<8x128xf32> to vector<8x32xf32>
    %40 = vector.extract_strided_slice %37 {offsets = [0, 32], sizes = [8, 32], strides = [1, 1]} : vector<8x128xf32> to vector<8x32xf32>
    %41 = vector.extract_strided_slice %37 {offsets = [0, 96], sizes = [8, 32], strides = [1, 1]} : vector<8x128xf32> to vector<8x32xf32>
    %42 = vector.extract_strided_slice %38 {offsets = [0, 64], sizes = [8, 32], strides = [1, 1]} : vector<8x128xf32> to vector<8x32xf32>
    %43 = arith.mulf %40, %25 : vector<8x32xf32>
    %44 = arith.mulf %39, %42 : vector<8x32xf32>
    %45 = arith.addf %43, %44 : vector<8x32xf32>
    %46 = math.tanh %45 : vector<8x32xf32>
    %47 = arith.mulf %41, %46 : vector<8x32xf32>
    %48 = vector.extract_strided_slice %5 {offsets = [16, 0], sizes = [8, 128], strides = [1, 1]} : vector<64x256xf32> to vector<8x128xf32>
    %cst_16 = arith.constant dense<0.000000e+00> : vector<8x128xf32>
    %49 = tpu.matmul %47, %7, %cst_16 {dimension_numbers = #tpu.dot_dimension_numbers<[1], [0], [0], [1], [0, 0, 1, 1], [], []>} : vector<8x32xf32>, vector<32x128xf32>, vector<8x128xf32> -> vector<8x128xf32>
    %50 = arith.addf %48, %49 : vector<8x128xf32>
    %cst_17 = arith.constant 0.000000e+00 : f32
    %51 = vector.broadcast %cst_17 : f32 to vector<8x128xf32>
    %52 = arith.subf %51, %50 : vector<8x128xf32>
    %53 = math.exp %52 : vector<8x128xf32>
    %cst_18 = arith.constant 1.000000e+00 : f32
    %54 = vector.broadcast %cst_18 : f32 to vector<8x128xf32>
    %55 = arith.addf %54, %53 : vector<8x128xf32>
    %cst_19 = arith.constant 1.000000e+00 : f32
    %56 = vector.broadcast %cst_19 : f32 to vector<8x128xf32>
    %57 = arith.divf %56, %55 : vector<8x128xf32>
    %58 = math.tanh %50 : vector<8x128xf32>
    %59 = vector.extract_strided_slice %57 {offsets = [0, 0], sizes = [8, 32], strides = [1, 1]} : vector<8x128xf32> to vector<8x32xf32>
    %60 = vector.extract_strided_slice %57 {offsets = [0, 32], sizes = [8, 32], strides = [1, 1]} : vector<8x128xf32> to vector<8x32xf32>
    %61 = vector.extract_strided_slice %57 {offsets = [0, 96], sizes = [8, 32], strides = [1, 1]} : vector<8x128xf32> to vector<8x32xf32>
    %62 = vector.extract_strided_slice %58 {offsets = [0, 64], sizes = [8, 32], strides = [1, 1]} : vector<8x128xf32> to vector<8x32xf32>
    %63 = arith.mulf %60, %45 : vector<8x32xf32>
    %64 = arith.mulf %59, %62 : vector<8x32xf32>
    %65 = arith.addf %63, %64 : vector<8x32xf32>
    %66 = math.tanh %65 : vector<8x32xf32>
    %67 = arith.mulf %61, %66 : vector<8x32xf32>
    %68 = vector.extract_strided_slice %5 {offsets = [24, 0], sizes = [8, 128], strides = [1, 1]} : vector<64x256xf32> to vector<8x128xf32>
    %cst_20 = arith.constant dense<0.000000e+00> : vector<8x128xf32>
    %69 = tpu.matmul %67, %7, %cst_20 {dimension_numbers = #tpu.dot_dimension_numbers<[1], [0], [0], [1], [0, 0, 1, 1], [], []>} : vector<8x32xf32>, vector<32x128xf32>, vector<8x128xf32> -> vector<8x128xf32>
    %70 = arith.addf %68, %69 : vector<8x128xf32>
    %cst_21 = arith.constant 0.000000e+00 : f32
    %71 = vector.broadcast %cst_21 : f32 to vector<8x128xf32>
    %72 = arith.subf %71, %70 : vector<8x128xf32>
    %73 = math.exp %72 : vector<8x128xf32>
    %cst_22 = arith.constant 1.000000e+00 : f32
    %74 = vector.broadcast %cst_22 : f32 to vector<8x128xf32>
    %75 = arith.addf %74, %73 : vector<8x128xf32>
    %cst_23 = arith.constant 1.000000e+00 : f32
    %76 = vector.broadcast %cst_23 : f32 to vector<8x128xf32>
    %77 = arith.divf %76, %75 : vector<8x128xf32>
    %78 = math.tanh %70 : vector<8x128xf32>
    %79 = vector.extract_strided_slice %77 {offsets = [0, 0], sizes = [8, 32], strides = [1, 1]} : vector<8x128xf32> to vector<8x32xf32>
    %80 = vector.extract_strided_slice %77 {offsets = [0, 32], sizes = [8, 32], strides = [1, 1]} : vector<8x128xf32> to vector<8x32xf32>
    %81 = vector.extract_strided_slice %77 {offsets = [0, 96], sizes = [8, 32], strides = [1, 1]} : vector<8x128xf32> to vector<8x32xf32>
    %82 = vector.extract_strided_slice %78 {offsets = [0, 64], sizes = [8, 32], strides = [1, 1]} : vector<8x128xf32> to vector<8x32xf32>
    %83 = arith.mulf %80, %65 : vector<8x32xf32>
    %84 = arith.mulf %79, %82 : vector<8x32xf32>
    %85 = arith.addf %83, %84 : vector<8x32xf32>
    %86 = math.tanh %85 : vector<8x32xf32>
    %87 = arith.mulf %81, %86 : vector<8x32xf32>
    %88 = vector.extract_strided_slice %5 {offsets = [32, 0], sizes = [8, 128], strides = [1, 1]} : vector<64x256xf32> to vector<8x128xf32>
    %cst_24 = arith.constant dense<0.000000e+00> : vector<8x128xf32>
    %89 = tpu.matmul %87, %7, %cst_24 {dimension_numbers = #tpu.dot_dimension_numbers<[1], [0], [0], [1], [0, 0, 1, 1], [], []>} : vector<8x32xf32>, vector<32x128xf32>, vector<8x128xf32> -> vector<8x128xf32>
    %90 = arith.addf %88, %89 : vector<8x128xf32>
    %cst_25 = arith.constant 0.000000e+00 : f32
    %91 = vector.broadcast %cst_25 : f32 to vector<8x128xf32>
    %92 = arith.subf %91, %90 : vector<8x128xf32>
    %93 = math.exp %92 : vector<8x128xf32>
    %cst_26 = arith.constant 1.000000e+00 : f32
    %94 = vector.broadcast %cst_26 : f32 to vector<8x128xf32>
    %95 = arith.addf %94, %93 : vector<8x128xf32>
    %cst_27 = arith.constant 1.000000e+00 : f32
    %96 = vector.broadcast %cst_27 : f32 to vector<8x128xf32>
    %97 = arith.divf %96, %95 : vector<8x128xf32>
    %98 = math.tanh %90 : vector<8x128xf32>
    %99 = vector.extract_strided_slice %97 {offsets = [0, 0], sizes = [8, 32], strides = [1, 1]} : vector<8x128xf32> to vector<8x32xf32>
    %100 = vector.extract_strided_slice %97 {offsets = [0, 32], sizes = [8, 32], strides = [1, 1]} : vector<8x128xf32> to vector<8x32xf32>
    %101 = vector.extract_strided_slice %97 {offsets = [0, 96], sizes = [8, 32], strides = [1, 1]} : vector<8x128xf32> to vector<8x32xf32>
    %102 = vector.extract_strided_slice %98 {offsets = [0, 64], sizes = [8, 32], strides = [1, 1]} : vector<8x128xf32> to vector<8x32xf32>
    %103 = arith.mulf %100, %85 : vector<8x32xf32>
    %104 = arith.mulf %99, %102 : vector<8x32xf32>
    %105 = arith.addf %103, %104 : vector<8x32xf32>
    %106 = math.tanh %105 : vector<8x32xf32>
    %107 = arith.mulf %101, %106 : vector<8x32xf32>
    %108 = vector.extract_strided_slice %5 {offsets = [40, 0], sizes = [8, 128], strides = [1, 1]} : vector<64x256xf32> to vector<8x128xf32>
    %cst_28 = arith.constant dense<0.000000e+00> : vector<8x128xf32>
    %109 = tpu.matmul %107, %7, %cst_28 {dimension_numbers = #tpu.dot_dimension_numbers<[1], [0], [0], [1], [0, 0, 1, 1], [], []>} : vector<8x32xf32>, vector<32x128xf32>, vector<8x128xf32> -> vector<8x128xf32>
    %110 = arith.addf %108, %109 : vector<8x128xf32>
    %cst_29 = arith.constant 0.000000e+00 : f32
    %111 = vector.broadcast %cst_29 : f32 to vector<8x128xf32>
    %112 = arith.subf %111, %110 : vector<8x128xf32>
    %113 = math.exp %112 : vector<8x128xf32>
    %cst_30 = arith.constant 1.000000e+00 : f32
    %114 = vector.broadcast %cst_30 : f32 to vector<8x128xf32>
    %115 = arith.addf %114, %113 : vector<8x128xf32>
    %cst_31 = arith.constant 1.000000e+00 : f32
    %116 = vector.broadcast %cst_31 : f32 to vector<8x128xf32>
    %117 = arith.divf %116, %115 : vector<8x128xf32>
    %118 = math.tanh %110 : vector<8x128xf32>
    %119 = vector.extract_strided_slice %117 {offsets = [0, 0], sizes = [8, 32], strides = [1, 1]} : vector<8x128xf32> to vector<8x32xf32>
    %120 = vector.extract_strided_slice %117 {offsets = [0, 32], sizes = [8, 32], strides = [1, 1]} : vector<8x128xf32> to vector<8x32xf32>
    %121 = vector.extract_strided_slice %117 {offsets = [0, 96], sizes = [8, 32], strides = [1, 1]} : vector<8x128xf32> to vector<8x32xf32>
    %122 = vector.extract_strided_slice %118 {offsets = [0, 64], sizes = [8, 32], strides = [1, 1]} : vector<8x128xf32> to vector<8x32xf32>
    %123 = arith.mulf %120, %105 : vector<8x32xf32>
    %124 = arith.mulf %119, %122 : vector<8x32xf32>
    %125 = arith.addf %123, %124 : vector<8x32xf32>
    %126 = math.tanh %125 : vector<8x32xf32>
    %127 = arith.mulf %121, %126 : vector<8x32xf32>
    %128 = vector.extract_strided_slice %5 {offsets = [48, 0], sizes = [8, 128], strides = [1, 1]} : vector<64x256xf32> to vector<8x128xf32>
    %cst_32 = arith.constant dense<0.000000e+00> : vector<8x128xf32>
    %129 = tpu.matmul %127, %7, %cst_32 {dimension_numbers = #tpu.dot_dimension_numbers<[1], [0], [0], [1], [0, 0, 1, 1], [], []>} : vector<8x32xf32>, vector<32x128xf32>, vector<8x128xf32> -> vector<8x128xf32>
    %130 = arith.addf %128, %129 : vector<8x128xf32>
    %cst_33 = arith.constant 0.000000e+00 : f32
    %131 = vector.broadcast %cst_33 : f32 to vector<8x128xf32>
    %132 = arith.subf %131, %130 : vector<8x128xf32>
    %133 = math.exp %132 : vector<8x128xf32>
    %cst_34 = arith.constant 1.000000e+00 : f32
    %134 = vector.broadcast %cst_34 : f32 to vector<8x128xf32>
    %135 = arith.addf %134, %133 : vector<8x128xf32>
    %cst_35 = arith.constant 1.000000e+00 : f32
    %136 = vector.broadcast %cst_35 : f32 to vector<8x128xf32>
    %137 = arith.divf %136, %135 : vector<8x128xf32>
    %138 = math.tanh %130 : vector<8x128xf32>
    %139 = vector.extract_strided_slice %137 {offsets = [0, 0], sizes = [8, 32], strides = [1, 1]} : vector<8x128xf32> to vector<8x32xf32>
    %140 = vector.extract_strided_slice %137 {offsets = [0, 32], sizes = [8, 32], strides = [1, 1]} : vector<8x128xf32> to vector<8x32xf32>
    %141 = vector.extract_strided_slice %137 {offsets = [0, 96], sizes = [8, 32], strides = [1, 1]} : vector<8x128xf32> to vector<8x32xf32>
    %142 = vector.extract_strided_slice %138 {offsets = [0, 64], sizes = [8, 32], strides = [1, 1]} : vector<8x128xf32> to vector<8x32xf32>
    %143 = arith.mulf %140, %125 : vector<8x32xf32>
    %144 = arith.mulf %139, %142 : vector<8x32xf32>
    %145 = arith.addf %143, %144 : vector<8x32xf32>
    %146 = math.tanh %145 : vector<8x32xf32>
    %147 = arith.mulf %141, %146 : vector<8x32xf32>
    %148 = vector.extract_strided_slice %5 {offsets = [56, 0], sizes = [8, 128], strides = [1, 1]} : vector<64x256xf32> to vector<8x128xf32>
    %cst_36 = arith.constant dense<0.000000e+00> : vector<8x128xf32>
    %149 = tpu.matmul %147, %7, %cst_36 {dimension_numbers = #tpu.dot_dimension_numbers<[1], [0], [0], [1], [0, 0, 1, 1], [], []>} : vector<8x32xf32>, vector<32x128xf32>, vector<8x128xf32> -> vector<8x128xf32>
    %150 = arith.addf %148, %149 : vector<8x128xf32>
    %cst_37 = arith.constant 0.000000e+00 : f32
    %151 = vector.broadcast %cst_37 : f32 to vector<8x128xf32>
    %152 = arith.subf %151, %150 : vector<8x128xf32>
    %153 = math.exp %152 : vector<8x128xf32>
    %cst_38 = arith.constant 1.000000e+00 : f32
    %154 = vector.broadcast %cst_38 : f32 to vector<8x128xf32>
    %155 = arith.addf %154, %153 : vector<8x128xf32>
    %cst_39 = arith.constant 1.000000e+00 : f32
    %156 = vector.broadcast %cst_39 : f32 to vector<8x128xf32>
    %157 = arith.divf %156, %155 : vector<8x128xf32>
    %158 = math.tanh %150 : vector<8x128xf32>
    %159 = vector.extract_strided_slice %157 {offsets = [0, 0], sizes = [8, 32], strides = [1, 1]} : vector<8x128xf32> to vector<8x32xf32>
    %160 = vector.extract_strided_slice %157 {offsets = [0, 32], sizes = [8, 32], strides = [1, 1]} : vector<8x128xf32> to vector<8x32xf32>
    %161 = vector.extract_strided_slice %157 {offsets = [0, 96], sizes = [8, 32], strides = [1, 1]} : vector<8x128xf32> to vector<8x32xf32>
    %162 = vector.extract_strided_slice %158 {offsets = [0, 64], sizes = [8, 32], strides = [1, 1]} : vector<8x128xf32> to vector<8x32xf32>
    %163 = arith.mulf %160, %145 : vector<8x32xf32>
    %164 = arith.mulf %159, %162 : vector<8x32xf32>
    %165 = arith.addf %163, %164 : vector<8x32xf32>
    %166 = math.tanh %165 : vector<8x32xf32>
    %167 = arith.mulf %161, %166 : vector<8x32xf32>
    %168 = vector.extract_strided_slice %5 {offsets = [56, 128], sizes = [8, 128], strides = [1, 1]} : vector<64x256xf32> to vector<8x128xf32>
    %c0_40 = arith.constant 0 : index
    %c0_41 = arith.constant 0 : index
    %169 = vector.load %arg4[%c0_40, %c0_41] : memref<32x128xf32, #tpu.memory_space<vmem>>, vector<32x128xf32>
    %cst_42 = arith.constant dense<0.000000e+00> : vector<8x128xf32>
    %170 = tpu.matmul %6, %169, %cst_42 {dimension_numbers = #tpu.dot_dimension_numbers<[1], [0], [0], [1], [0, 0, 1, 1], [], []>} : vector<8x32xf32>, vector<32x128xf32>, vector<8x128xf32> -> vector<8x128xf32>
    %171 = arith.addf %168, %170 : vector<8x128xf32>
    %cst_43 = arith.constant 0.000000e+00 : f32
    %172 = vector.broadcast %cst_43 : f32 to vector<8x128xf32>
    %173 = arith.subf %172, %171 : vector<8x128xf32>
    %174 = math.exp %173 : vector<8x128xf32>
    %cst_44 = arith.constant 1.000000e+00 : f32
    %175 = vector.broadcast %cst_44 : f32 to vector<8x128xf32>
    %176 = arith.addf %175, %174 : vector<8x128xf32>
    %cst_45 = arith.constant 1.000000e+00 : f32
    %177 = vector.broadcast %cst_45 : f32 to vector<8x128xf32>
    %178 = arith.divf %177, %176 : vector<8x128xf32>
    %179 = math.tanh %171 : vector<8x128xf32>
    %180 = vector.extract_strided_slice %178 {offsets = [0, 0], sizes = [8, 32], strides = [1, 1]} : vector<8x128xf32> to vector<8x32xf32>
    %181 = vector.extract_strided_slice %178 {offsets = [0, 32], sizes = [8, 32], strides = [1, 1]} : vector<8x128xf32> to vector<8x32xf32>
    %182 = vector.extract_strided_slice %178 {offsets = [0, 96], sizes = [8, 32], strides = [1, 1]} : vector<8x128xf32> to vector<8x32xf32>
    %183 = vector.extract_strided_slice %179 {offsets = [0, 64], sizes = [8, 32], strides = [1, 1]} : vector<8x128xf32> to vector<8x32xf32>
    %184 = arith.mulf %181, %6 : vector<8x32xf32>
    %185 = arith.mulf %180, %183 : vector<8x32xf32>
    %186 = arith.addf %184, %185 : vector<8x32xf32>
    %187 = math.tanh %186 : vector<8x32xf32>
    %188 = arith.mulf %182, %187 : vector<8x32xf32>
    %189 = tpu.concatenate %167, %188 in 1 : vector<8x32xf32>, vector<8x32xf32> -> vector<8x64xf32>
    %c0_46 = arith.constant 0 : index
    %c0_47 = arith.constant 0 : index
    %190 = vector.load %arg5[%c0_46, %c0_47] : memref<64x64xf32, #tpu.memory_space<vmem>>, vector<64x64xf32>
    %cst_48 = arith.constant dense<0.000000e+00> : vector<8x64xf32>
    %191 = tpu.matmul %189, %190, %cst_48 {dimension_numbers = #tpu.dot_dimension_numbers<[1], [0], [0], [1], [0, 0, 1, 1], [], []>} : vector<8x64xf32>, vector<64x64xf32>, vector<8x64xf32> -> vector<8x64xf32>
    %c0_49 = arith.constant 0 : index
    %c0_50 = arith.constant 0 : index
    %192 = vector.load %arg6[%c0_49, %c0_50] : memref<1x64xf32, #tpu.memory_space<vmem>>, vector<1x64xf32>
    %193 = vector.broadcast %192 : vector<1x64xf32> to vector<8x64xf32>
    %194 = arith.addf %191, %193 : vector<8x64xf32>
    %cst_51 = arith.constant 0.000000e+00 : f32
    %195 = vector.broadcast %cst_51 : f32 to vector<8x64xf32>
    %196 = arith.maximumf %194, %195 : vector<8x64xf32>
    %c0_52 = arith.constant 0 : index
    %c0_53 = arith.constant 0 : index
    %197 = vector.load %arg7[%c0_52, %c0_53] : memref<64x2xf32, #tpu.memory_space<vmem>>, vector<64x2xf32>
    %cst_54 = arith.constant dense<0.000000e+00> : vector<8x2xf32>
    %198 = tpu.matmul %196, %197, %cst_54 {dimension_numbers = #tpu.dot_dimension_numbers<[1], [0], [0], [1], [0, 0, 1, 1], [], []>} : vector<8x64xf32>, vector<64x2xf32>, vector<8x2xf32> -> vector<8x2xf32>
    %c0_55 = arith.constant 0 : index
    %c0_56 = arith.constant 0 : index
    %199 = vector.load %arg8[%c0_55, %c0_56] : memref<1x2xf32, #tpu.memory_space<vmem>>, vector<1x2xf32>
    %200 = vector.broadcast %199 : vector<1x2xf32> to vector<8x2xf32>
    %201 = arith.addf %198, %200 : vector<8x2xf32>
    %c0_57 = arith.constant 0 : index
    %c0_58 = arith.constant 0 : index
    %202 = vector.load %arg9[%c0_57, %c0_58] : memref<8x2xf32, #tpu.memory_space<vmem>>, vector<8x2xf32>
    tpu.vector_store %arg9[%c0_57, %c0_58], %201 {strides = array<i32>} : memref<8x2xf32, #tpu.memory_space<vmem>>, vector<8x2xf32>,
    return
  }
}

</mosaic_0001>

<llo_original>
// kernel: cnn_lstm_2d_forward.3
$region0: #{cnn_lstm_2d_forward.3}
  #allocation0 [shape = 'u32[]', space=smem, size = 0x4, offset = 0x4, fixed_abs, tag = 'smem constant byte address 0x4 - core index']
  #allocation1 [shape = 'u32[72,128]{1,0:T(1,128)}', space=vmem, size = 0x9000, scoped, tag = 'internal scratch']
  #allocation2 [shape = 'f32[16,512]{1,0:T(8,128)}', space=vmem, size = 0x8000, scoped, tag = 'scratch operand']
  %s0 = inlined_call_operand.vmem [shape: bf16[4,36,1024], index: 0, kind: input, shape index: {}]
  %s1 = inlined_call_operand.vmem [shape: bf16[16,36], index: 1, kind: input, shape index: {}]
  %s2 = inlined_call_operand.vmem [shape: f32[16,1], index: 2, kind: input, shape index: {}]
  %s3 = inlined_call_operand.vmem [shape: bf16[16,1024], index: 3, kind: output, shape index: {}]
  %s4 = sld [smem:[#allocation0]]
  $region99: #{cnn_lstm_2d_forward.3} parent=0
    _
  %s6 = ssub.s32 1, %s4
  %s7 = scalar_select 0, %s6, %s4
  $region1: #{cnn_lstm_2d_forward.3} parent=0
    #allocation3 [shape = 'u8[81920]{0}', space=vmem, size = 0x14000, scoped, tag = 'input window, operand 0']
    #allocation4 [shape = 'u8[32768]{0}', space=vmem, size = 0x8000, scoped, tag = 'output window, operand 0']
    loop: start=0, step=1, limit=10
    $region2: #{cnn_lstm_2d_forward.3} parent=1 // loop_pre_header
      _
    $region3: #{cnn_lstm_2d_forward.3} parent=1 // loop_header
      %s9 = sphi 0, %s13
      %p10 = scmp.ge.s32.totalorder %s9, 10
      %s16 = sphi 0, %s28
      %s17 = sphi 0, %s24
      %s18 = sphi 0, %s16
      %s19 = sphi 0, %s17
      %s20 = sphi 0, %s18
      %s21 = sphi 0, %s19
      %s33 = sphi 0, %s35
      %s36 = sphi 0, %s33
      %s37 = sphi 0, %s36
      %s53 = sphi 0, %s37
      %s57 = sphi 0, %s57
      %s59 = sphi 0, %s57
      %s60 = sphi 0, %s59
      %s74 = sphi 0, %s60
      %s78 = sphi 0, %s78
      %s80 = sphi 0, %s78
      %s81 = sphi 0, %s80
      %s95 = sphi 0, %s81
      %s101 = sphi 0, %s103
      %s104 = sphi 0, %s101
      %s105 = sphi 0, %s104
      %s121 = sphi 0, %s105
    $region4: #{cnn_lstm_2d_forward.3} parent=1 // loop_header_branch
      %12 = sbr.rel (%p10) target = $region8
    $region5: #{cnn_lstm_2d_forward.3} parent=1 // loop_body
      %s14 = ssub.s32 %s9, 1
      %s15 = ssub.s32 %s9, 2
      %s22 = sadd.s32 1, %s17
      %p23 = scmp.ge.s32.totalorder %s22, 4
      %s24 = scalar_select %p23, 0, %s22
      %s25 = sadd.s32 1, %s16
      %s26 = scalar_select %p23, %s25, %s16
      %p27 = scmp.ge.s32.totalorder %s26, 2
      %s28 = scalar_select %p27, 0, %s26
      %s29 = ssub.s32 %s17, %s24
      %s30 = ssub.s32 %s16, %s28
      %s31 = sor.u32 %s29, %s30
      %p32 = scmp.eq.s32.totalorder %s31, 0
      %s34 = sadd.s32 %s33, 1
      %s35 = scalar_select %p32, %s33, %s34
      %p38 = pneg %p32
      %p39 = scmp.eq.s32.totalorder %s9, 7
      %p40 = por %p38, %p39
      %p41 = scmp.ne.s32.totalorder %s33, %s36
      %p42 = scmp.eq.s32.totalorder %s9, 0
      %p43 = por %p41, %p42
      %p44 = scmp.ne.s32.totalorder %s33, %s36
      %p45 = scmp.eq.s32.totalorder %s14, 7
      %p46 = por %p44, %p45
      %p47 = scmp.ne.s32.totalorder %s36, %s37
      %p48 = scmp.eq.s32.totalorder %s14, 0
      %p49 = por %p47, %p48
      %p50 = scmp.ne.s32.totalorder %s36, %s37
      %p51 = scmp.eq.s32.totalorder %s15, 7
      %p52 = por %p50, %p51
      %p54 = scmp.ne.s32.totalorder %s37, %s53
      %p55 = scmp.eq.s32.totalorder %s15, 0
      %p56 = por %p54, %p55
      %s58 = sadd.s32 %s57, 1
      %p61 = scmp.eq.s32.totalorder %s9, 7
      %p62 = scmp.ne.s32.totalorder %s57, %s59
      %p63 = scmp.eq.s32.totalorder %s9, 0
      %p64 = por %p62, %p63
      %p65 = scmp.ne.s32.totalorder %s57, %s59
      %p66 = scmp.eq.s32.totalorder %s14, 7
      %p67 = por %p65, %p66
      %p68 = scmp.ne.s32.totalorder %s59, %s60
      %p69 = scmp.eq.s32.totalorder %s14, 0
      %p70 = por %p68, %p69
      %p71 = scmp.ne.s32.totalorder %s59, %s60
      %p72 = scmp.eq.s32.totalorder %s15, 7
      %p73 = por %p71, %p72
      %p75 = scmp.ne.s32.totalorder %s60, %s74
      %p76 = scmp.eq.s32.totalorder %s15, 0
      %p77 = por %p75, %p76
      %s79 = sadd.s32 %s78, 1
      %p82 = scmp.eq.s32.totalorder %s9, 7
      %p83 = scmp.ne.s32.totalorder %s78, %s80
      %p84 = scmp.eq.s32.totalorder %s9, 0
      %p85 = por %p83, %p84
      %p86 = scmp.ne.s32.totalorder %s78, %s80
      %p87 = scmp.eq.s32.totalorder %s14, 7
      %p88 = por %p86, %p87
      %p89 = scmp.ne.s32.totalorder %s80, %s81
      %p90 = scmp.eq.s32.totalorder %s14, 0
      %p91 = por %p89, %p90
      %p92 = scmp.ne.s32.totalorder %s80, %s81
      %p93 = scmp.eq.s32.totalorder %s15, 7
      %p94 = por %p92, %p93
      %p96 = scmp.ne.s32.totalorder %s81, %s95
      %p97 = scmp.eq.s32.totalorder %s15, 0
      %p98 = por %p96, %p97
      %s99 = ssub.s32 %s16, %s28
      %p100 = scmp.eq.s32.totalorder %s99, 0
      %s102 = sadd.s32 %s101, 1
      %s103 = scalar_select %p100, %s101, %s102
      %p106 = pneg %p100
      %p107 = scmp.eq.s32.totalorder %s9, 7
      %p108 = por %p106, %p107
      %p109 = scmp.ne.s32.totalorder %s101, %s104
      %p110 = scmp.eq.s32.totalorder %s9, 0
      %p111 = por %p109, %p110
      %p112 = scmp.ne.s32.totalorder %s101, %s104
      %p113 = scmp.eq.s32.totalorder %s14, 7
      %p114 = por %p112, %p113
      %p115 = scmp.ne.s32.totalorder %s104, %s105
      %p116 = scmp.eq.s32.totalorder %s14, 0
      %p117 = por %p115, %p116
      %p118 = scmp.ne.s32.totalorder %s104, %s105
      %p119 = scmp.eq.s32.totalorder %s15, 7
      %p120 = por %p118, %p119
      %p122 = scmp.ne.s32.totalorder %s105, %s121
      %p123 = scmp.eq.s32.totalorder %s15, 0
      %p124 = por %p122, %p123
      %p125 = scmp.le.s32.totalorder 1, %s9
      %p126 = scmp.lt.s32.totalorder %s9, 9
      %p127 = pnand %p125, %p126
      %p128 = pneg %p127
      // Predicated region
      $region9: #{cnn_lstm_2d_forward.3} parent=5 // pred_check
        _
      $region10: #{cnn_lstm_2d_forward.3} parent=5 // pred_check_branch
        %130 = sbr.rel (%p127) target = $region12
      $region11: #{cnn_lstm_2d_forward.3} parent=5 // pred_region
        %s131 = ssub.s32 %s9, 1
        // Predicated region
        $region13: #{cnn_lstm_2d_forward.3} parent=11 // pred_check
          %p132 = pneg %p70
        $region14: #{cnn_lstm_2d_forward.3} parent=11 // pred_check_branch
          %134 = sbr.rel (%p132) target = $region16
        $region15: #{cnn_lstm_2d_forward.3} parent=11 // pred_region
          _
        $region16: #{cnn_lstm_2d_forward.3} parent=11 // pred_fallthru
          _
        // Predicated region
        $region17: #{cnn_lstm_2d_forward.3} parent=11 // pred_check
          %p135 = pneg %p91
        $region18: #{cnn_lstm_2d_forward.3} parent=11 // pred_check_branch
          %137 = sbr.rel (%p135) target = $region20
        $region19: #{cnn_lstm_2d_forward.3} parent=11 // pred_region
          _
        $region20: #{cnn_lstm_2d_forward.3} parent=11 // pred_fallthru
          _
      $region12: #{cnn_lstm_2d_forward.3} parent=5 // pred_fallthru
        _
      %p138 = scmp.lt.s32.totalorder %s9, 8
      // Predicated region
      $region21: #{cnn_lstm_2d_forward.3} parent=5 // pred_check
        %p139 = pneg %p138
      $region22: #{cnn_lstm_2d_forward.3} parent=5 // pred_check_branch
        %141 = sbr.rel (%p139) target = $region24
      $region23: #{cnn_lstm_2d_forward.3} parent=5 // pred_region
        // Predicated region
        $region25: #{cnn_lstm_2d_forward.3} parent=23 // pred_check
          %p142 = pneg %p43
        $region26: #{cnn_lstm_2d_forward.3} parent=23 // pred_check_branch
          %144 = sbr.rel (%p142) target = $region28
        $region27: #{cnn_lstm_2d_forward.3} parent=23 // pred_region
          %s145 = sand.u32 %s33, 1
          %s146 = sand.u32 %s33, 1
          %s147 = smul.addr %s146, 80
          %s148 = scalar_lea.vmem [#allocation3], %s147
          %s149 = smul.u32 4, %s16
          %s150 = smul.addr %s17, 40
          %s151 = sadd.s32 %s149, %s150
          %s152 = smul.addr %s151, 4
          %s153 = scalar_lea.vmem %s0, %s152
          // Predicated region
          $region29: #{cnn_lstm_2d_forward.3} parent=27 // pred_check
            _
          $region30: #{cnn_lstm_2d_forward.3} parent=27 // pred_check_branch
            %155 = sbr.rel (0) target = $region32
          $region31: #{cnn_lstm_2d_forward.3} parent=27 // pred_region
            // Predicated region
            $region33: #{cnn_lstm_2d_forward.3} parent=31 // pred_check
              _
            $region34: #{cnn_lstm_2d_forward.3} parent=31 // pred_check_branch
              %157 = sbr.rel (0) target = $region36
            $region35: #{cnn_lstm_2d_forward.3} parent=31 // pred_region
              loop: start=0, step=1, limit=1
              $region37: #{cnn_lstm_2d_forward.3} parent=35 // loop_pre_header
                _
              $region38: #{cnn_lstm_2d_forward.3} parent=35 // loop_header
                %s159 = sphi 0, %s163
                %p160 = scmp.ge.s32.totalorder %s159, 1
                %s164 = sphi %s153, %s153
                %s165 = sphi %s148, %s148
              $region39: #{cnn_lstm_2d_forward.3} parent=35 // loop_header_branch
                %162 = sbr.rel (%p160) target = $region43
              $region40: #{cnn_lstm_2d_forward.3} parent=35 // loop_body
                %v166 = vld [vmem:[%s164] sm:$0xff]
                %167 = vst [vmem:[%s165] sm:$0xff] %v166
                %v168 = vld [vmem:[%s164 + $0x8] sm:$0xff]
                %169 = vst [vmem:[%s165 + $0x8] sm:$0xff] %v168
                %v170 = vld [vmem:[%s164 + $0x20] sm:$0xff]
                %171 = vst [vmem:[%s165 + $0x10] sm:$0xff] %v170
                %v172 = vld [vmem:[%s164 + $0x28] sm:$0xff]
                %173 = vst [vmem:[%s165 + $0x18] sm:$0xff] %v172
                %v174 = vld [vmem:[%s164 + $0x40] sm:$0xff]
                %175 = vst [vmem:[%s165 + $0x20] sm:$0xff] %v174
                %v176 = vld [vmem:[%s164 + $0x48] sm:$0xff]
                %177 = vst [vmem:[%s165 + $0x28] sm:$0xff] %v176
                %v178 = vld [vmem:[%s164 + $0x60] sm:$0xff]
                %179 = vst [vmem:[%s165 + $0x30] sm:$0xff] %v178
                %v180 = vld [vmem:[%s164 + $0x68] sm:$0xff]
                %181 = vst [vmem:[%s165 + $0x38] sm:$0xff] %v180
                %v182 = vld [vmem:[%s164 + $0x80] sm:$0xff]
                %183 = vst [vmem:[%s165 + $0x40] sm:$0xff] %v182
                %v184 = vld [vmem:[%s164 + $0x88] sm:$0xff]
                %185 = vst [vmem:[%s165 + $0x48] sm:$0xff] %v184
              $region41: #{cnn_lstm_2d_forward.3} parent=35 // loop_footer
                %s163 = sadd.s32 1, %s159
              $region42: #{cnn_lstm_2d_forward.3} parent=35 // loop_footer_branch
                %158 = sbr.rel target = $region38
              $region43: #{cnn_lstm_2d_forward.3} parent=35 // loop_exit
                _
            $region36: #{cnn_lstm_2d_forward.3} parent=31 // pred_fallthru
              _
            // Predicated region
            $region44: #{cnn_lstm_2d_forward.3} parent=31 // pred_check
              _
            $region45: #{cnn_lstm_2d_forward.3} parent=31 // pred_check_branch
              %187 = sbr.rel target = $region47
            $region46: #{cnn_lstm_2d_forward.3} parent=31 // pred_region
              _
            $region47: #{cnn_lstm_2d_forward.3} parent=31 // pred_fallthru
              _
          $region32: #{cnn_lstm_2d_forward.3} parent=27 // pred_fallthru
            _
          %188 = vnop
        $region28: #{cnn_lstm_2d_forward.3} parent=23 // pred_fallthru
          _
      $region24: #{cnn_lstm_2d_forward.3} parent=5 // pred_fallthru
        _
      %p189 = scmp.le.s32.totalorder 1, %s9
      %p190 = scmp.lt.s32.totalorder %s9, 9
      %p191 = pnand %p189, %p190
      %p192 = pneg %p191
      // Predicated region
      $region48: #{cnn_lstm_2d_forward.3} parent=5 // pred_check
        _
      $region49: #{cnn_lstm_2d_forward.3} parent=5 // pred_check_branch
        %194 = sbr.rel (%p191) target = $region51
      $region50: #{cnn_lstm_2d_forward.3} parent=5 // pred_region
        %s195 = ssub.s32 %s9, 1
        %s196 = sand.u32 %s36, 1
        %s197 = sand.u32 %s36, 1
        %s198 = smul.addr %s197, 80
        %s199 = scalar_lea.vmem [#allocation3], %s198
        // Predicated region
        $region52: #{cnn_lstm_2d_forward.3} parent=50 // pred_check
          %p200 = pneg %p49
        $region53: #{cnn_lstm_2d_forward.3} parent=50 // pred_check_branch
          %202 = sbr.rel (%p200) target = $region55
        $region54: #{cnn_lstm_2d_forward.3} parent=50 // pred_region
          _
        $region55: #{cnn_lstm_2d_forward.3} parent=50 // pred_fallthru
          _
        %s203 = sand.u32 %s36, 1
        %s204 = sand.u32 %s36, 1
        %s205 = smul.addr %s204, 80
        %s206 = scalar_lea.vmem [#allocation3], %s205
        %p207 = pneg %p49
        %p208 = pneg %p46
        %p209 = pneg %p70
        %p210 = pneg %p67
        %p211 = pneg %p91
        %p212 = pneg %p88
        %p213 = pneg %p117
        %p214 = pneg %p114
        %s215 = sand.u32 %s104, 1
        %s216 = sand.u32 %s104, 1
        %s217 = smul.addr %s216, 32
        %s218 = scalar_lea.vmem [#allocation4], %s217
        %s219 = smul.u32 4, %s18
        %s220 = smul.u32 4, %s18
        %v222 = vld [vmem:[%s1] sm:$0xf]
        %v223 = vld [vmem:[%s1 + $0x4] sm:$0xf]
        %v224 = vld [vmem:[%s199] sm:$0xff]
        %v225 = vld [vmem:[%s199 + $0x8] sm:$0xff]
        %v226 = vld [vmem:[%s199 + $0x10] sm:$0xff]
        %v227 = vld [vmem:[%s199 + $0x18] sm:$0xff]
        %v228 = vld [vmem:[%s199 + $0x20] sm:$0xff]
        %v229 = vld [vmem:[%s199 + $0x28] sm:$0xff]
        %v230 = vld [vmem:[%s199 + $0x30] sm:$0xff]
        %v231 = vld [vmem:[%s199 + $0x38] sm:$0xff]
        %v232 = vld [vmem:[%s199 + $0x40] sm:$0x33]
        %v233 = vld [vmem:[%s199 + $0x48] sm:$0x33]
        %v236 = vunpack.c.l.b16 %v222
        %v237 = vunpack.c.l.b16 %v223
        %v238 = vpack.c.b16 %v237, %v236
        %v249 = vunpack.c.l.b16 %v224
        %v250 = vunpack.c.h.b16 %v224
        %v251 = vunpack.c.l.b16 %v225
        %v252 = vunpack.c.h.b16 %v225
        %v253 = vunpack.c.l.b16 %v226
        %v254 = vunpack.c.h.b16 %v226
        %v255 = vunpack.c.l.b16 %v227
        %v256 = vunpack.c.h.b16 %v227
        %v257 = vunpack.c.l.b16 %v228
        %v258 = vunpack.c.h.b16 %v228
        %v259 = vunpack.c.l.b16 %v229
        %v260 = vunpack.c.h.b16 %v229
        %v261 = vunpack.c.l.b16 %v230
        %v262 = vunpack.c.h.b16 %v230
        %v263 = vunpack.c.l.b16 %v231
        %v264 = vunpack.c.h.b16 %v231
        %v265 = vunpack.c.l.b16 %v232
        %v266 = vunpack.c.h.b16 %v232
        %v267 = vunpack.c.l.b16 %v233
        %v268 = vunpack.c.h.b16 %v233
        %v269 = vpack.c.b16 %v253, %v249
        %v270 = vpack.c.b16 %v254, %v250
        %v271 = vpack.c.b16 %v255, %v251
        %v272 = vpack.c.b16 %v256, %v252
        %v273 = vpack.c.b16 %v261, %v257
        %v274 = vpack.c.b16 %v262, %v258
        %v275 = vpack.c.b16 %v263, %v259
        %v276 = vpack.c.b16 %v264, %v260
        %v277 = vpack.c.b16 %v265, %v265
        %v278 = vpack.c.b16 %v266, %v266
        %v279 = vpack.c.b16 %v267, %v267
        %v280 = vpack.c.b16 %v268, %v268
        %vm289 = vcmask 293888
        %v291 = vsel %vm289, %v238, 0
        %vm293 = vcmask 1041408
        %v295 = vsel %vm293, %v277, 0
        %v298 = vsel %vm293, %v278, 0
        %v301 = vsel %vm293, %v279, 0
        %v304 = vsel %vm293, %v280, 0
        %306 = vmatpush.bf16.msra.mxu0 0
        %307 = vmatpush.bf16.msra.mxu0 0
        %308 = vmatpush.bf16.msra.mxu0 0
        %309 = vmatpush.bf16.msra.mxu0 0
        %310 = vmatpush.bf16.msra.mxu0 0
        %311 = vmatpush.bf16.msra.mxu0 %v295
        %312 = vmatpush.bf16.msra.mxu0 %v273
        %313 = vmatpush.bf16.msra.mxu0 %v269
        %314 = vmatmul.bf16.gmra.mxu0 %v291
        %v315 = vpop.f32.mrf.mxu0
        %v316 = vadd.f32 0.0, %v315
        %v317 = vpop.f32.mrf.mxu0
        %v318 = vadd.f32 0.0, %v317
        %319 = vdwg.mxu0
        %320 = vmatpush.bf16.msra.mxu0 0
        %321 = vmatpush.bf16.msra.mxu0 0
        %322 = vmatpush.bf16.msra.mxu0 0
        %323 = vmatpush.bf16.msra.mxu0 0
        %324 = vmatpush.bf16.msra.mxu0 0
        %325 = vmatpush.bf16.msra.mxu0 %v298
        %326 = vmatpush.bf16.msra.mxu0 %v274
        %327 = vmatpush.bf16.msra.mxu0 %v270
        %328 = vmatmul.bf16.gmra.mxu0 %v291
        %v329 = vpop.f32.mrf.mxu0
        %v330 = vadd.f32 0.0, %v329
        %v331 = vpop.f32.mrf.mxu0
        %v332 = vadd.f32 0.0, %v331
        %333 = vdwg.mxu0
        %334 = vmatpush.bf16.msra.mxu0 0
        %335 = vmatpush.bf16.msra.mxu0 0
        %336 = vmatpush.bf16.msra.mxu0 0
        %337 = vmatpush.bf16.msra.mxu0 0
        %338 = vmatpush.bf16.msra.mxu0 0
        %339 = vmatpush.bf16.msra.mxu0 %v301
        %340 = vmatpush.bf16.msra.mxu0 %v275
        %341 = vmatpush.bf16.msra.mxu0 %v271
        %342 = vmatmul.bf16.gmra.mxu0 %v291
        %v343 = vpop.f32.mrf.mxu0
        %v344 = vadd.f32 0.0, %v343
        %v345 = vpop.f32.mrf.mxu0
        %v346 = vadd.f32 0.0, %v345
        %347 = vdwg.mxu0
        %348 = vmatpush.bf16.msra.mxu0 0
        %349 = vmatpush.bf16.msra.mxu0 0
        %350 = vmatpush.bf16.msra.mxu0 0
        %351 = vmatpush.bf16.msra.mxu0 0
        %352 = vmatpush.bf16.msra.mxu0 0
        %353 = vmatpush.bf16.msra.mxu0 %v304
        %354 = vmatpush.bf16.msra.mxu0 %v276
        %355 = vmatpush.bf16.msra.mxu0 %v272
        %356 = vmatmul.bf16.gmra.mxu0 %v291
        %v357 = vpop.f32.mrf.mxu0
        %v358 = vadd.f32 0.0, %v357
        %v359 = vpop.f32.mrf.mxu0
        %v360 = vadd.f32 0.0, %v359
        %361 = vdwg.mxu0
        %p362 = scmp.eq.s32.totalorder %s19, 0
        // Predicated region
        $region56: #{cnn_lstm_2d_forward.3} parent=50 // pred_check
          %p363 = pneg %p362
        $region57: #{cnn_lstm_2d_forward.3} parent=50 // pred_check_branch
          %365 = sbr.rel (%p363) target = $region59
        $region58: #{cnn_lstm_2d_forward.3} parent=50 // pred_region
          %366 = vst [vmem:[#allocation2] sm:$0xff] %v316
          %367 = vst [vmem:[#allocation2 + $0x8] sm:$0xff] %v330
          %368 = vst [vmem:[#allocation2 + $0x10] sm:$0xff] %v344
          %369 = vst [vmem:[#allocation2 + $0x18] sm:$0xff] %v358
          %370 = vst [vmem:[#allocation2 + $0x20] sm:$0xff] %v318
          %371 = vst [vmem:[#allocation2 + $0x28] sm:$0xff] %v332
          %372 = vst [vmem:[#allocation2 + $0x30] sm:$0xff] %v346
          %373 = vst [vmem:[#allocation2 + $0x38] sm:$0xff] %v360
        $region59: #{cnn_lstm_2d_forward.3} parent=50 // pred_fallthru
          _
        %p374 = scmp.ne.s32.totalorder %s19, 0
        // Predicated region
        $region60: #{cnn_lstm_2d_forward.3} parent=50 // pred_check
          %p375 = pneg %p374
        $region61: #{cnn_lstm_2d_forward.3} parent=50 // pred_check_branch
          %377 = sbr.rel (%p375) target = $region63
        $region62: #{cnn_lstm_2d_forward.3} parent=50 // pred_region
          %v378 = vld [vmem:[#allocation2] sm:$0xff]
          %v379 = vld [vmem:[#allocation2 + $0x8] sm:$0xff]
          %v380 = vld [vmem:[#allocation2 + $0x10] sm:$0xff]
          %v381 = vld [vmem:[#allocation2 + $0x18] sm:$0xff]
          %v382 = vld [vmem:[#allocation2 + $0x20] sm:$0xff]
          %v383 = vld [vmem:[#allocation2 + $0x28] sm:$0xff]
          %v384 = vld [vmem:[#allocation2 + $0x30] sm:$0xff]
          %v385 = vld [vmem:[#allocation2 + $0x38] sm:$0xff]
          %v386 = vmax.f32 %v378, %v316
          %v387 = vmax.f32 %v379, %v330
          %v388 = vmax.f32 %v380, %v344
          %v389 = vmax.f32 %v381, %v358
          %v390 = vmax.f32 %v382, %v318
          %v391 = vmax.f32 %v383, %v332
          %v392 = vmax.f32 %v384, %v346
          %v393 = vmax.f32 %v385, %v360
          %394 = vst [vmem:[#allocation2] sm:$0xff] %v386
          %395 = vst [vmem:[#allocation2 + $0x8] sm:$0xff] %v387
          %396 = vst [vmem:[#allocation2 + $0x10] sm:$0xff] %v388
          %397 = vst [vmem:[#allocation2 + $0x18] sm:$0xff] %v389
          %398 = vst [vmem:[#allocation2 + $0x20] sm:$0xff] %v390
          %399 = vst [vmem:[#allocation2 + $0x28] sm:$0xff] %v391
          %400 = vst [vmem:[#allocation2 + $0x30] sm:$0xff] %v392
          %401 = vst [vmem:[#allocation2 + $0x38] sm:$0xff] %v393
        $region63: #{cnn_lstm_2d_forward.3} parent=50 // pred_fallthru
          _
        %p402 = scmp.eq.s32.totalorder %s19, 3
        // Predicated region
        $region64: #{cnn_lstm_2d_forward.3} parent=50 // pred_check
          %p403 = pneg %p402
        $region65: #{cnn_lstm_2d_forward.3} parent=50 // pred_check_branch
          %405 = sbr.rel (%p403) target = $region67
        $region66: #{cnn_lstm_2d_forward.3} parent=50 // pred_region
          %v406 = vld [vmem:[#allocation2] sm:$0xff]
          %v407 = vld [vmem:[#allocation2 + $0x8] sm:$0xff]
          %v408 = vld [vmem:[#allocation2 + $0x10] sm:$0xff]
          %v409 = vld [vmem:[#allocation2 + $0x18] sm:$0xff]
          %v410 = vld [vmem:[#allocation2 + $0x20] sm:$0xff]
          %v411 = vld [vmem:[#allocation2 + $0x28] sm:$0xff]
          %v412 = vld [vmem:[#allocation2 + $0x30] sm:$0xff]
          %v413 = vld [vmem:[#allocation2 + $0x38] sm:$0xff]
          %v414 = vld [vmem:[%s2] sm:$0xff]
          %v415 = vld [vmem:[%s2 + $0x8] sm:$0xff]
          %417 = vset.pattern.permute.xlu0 0
          %418 = vperm.xlu0 %417, %v414
          %v419 = vpop.permute.xlu0 %418
          %422 = vset.pattern.permute.xlu0 0
          %423 = vperm.xlu0 %422, %v415
          %v424 = vpop.permute.xlu0 %423
          %v426 = vadd.f32 %v406, %v419
          %v427 = vadd.f32 %v407, %v419
          %v428 = vadd.f32 %v408, %v419
          %v429 = vadd.f32 %v409, %v419
          %v430 = vadd.f32 %v410, %v424
          %v431 = vadd.f32 %v411, %v424
          %v432 = vadd.f32 %v412, %v424
          %v433 = vadd.f32 %v413, %v424
          %v434 = vmax.f32 %v426, 0.0
          %v435 = vmax.f32 %v427, 0.0
          %v436 = vmax.f32 %v428, 0.0
          %v437 = vmax.f32 %v429, 0.0
          %v438 = vmax.f32 %v430, 0.0
          %v439 = vmax.f32 %v431, 0.0
          %v440 = vmax.f32 %v432, 0.0
          %v441 = vmax.f32 %v433, 0.0
          %v442 = vpack.c.bf16 %v435, %v434
          %v443 = vpack.c.bf16 %v437, %v436
          %v444 = vpack.c.bf16 %v439, %v438
          %v445 = vpack.c.bf16 %v441, %v440
          %446 = vst [vmem:[%s218] sm:$0xff] %v442
          %447 = vst [vmem:[%s218 + $0x8] sm:$0xff] %v443
          %448 = vst [vmem:[%s218 + $0x10] sm:$0xff] %v444
          %449 = vst [vmem:[%s218 + $0x18] sm:$0xff] %v445
        $region67: #{cnn_lstm_2d_forward.3} parent=50 // pred_fallthru
          _
        %s450 = sand.u32 %s104, 1
        %s451 = sand.u32 %s104, 1
        %s452 = smul.addr %s451, 32
        %s453 = scalar_lea.vmem [#allocation4], %s452
        // Predicated region
        $region68: #{cnn_lstm_2d_forward.3} parent=50 // pred_check
          %p454 = pneg %p114
        $region69: #{cnn_lstm_2d_forward.3} parent=50 // pred_check_branch
          %456 = sbr.rel (%p454) target = $region71
        $region70: #{cnn_lstm_2d_forward.3} parent=50 // pred_region
          %s457 = smul.u32 4, %s18
          %s458 = smul.addr %s457, 4
          %s459 = scalar_lea.vmem %s3, %s458
          // Predicated region
          $region72: #{cnn_lstm_2d_forward.3} parent=70 // pred_check
            _
          $region73: #{cnn_lstm_2d_forward.3} parent=70 // pred_check_branch
            %461 = sbr.rel (0) target = $region75
          $region74: #{cnn_lstm_2d_forward.3} parent=70 // pred_region
            // Predicated region
            $region76: #{cnn_lstm_2d_forward.3} parent=74 // pred_check
              _
            $region77: #{cnn_lstm_2d_forward.3} parent=74 // pred_check_branch
              %463 = sbr.rel (0) target = $region79
            $region78: #{cnn_lstm_2d_forward.3} parent=74 // pred_region
              loop: start=0, step=1, limit=1
              $region80: #{cnn_lstm_2d_forward.3} parent=78 // loop_pre_header
                _
              $region81: #{cnn_lstm_2d_forward.3} parent=78 // loop_header
                %s465 = sphi 0, %s469
                %p466 = scmp.ge.s32.totalorder %s465, 1
                %s470 = sphi %s453, %s453
                %s471 = sphi %s459, %s459
              $region82: #{cnn_lstm_2d_forward.3} parent=78 // loop_header_branch
                %468 = sbr.rel (%p466) target = $region86
              $region83: #{cnn_lstm_2d_forward.3} parent=78 // loop_body
                %v472 = vld [vmem:[%s470] sm:$0xff]
                %473 = vst [vmem:[%s471] sm:$0xff] %v472
                %v474 = vld [vmem:[%s470 + $0x8] sm:$0xff]
                %475 = vst [vmem:[%s471 + $0x8] sm:$0xff] %v474
                %v476 = vld [vmem:[%s470 + $0x10] sm:$0xff]
                %477 = vst [vmem:[%s471 + $0x20] sm:$0xff] %v476
                %v478 = vld [vmem:[%s470 + $0x18] sm:$0xff]
                %479 = vst [vmem:[%s471 + $0x28] sm:$0xff] %v478
              $region84: #{cnn_lstm_2d_forward.3} parent=78 // loop_footer
                %s469 = sadd.s32 1, %s465
              $region85: #{cnn_lstm_2d_forward.3} parent=78 // loop_footer_branch
                %464 = sbr.rel target = $region81
              $region86: #{cnn_lstm_2d_forward.3} parent=78 // loop_exit
                _
            $region79: #{cnn_lstm_2d_forward.3} parent=74 // pred_fallthru
              _
            // Predicated region
            $region87: #{cnn_lstm_2d_forward.3} parent=74 // pred_check
              _
            $region88: #{cnn_lstm_2d_forward.3} parent=74 // pred_check_branch
              %481 = sbr.rel target = $region90
            $region89: #{cnn_lstm_2d_forward.3} parent=74 // pred_region
              _
            $region90: #{cnn_lstm_2d_forward.3} parent=74 // pred_fallthru
              _
          $region75: #{cnn_lstm_2d_forward.3} parent=70 // pred_fallthru
            _
          %482 = vnop
        $region71: #{cnn_lstm_2d_forward.3} parent=50 // pred_fallthru
          _
      $region51: #{cnn_lstm_2d_forward.3} parent=5 // pred_fallthru
        _
      %p483 = scmp.le.s32.totalorder 2, %s9
      // Predicated region
      $region91: #{cnn_lstm_2d_forward.3} parent=5 // pred_check
        %p484 = pneg %p483
      $region92: #{cnn_lstm_2d_forward.3} parent=5 // pred_check_branch
        %486 = sbr.rel (%p484) target = $region94
      $region93: #{cnn_lstm_2d_forward.3} parent=5 // pred_region
        %s487 = ssub.s32 %s9, 2
        // Predicated region
        $region95: #{cnn_lstm_2d_forward.3} parent=93 // pred_check
          %p488 = pneg %p120
        $region96: #{cnn_lstm_2d_forward.3} parent=93 // pred_check_branch
          %490 = sbr.rel (%p488) target = $region98
        $region97: #{cnn_lstm_2d_forward.3} parent=93 // pred_region
          %s491 = sand.u32 %s105, 1
          %s492 = sand.u32 %s105, 1
          %s493 = smul.addr %s492, 32
          %s494 = scalar_lea.vmem [#allocation4], %s493
        $region98: #{cnn_lstm_2d_forward.3} parent=93 // pred_fallthru
          _
      $region94: #{cnn_lstm_2d_forward.3} parent=5 // pred_fallthru
        _
    $region6: #{cnn_lstm_2d_forward.3} parent=1 // loop_footer
      %s13 = sadd.s32 1, %s9
    $region7: #{cnn_lstm_2d_forward.3} parent=1 // loop_footer_branch
      %8 = sbr.rel target = $region3
    $region8: #{cnn_lstm_2d_forward.3} parent=1 // loop_exit
      _

// kernel: cnn_lstm_2d_forward.4
$region0: #{cnn_lstm_2d_forward.4}
  #allocation0 [shape = 'u32[]', space=smem, size = 0x4, offset = 0x4, fixed_abs, tag = 'smem constant byte address 0x4 - core index']
  #allocation1 [shape = 'u32[72,128]{1,0:T(1,128)}', space=vmem, size = 0x9000, scoped, tag = 'internal scratch']
  #allocation2 [shape = 'f32[32,128]{1,0:T(8,128)}', space=vmem, size = 0x4000, scoped, tag = 'scratch operand']
  %s0 = inlined_call_operand.vmem [shape: bf16[4,144,256], index: 0, kind: input, shape index: {}]
  %s1 = inlined_call_operand.vmem [shape: bf16[32,144], index: 1, kind: input, shape index: {}]
  %s2 = inlined_call_operand.vmem [shape: f32[32,1], index: 2, kind: input, shape index: {}]
  %s3 = inlined_call_operand.vmem [shape: bf16[32,256], index: 3, kind: output, shape index: {}]
  %s4 = sld [smem:[#allocation0]]
  $region135: #{cnn_lstm_2d_forward.4} parent=0
    _
  %s6 = ssub.s32 1, %s4
  %s7 = scalar_select 0, %s6, %s4
  $region1: #{cnn_lstm_2d_forward.4} parent=0
    #allocation3 [shape = 'u8[73728]{0}', space=vmem, size = 0x12000, scoped, tag = 'input window, operand 0']
    #allocation4 [shape = 'u8[16384]{0}', space=vmem, size = 0x4000, scoped, tag = 'output window, operand 0']
    loop: start=0, step=1, limit=10
    $region2: #{cnn_lstm_2d_forward.4} parent=1 // loop_pre_header
      _
    $region3: #{cnn_lstm_2d_forward.4} parent=1 // loop_header
      %s9 = sphi 0, %s13
      %p10 = scmp.ge.s32.totalorder %s9, 10
      %s16 = sphi 0, %s28
      %s17 = sphi 0, %s24
      %s18 = sphi 0, %s16
      %s19 = sphi 0, %s17
      %s20 = sphi 0, %s18
      %s21 = sphi 0, %s19
      %s33 = sphi 0, %s35
      %s36 = sphi 0, %s33
      %s37 = sphi 0, %s36
      %s53 = sphi 0, %s37
      %s57 = sphi 0, %s57
      %s59 = sphi 0, %s57
      %s60 = sphi 0, %s59
      %s74 = sphi 0, %s60
      %s78 = sphi 0, %s78
      %s80 = sphi 0, %s78
      %s81 = sphi 0, %s80
      %s95 = sphi 0, %s81
      %s101 = sphi 0, %s103
      %s104 = sphi 0, %s101
      %s105 = sphi 0, %s104
      %s121 = sphi 0, %s105
    $region4: #{cnn_lstm_2d_forward.4} parent=1 // loop_header_branch
      %12 = sbr.rel (%p10) target = $region8
    $region5: #{cnn_lstm_2d_forward.4} parent=1 // loop_body
      %s14 = ssub.s32 %s9, 1
      %s15 = ssub.s32 %s9, 2
      %s22 = sadd.s32 1, %s17
      %p23 = scmp.ge.s32.totalorder %s22, 4
      %s24 = scalar_select %p23, 0, %s22
      %s25 = sadd.s32 1, %s16
      %s26 = scalar_select %p23, %s25, %s16
      %p27 = scmp.ge.s32.totalorder %s26, 2
      %s28 = scalar_select %p27, 0, %s26
      %s29 = ssub.s32 %s17, %s24
      %s30 = ssub.s32 %s16, %s28
      %s31 = sor.u32 %s29, %s30
      %p32 = scmp.eq.s32.totalorder %s31, 0
      %s34 = sadd.s32 %s33, 1
      %s35 = scalar_select %p32, %s33, %s34
      %p38 = pneg %p32
      %p39 = scmp.eq.s32.totalorder %s9, 7
      %p40 = por %p38, %p39
      %p41 = scmp.ne.s32.totalorder %s33, %s36
      %p42 = scmp.eq.s32.totalorder %s9, 0
      %p43 = por %p41, %p42
      %p44 = scmp.ne.s32.totalorder %s33, %s36
      %p45 = scmp.eq.s32.totalorder %s14, 7
      %p46 = por %p44, %p45
      %p47 = scmp.ne.s32.totalorder %s36, %s37
      %p48 = scmp.eq.s32.totalorder %s14, 0
      %p49 = por %p47, %p48
      %p50 = scmp.ne.s32.totalorder %s36, %s37
      %p51 = scmp.eq.s32.totalorder %s15, 7
      %p52 = por %p50, %p51
      %p54 = scmp.ne.s32.totalorder %s37, %s53
      %p55 = scmp.eq.s32.totalorder %s15, 0
      %p56 = por %p54, %p55
      %s58 = sadd.s32 %s57, 1
      %p61 = scmp.eq.s32.totalorder %s9, 7
      %p62 = scmp.ne.s32.totalorder %s57, %s59
      %p63 = scmp.eq.s32.totalorder %s9, 0
      %p64 = por %p62, %p63
      %p65 = scmp.ne.s32.totalorder %s57, %s59
      %p66 = scmp.eq.s32.totalorder %s14, 7
      %p67 = por %p65, %p66
      %p68 = scmp.ne.s32.totalorder %s59, %s60
      %p69 = scmp.eq.s32.totalorder %s14, 0
      %p70 = por %p68, %p69
      %p71 = scmp.ne.s32.totalorder %s59, %s60
      %p72 = scmp.eq.s32.totalorder %s15, 7
      %p73 = por %p71, %p72
      %p75 = scmp.ne.s32.totalorder %s60, %s74
      %p76 = scmp.eq.s32.totalorder %s15, 0
      %p77 = por %p75, %p76
      %s79 = sadd.s32 %s78, 1
      %p82 = scmp.eq.s32.totalorder %s9, 7
      %p83 = scmp.ne.s32.totalorder %s78, %s80
      %p84 = scmp.eq.s32.totalorder %s9, 0
      %p85 = por %p83, %p84
      %p86 = scmp.ne.s32.totalorder %s78, %s80
      %p87 = scmp.eq.s32.totalorder %s14, 7
      %p88 = por %p86, %p87
      %p89 = scmp.ne.s32.totalorder %s80, %s81
      %p90 = scmp.eq.s32.totalorder %s14, 0
      %p91 = por %p89, %p90
      %p92 = scmp.ne.s32.totalorder %s80, %s81
      %p93 = scmp.eq.s32.totalorder %s15, 7
      %p94 = por %p92, %p93
      %p96 = scmp.ne.s32.totalorder %s81, %s95
      %p97 = scmp.eq.s32.totalorder %s15, 0
      %p98 = por %p96, %p97
      %s99 = ssub.s32 %s16, %s28
      %p100 = scmp.eq.s32.totalorder %s99, 0
      %s102 = sadd.s32 %s101, 1
      %s103 = scalar_select %p100, %s101, %s102
      %p106 = pneg %p100
      %p107 = scmp.eq.s32.totalorder %s9, 7
      %p108 = por %p106, %p107
      %p109 = scmp.ne.s32.totalorder %s101, %s104
      %p110 = scmp.eq.s32.totalorder %s9, 0
      %p111 = por %p109, %p110
      %p112 = scmp.ne.s32.totalorder %s101, %s104
      %p113 = scmp.eq.s32.totalorder %s14, 7
      %p114 = por %p112, %p113
      %p115 = scmp.ne.s32.totalorder %s104, %s105
      %p116 = scmp.eq.s32.totalorder %s14, 0
      %p117 = por %p115, %p116
      %p118 = scmp.ne.s32.totalorder %s104, %s105
      %p119 = scmp.eq.s32.totalorder %s15, 7
      %p120 = por %p118, %p119
      %p122 = scmp.ne.s32.totalorder %s105, %s121
      %p123 = scmp.eq.s32.totalorder %s15, 0
      %p124 = por %p122, %p123
      %p125 = scmp.le.s32.totalorder 1, %s9
      %p126 = scmp.lt.s32.totalorder %s9, 9
      %p127 = pnand %p125, %p126
      %p128 = pneg %p127
      // Predicated region
      $region9: #{cnn_lstm_2d_forward.4} parent=5 // pred_check
        _
      $region10: #{cnn_lstm_2d_forward.4} parent=5 // pred_check_branch
        %130 = sbr.rel (%p127) target = $region12
      $region11: #{cnn_lstm_2d_forward.4} parent=5 // pred_region
        %s131 = ssub.s32 %s9, 1
        // Predicated region
        $region13: #{cnn_lstm_2d_forward.4} parent=11 // pred_check
          %p132 = pneg %p70
        $region14: #{cnn_lstm_2d_forward.4} parent=11 // pred_check_branch
          %134 = sbr.rel (%p132) target = $region16
        $region15: #{cnn_lstm_2d_forward.4} parent=11 // pred_region
          _
        $region16: #{cnn_lstm_2d_forward.4} parent=11 // pred_fallthru
          _
        // Predicated region
        $region17: #{cnn_lstm_2d_forward.4} parent=11 // pred_check
          %p135 = pneg %p91
        $region18: #{cnn_lstm_2d_forward.4} parent=11 // pred_check_branch
          %137 = sbr.rel (%p135) target = $region20
        $region19: #{cnn_lstm_2d_forward.4} parent=11 // pred_region
          _
        $region20: #{cnn_lstm_2d_forward.4} parent=11 // pred_fallthru
          _
      $region12: #{cnn_lstm_2d_forward.4} parent=5 // pred_fallthru
        _
      %p138 = scmp.lt.s32.totalorder %s9, 8
      // Predicated region
      $region21: #{cnn_lstm_2d_forward.4} parent=5 // pred_check
        %p139 = pneg %p138
      $region22: #{cnn_lstm_2d_forward.4} parent=5 // pred_check_branch
        %141 = sbr.rel (%p139) target = $region24
      $region23: #{cnn_lstm_2d_forward.4} parent=5 // pred_region
        // Predicated region
        $region25: #{cnn_lstm_2d_forward.4} parent=23 // pred_check
          %p142 = pneg %p43
        $region26: #{cnn_lstm_2d_forward.4} parent=23 // pred_check_branch
          %144 = sbr.rel (%p142) target = $region28
        $region27: #{cnn_lstm_2d_forward.4} parent=23 // pred_region
          %s145 = sand.u32 %s33, 1
          %s146 = sand.u32 %s33, 1
          %s147 = smul.addr %s146, 72
          %s148 = scalar_lea.vmem [#allocation3], %s147
          %s149 = smul.addr %s17, 36
          %s150 = sadd.s32 %s16, %s149
          %s151 = smul.addr %s150, 4
          %s152 = scalar_lea.vmem %s0, %s151
          // Predicated region
          $region29: #{cnn_lstm_2d_forward.4} parent=27 // pred_check
            _
          $region30: #{cnn_lstm_2d_forward.4} parent=27 // pred_check_branch
            %154 = sbr.rel (0) target = $region32
          $region31: #{cnn_lstm_2d_forward.4} parent=27 // pred_region
            // Predicated region
            $region33: #{cnn_lstm_2d_forward.4} parent=31 // pred_check
              _
            $region34: #{cnn_lstm_2d_forward.4} parent=31 // pred_check_branch
              %156 = sbr.rel target = $region36
            $region35: #{cnn_lstm_2d_forward.4} parent=31 // pred_region
              // Predicated region
              $region48: #{cnn_lstm_2d_forward.4} parent=35 // pred_check
                _
              $region49: #{cnn_lstm_2d_forward.4} parent=35 // pred_check_branch
                %206 = sbr.rel (0) target = $region51
              $region50: #{cnn_lstm_2d_forward.4} parent=35 // pred_region
                loop: start=0, step=1, limit=1
                $region52: #{cnn_lstm_2d_forward.4} parent=50 // loop_pre_header
                  _
                $region53: #{cnn_lstm_2d_forward.4} parent=50 // loop_header
                  %s208 = sphi 0, %s212
                  %p209 = scmp.ge.s32.totalorder %s208, 1
                  %s213 = sphi %s152, %s152
                  %s214 = sphi %s148, %s148
                $region54: #{cnn_lstm_2d_forward.4} parent=50 // loop_header_branch
                  %211 = sbr.rel (%p209) target = $region58
                $region55: #{cnn_lstm_2d_forward.4} parent=50 // loop_body
                  _
                $region56: #{cnn_lstm_2d_forward.4} parent=50 // loop_footer
                  %s212 = sadd.s32 1, %s208
                $region57: #{cnn_lstm_2d_forward.4} parent=50 // loop_footer_branch
                  %207 = sbr.rel target = $region53
                $region58: #{cnn_lstm_2d_forward.4} parent=50 // loop_exit
                  _
                %s216 = ssub.s32 16, 1
                loop: start=0, step=1, limit=1
                $region59: #{cnn_lstm_2d_forward.4} parent=50 // loop_pre_header
                  _
                $region60: #{cnn_lstm_2d_forward.4} parent=50 // loop_header
                  %s218 = sphi 0, %s222
                  %p219 = scmp.ge.s32.totalorder %s218, 1
                  %s223 = sphi %s152, %s152
                  %s224 = sphi %s148, %s148
                $region61: #{cnn_lstm_2d_forward.4} parent=50 // loop_header_branch
                  %221 = sbr.rel (%p219) target = $region65
                $region62: #{cnn_lstm_2d_forward.4} parent=50 // loop_body
                  %v225 = vld [vmem:[%s223] sm:%s216]
                  %226 = vst [vmem:[%s224] sm:%s216] %v225
                  %v227 = vld [vmem:[%s223 + $0x8] sm:%s216]
                  %228 = vst [vmem:[%s224 + $0x4] sm:%s216] %v227
                  %v229 = vld [vmem:[%s223 + $0x10] sm:%s216]
                  %230 = vst [vmem:[%s224 + $0x8] sm:%s216] %v229
                  %v231 = vld [vmem:[%s223 + $0x18] sm:%s216]
                  %232 = vst [vmem:[%s224 + $0xc] sm:%s216] %v231
                  %v233 = vld [vmem:[%s223 + $0x20] sm:%s216]
                  %234 = vst [vmem:[%s224 + $0x10] sm:%s216] %v233
                  %v235 = vld [vmem:[%s223 + $0x28] sm:%s216]
                  %236 = vst [vmem:[%s224 + $0x14] sm:%s216] %v235
                  %v237 = vld [vmem:[%s223 + $0x30] sm:%s216]
                  %238 = vst [vmem:[%s224 + $0x18] sm:%s216] %v237
                  %v239 = vld [vmem:[%s223 + $0x38] sm:%s216]
                  %240 = vst [vmem:[%s224 + $0x1c] sm:%s216] %v239
                  %v241 = vld [vmem:[%s223 + $0x40] sm:%s216]
                  %242 = vst [vmem:[%s224 + $0x20] sm:%s216] %v241
                  %v243 = vld [vmem:[%s223 + $0x48] sm:%s216]
                  %244 = vst [vmem:[%s224 + $0x24] sm:%s216] %v243
                  %v245 = vld [vmem:[%s223 + $0x50] sm:%s216]
                  %246 = vst [vmem:[%s224 + $0x28] sm:%s216] %v245
                  %v247 = vld [vmem:[%s223 + $0x58] sm:%s216]
                  %248 = vst [vmem:[%s224 + $0x2c] sm:%s216] %v247
                  %v249 = vld [vmem:[%s223 + $0x60] sm:%s216]
                  %250 = vst [vmem:[%s224 + $0x30] sm:%s216] %v249
                  %v251 = vld [vmem:[%s223 + $0x68] sm:%s216]
                  %252 = vst [vmem:[%s224 + $0x34] sm:%s216] %v251
                  %v253 = vld [vmem:[%s223 + $0x70] sm:%s216]
                  %254 = vst [vmem:[%s224 + $0x38] sm:%s216] %v253
                  %v255 = vld [vmem:[%s223 + $0x78] sm:%s216]
                  %256 = vst [vmem:[%s224 + $0x3c] sm:%s216] %v255
                  %v257 = vld [vmem:[%s223 + $0x80] sm:%s216]
                  %258 = vst [vmem:[%s224 + $0x40] sm:%s216] %v257
                  %v259 = vld [vmem:[%s223 + $0x88] sm:%s216]
                  %260 = vst [vmem:[%s224 + $0x44] sm:%s216] %v259
                $region63: #{cnn_lstm_2d_forward.4} parent=50 // loop_footer
                  %s222 = sadd.s32 1, %s218
                $region64: #{cnn_lstm_2d_forward.4} parent=50 // loop_footer_branch
                  %217 = sbr.rel target = $region60
                $region65: #{cnn_lstm_2d_forward.4} parent=50 // loop_exit
                  _
              $region51: #{cnn_lstm_2d_forward.4} parent=35 // pred_fallthru
                _
            $region36: #{cnn_lstm_2d_forward.4} parent=31 // pred_fallthru
              _
            // Predicated region
            $region37: #{cnn_lstm_2d_forward.4} parent=31 // pred_check
              _
            $region38: #{cnn_lstm_2d_forward.4} parent=31 // pred_check_branch
              %158 = sbr.rel (0) target = $region40
            $region39: #{cnn_lstm_2d_forward.4} parent=31 // pred_region
              %s160 = ssub.s32 16, 1
              loop: start=0, step=1, limit=1
              $region41: #{cnn_lstm_2d_forward.4} parent=39 // loop_pre_header
                _
              $region42: #{cnn_lstm_2d_forward.4} parent=39 // loop_header
                %s162 = sphi 0, %s166
                %p163 = scmp.ge.s32.totalorder %s162, 1
                %s167 = sphi %s152, %s152
                %s168 = sphi %s148, %s148
              $region43: #{cnn_lstm_2d_forward.4} parent=39 // loop_header_branch
                %165 = sbr.rel (%p163) target = $region47
              $region44: #{cnn_lstm_2d_forward.4} parent=39 // loop_body
                %v169 = vld [vmem:[%s167] sm:%s160]
                %170 = vst [vmem:[%s168] sm:%s160] %v169
                %v171 = vld [vmem:[%s167 + $0x8] sm:%s160]
                %172 = vst [vmem:[%s168 + $0x4] sm:%s160] %v171
                %v173 = vld [vmem:[%s167 + $0x10] sm:%s160]
                %174 = vst [vmem:[%s168 + $0x8] sm:%s160] %v173
                %v175 = vld [vmem:[%s167 + $0x18] sm:%s160]
                %176 = vst [vmem:[%s168 + $0xc] sm:%s160] %v175
                %v177 = vld [vmem:[%s167 + $0x20] sm:%s160]
                %178 = vst [vmem:[%s168 + $0x10] sm:%s160] %v177
                %v179 = vld [vmem:[%s167 + $0x28] sm:%s160]
                %180 = vst [vmem:[%s168 + $0x14] sm:%s160] %v179
                %v181 = vld [vmem:[%s167 + $0x30] sm:%s160]
                %182 = vst [vmem:[%s168 + $0x18] sm:%s160] %v181
                %v183 = vld [vmem:[%s167 + $0x38] sm:%s160]
                %184 = vst [vmem:[%s168 + $0x1c] sm:%s160] %v183
                %v185 = vld [vmem:[%s167 + $0x40] sm:%s160]
                %186 = vst [vmem:[%s168 + $0x20] sm:%s160] %v185
                %v187 = vld [vmem:[%s167 + $0x48] sm:%s160]
                %188 = vst [vmem:[%s168 + $0x24] sm:%s160] %v187
                %v189 = vld [vmem:[%s167 + $0x50] sm:%s160]
                %190 = vst [vmem:[%s168 + $0x28] sm:%s160] %v189
                %v191 = vld [vmem:[%s167 + $0x58] sm:%s160]
                %192 = vst [vmem:[%s168 + $0x2c] sm:%s160] %v191
                %v193 = vld [vmem:[%s167 + $0x60] sm:%s160]
                %194 = vst [vmem:[%s168 + $0x30] sm:%s160] %v193
                %v195 = vld [vmem:[%s167 + $0x68] sm:%s160]
                %196 = vst [vmem:[%s168 + $0x34] sm:%s160] %v195
                %v197 = vld [vmem:[%s167 + $0x70] sm:%s160]
                %198 = vst [vmem:[%s168 + $0x38] sm:%s160] %v197
                %v199 = vld [vmem:[%s167 + $0x78] sm:%s160]
                %200 = vst [vmem:[%s168 + $0x3c] sm:%s160] %v199
                %v201 = vld [vmem:[%s167 + $0x80] sm:%s160]
                %202 = vst [vmem:[%s168 + $0x40] sm:%s160] %v201
                %v203 = vld [vmem:[%s167 + $0x88] sm:%s160]
                %204 = vst [vmem:[%s168 + $0x44] sm:%s160] %v203
              $region45: #{cnn_lstm_2d_forward.4} parent=39 // loop_footer
                %s166 = sadd.s32 1, %s162
              $region46: #{cnn_lstm_2d_forward.4} parent=39 // loop_footer_branch
                %161 = sbr.rel target = $region42
              $region47: #{cnn_lstm_2d_forward.4} parent=39 // loop_exit
                _
            $region40: #{cnn_lstm_2d_forward.4} parent=31 // pred_fallthru
              _
          $region32: #{cnn_lstm_2d_forward.4} parent=27 // pred_fallthru
            _
          %261 = vnop
        $region28: #{cnn_lstm_2d_forward.4} parent=23 // pred_fallthru
          _
      $region24: #{cnn_lstm_2d_forward.4} parent=5 // pred_fallthru
        _
      %p262 = scmp.le.s32.totalorder 1, %s9
      %p263 = scmp.lt.s32.totalorder %s9, 9
      %p264 = pnand %p262, %p263
      %p265 = pneg %p264
      // Predicated region
      $region66: #{cnn_lstm_2d_forward.4} parent=5 // pred_check
        _
      $region67: #{cnn_lstm_2d_forward.4} parent=5 // pred_check_branch
        %267 = sbr.rel (%p264) target = $region69
      $region68: #{cnn_lstm_2d_forward.4} parent=5 // pred_region
        %s268 = ssub.s32 %s9, 1
        %s269 = sand.u32 %s36, 1
        %s270 = sand.u32 %s36, 1
        %s271 = smul.addr %s270, 72
        %s272 = scalar_lea.vmem [#allocation3], %s271
        // Predicated region
        $region70: #{cnn_lstm_2d_forward.4} parent=68 // pred_check
          %p273 = pneg %p49
        $region71: #{cnn_lstm_2d_forward.4} parent=68 // pred_check_branch
          %275 = sbr.rel (%p273) target = $region73
        $region72: #{cnn_lstm_2d_forward.4} parent=68 // pred_region
          _
        $region73: #{cnn_lstm_2d_forward.4} parent=68 // pred_fallthru
          _
        %s276 = sand.u32 %s36, 1
        %s277 = sand.u32 %s36, 1
        %s278 = smul.addr %s277, 72
        %s279 = scalar_lea.vmem [#allocation3], %s278
        %p280 = pneg %p49
        %p281 = pneg %p46
        %p282 = pneg %p70
        %p283 = pneg %p67
        %p284 = pneg %p91
        %p285 = pneg %p88
        %p286 = pneg %p117
        %p287 = pneg %p114
        %s288 = sand.u32 %s104, 1
        %s289 = sand.u32 %s104, 1
        %s290 = smul.addr %s289, 16
        %s291 = scalar_lea.vmem [#allocation4], %s290
        %v293 = vld [vmem:[%s1] sm:$0xff]
        %v294 = vld [vmem:[%s1 + $0x8] sm:$0xff]
        %v295 = vld [vmem:[%s1 + $0x10] sm:$0xff]
        %v296 = vld [vmem:[%s1 + $0x18] sm:$0xff]
        %v297 = vld [vmem:[%s272] sm:$0xf]
        %v298 = vld [vmem:[%s272 + $0x4] sm:$0xf]
        %v299 = vld [vmem:[%s272 + $0x8] sm:$0xf]
        %v300 = vld [vmem:[%s272 + $0xc] sm:$0xf]
        %v301 = vld [vmem:[%s272 + $0x10] sm:$0xf]
        %v302 = vld [vmem:[%s272 + $0x14] sm:$0xf]
        %v303 = vld [vmem:[%s272 + $0x18] sm:$0xf]
        %v304 = vld [vmem:[%s272 + $0x1c] sm:$0xf]
        %v305 = vld [vmem:[%s272 + $0x20] sm:$0xf]
        %v306 = vld [vmem:[%s272 + $0x24] sm:$0xf]
        %v307 = vld [vmem:[%s272 + $0x28] sm:$0xf]
        %v308 = vld [vmem:[%s272 + $0x2c] sm:$0xf]
        %v309 = vld [vmem:[%s272 + $0x30] sm:$0xf]
        %v310 = vld [vmem:[%s272 + $0x34] sm:$0xf]
        %v311 = vld [vmem:[%s272 + $0x38] sm:$0xf]
        %v312 = vld [vmem:[%s272 + $0x3c] sm:$0xf]
        %v313 = vld [vmem:[%s272 + $0x40] sm:$0xf]
        %v314 = vld [vmem:[%s272 + $0x44] sm:$0xf]
        %v319 = vunpack.c.l.b16 %v293
        %v320 = vunpack.c.h.b16 %v293
        %v321 = vunpack.c.l.b16 %v294
        %v322 = vunpack.c.h.b16 %v294
        %v323 = vunpack.c.l.b16 %v295
        %v324 = vunpack.c.h.b16 %v295
        %v325 = vunpack.c.l.b16 %v296
        %v326 = vunpack.c.h.b16 %v296
        %v327 = vpack.c.b16 %v321, %v319
        %v328 = vpack.c.b16 %v322, %v320
        %v329 = vpack.c.b16 %v325, %v323
        %v330 = vpack.c.b16 %v326, %v324
        %v351 = vunpack.c.l.b16 %v297
        %v352 = vunpack.c.l.b16 %v298
        %v353 = vunpack.c.l.b16 %v299
        %v354 = vunpack.c.l.b16 %v300
        %v355 = vunpack.c.l.b16 %v301
        %v356 = vunpack.c.l.b16 %v302
        %v357 = vunpack.c.l.b16 %v303
        %v358 = vunpack.c.l.b16 %v304
        %v359 = vunpack.c.l.b16 %v305
        %v360 = vunpack.c.l.b16 %v306
        %v361 = vunpack.c.l.b16 %v307
        %v362 = vunpack.c.l.b16 %v308
        %v363 = vunpack.c.l.b16 %v309
        %v364 = vunpack.c.l.b16 %v310
        %v365 = vunpack.c.l.b16 %v311
        %v366 = vunpack.c.l.b16 %v312
        %v367 = vunpack.c.l.b16 %v313
        %v368 = vunpack.c.l.b16 %v314
        %v369 = vpack.c.b16 %v352, %v351
        %v370 = vpack.c.b16 %v354, %v353
        %v371 = vpack.c.b16 %v356, %v355
        %v372 = vpack.c.b16 %v358, %v357
        %v373 = vpack.c.b16 %v360, %v359
        %v374 = vpack.c.b16 %v362, %v361
        %v375 = vpack.c.b16 %v364, %v363
        %v376 = vpack.c.b16 %v366, %v365
        %v377 = vpack.c.b16 %v368, %v367
        %vm387 = vcmask 130048
        %v389 = vsel %vm387, %v328, 0
        %v392 = vsel %vm387, %v330, 0
        %394 = vmatpush.bf16.msra.mxu0 %v376
        %395 = vmatpush.bf16.msra.mxu0 %v375
        %396 = vmatpush.bf16.msra.mxu0 %v374
        %397 = vmatpush.bf16.msra.mxu0 %v373
        %398 = vmatpush.bf16.msra.mxu0 %v372
        %399 = vmatpush.bf16.msra.mxu0 %v371
        %400 = vmatpush.bf16.msra.mxu0 %v370
        %401 = vmatpush.bf16.msra.mxu0 %v369
        %402 = vmatmul.bf16.gmra.mxu0 %v327
        %v403 = vpop.f32.mrf.mxu0
        %v404 = vadd.f32 0.0, %v403
        %v405 = vpop.f32.mrf.mxu0
        %v406 = vadd.f32 0.0, %v405
        %407 = vmatmul.bf16.gmra.mxu0 %v329
        %v408 = vpop.f32.mrf.mxu0
        %v409 = vadd.f32 0.0, %v408
        %v410 = vpop.f32.mrf.mxu0
        %v411 = vadd.f32 0.0, %v410
        %412 = vdwg.mxu0
        %413 = vmatpush.bf16.msra.mxu0 0
        %414 = vmatpush.bf16.msra.mxu0 0
        %415 = vmatpush.bf16.msra.mxu0 0
        %416 = vmatpush.bf16.msra.mxu0 0
        %417 = vmatpush.bf16.msra.mxu0 0
        %418 = vmatpush.bf16.msra.mxu0 0
        %419 = vmatpush.bf16.msra.mxu0 0
        %420 = vmatpush.bf16.msra.mxu0 %v377
        %421 = vmatmul.bf16.gmra.mxu0 %v389
        %v422 = vpop.f32.mrf.mxu0
        %v423 = vadd.f32 %v404, %v422
        %v424 = vpop.f32.mrf.mxu0
        %v425 = vadd.f32 %v406, %v424
        %426 = vmatmul.bf16.gmra.mxu0 %v392
        %v427 = vpop.f32.mrf.mxu0
        %v428 = vadd.f32 %v409, %v427
        %v429 = vpop.f32.mrf.mxu0
        %v430 = vadd.f32 %v411, %v429
        %431 = vdwg.mxu0
        %p432 = scmp.eq.s32.totalorder %s19, 0
        // Predicated region
        $region74: #{cnn_lstm_2d_forward.4} parent=68 // pred_check
          %p433 = pneg %p432
        $region75: #{cnn_lstm_2d_forward.4} parent=68 // pred_check_branch
          %435 = sbr.rel (%p433) target = $region77
        $region76: #{cnn_lstm_2d_forward.4} parent=68 // pred_region
          %436 = vst [vmem:[#allocation2] sm:$0xff] %v423
          %437 = vst [vmem:[#allocation2 + $0x8] sm:$0xff] %v425
          %438 = vst [vmem:[#allocation2 + $0x10] sm:$0xff] %v428
          %439 = vst [vmem:[#allocation2 + $0x18] sm:$0xff] %v430
        $region77: #{cnn_lstm_2d_forward.4} parent=68 // pred_fallthru
          _
        %p440 = scmp.ne.s32.totalorder %s19, 0
        // Predicated region
        $region78: #{cnn_lstm_2d_forward.4} parent=68 // pred_check
          %p441 = pneg %p440
        $region79: #{cnn_lstm_2d_forward.4} parent=68 // pred_check_branch
          %443 = sbr.rel (%p441) target = $region81
        $region80: #{cnn_lstm_2d_forward.4} parent=68 // pred_region
          %v444 = vld [vmem:[#allocation2] sm:$0xff]
          %v445 = vld [vmem:[#allocation2 + $0x8] sm:$0xff]
          %v446 = vld [vmem:[#allocation2 + $0x10] sm:$0xff]
          %v447 = vld [vmem:[#allocation2 + $0x18] sm:$0xff]
          %v448 = vmax.f32 %v444, %v423
          %v449 = vmax.f32 %v445, %v425
          %v450 = vmax.f32 %v446, %v428
          %v451 = vmax.f32 %v447, %v430
          %452 = vst [vmem:[#allocation2] sm:$0xff] %v448
          %453 = vst [vmem:[#allocation2 + $0x8] sm:$0xff] %v449
          %454 = vst [vmem:[#allocation2 + $0x10] sm:$0xff] %v450
          %455 = vst [vmem:[#allocation2 + $0x18] sm:$0xff] %v451
        $region81: #{cnn_lstm_2d_forward.4} parent=68 // pred_fallthru
          _
        %p456 = scmp.eq.s32.totalorder %s19, 3
        // Predicated region
        $region82: #{cnn_lstm_2d_forward.4} parent=68 // pred_check
          %p457 = pneg %p456
        $region83: #{cnn_lstm_2d_forward.4} parent=68 // pred_check_branch
          %459 = sbr.rel (%p457) target = $region85
        $region84: #{cnn_lstm_2d_forward.4} parent=68 // pred_region
          %v460 = vld [vmem:[#allocation2] sm:$0xff]
          %v461 = vld [vmem:[#allocation2 + $0x8] sm:$0xff]
          %v462 = vld [vmem:[#allocation2 + $0x10] sm:$0xff]
          %v463 = vld [vmem:[#allocation2 + $0x18] sm:$0xff]
          %v464 = vld [vmem:[%s2] sm:$0xff]
          %v465 = vld [vmem:[%s2 + $0x8] sm:$0xff]
          %v466 = vld [vmem:[%s2 + $0x10] sm:$0xff]
          %v467 = vld [vmem:[%s2 + $0x18] sm:$0xff]
          %469 = vset.pattern.permute.xlu0 0
          %470 = vperm.xlu0 %469, %v464
          %v471 = vpop.permute.xlu0 %470
          %474 = vset.pattern.permute.xlu0 0
          %475 = vperm.xlu0 %474, %v465
          %v476 = vpop.permute.xlu0 %475
          %479 = vset.pattern.permute.xlu0 0
          %480 = vperm.xlu0 %479, %v466
          %v481 = vpop.permute.xlu0 %480
          %484 = vset.pattern.permute.xlu0 0
          %485 = vperm.xlu0 %484, %v467
          %v486 = vpop.permute.xlu0 %485
          %v488 = vadd.f32 %v460, %v471
          %v489 = vadd.f32 %v461, %v476
          %v490 = vadd.f32 %v462, %v481
          %v491 = vadd.f32 %v463, %v486
          %v492 = vmax.f32 %v488, 0.0
          %v493 = vmax.f32 %v489, 0.0
          %v494 = vmax.f32 %v490, 0.0
          %v495 = vmax.f32 %v491, 0.0
          %v496 = vpack.c.bf16 %v492, %v492
          %v497 = vpack.c.bf16 %v493, %v493
          %v498 = vpack.c.bf16 %v494, %v494
          %v499 = vpack.c.bf16 %v495, %v495
          %500 = vst [vmem:[%s291] sm:$0xf] %v496
          %501 = vst [vmem:[%s291 + $0x4] sm:$0xf] %v497
          %502 = vst [vmem:[%s291 + $0x8] sm:$0xf] %v498
          %503 = vst [vmem:[%s291 + $0xc] sm:$0xf] %v499
        $region85: #{cnn_lstm_2d_forward.4} parent=68 // pred_fallthru
          _
        %s504 = sand.u32 %s104, 1
        %s505 = sand.u32 %s104, 1
        %s506 = smul.addr %s505, 16
        %s507 = scalar_lea.vmem [#allocation4], %s506
        // Predicated region
        $region86: #{cnn_lstm_2d_forward.4} parent=68 // pred_check
          %p508 = pneg %p114
        $region87: #{cnn_lstm_2d_forward.4} parent=68 // pred_check_branch
          %510 = sbr.rel (%p508) target = $region89
        $region88: #{cnn_lstm_2d_forward.4} parent=68 // pred_region
          %s511 = smul.addr %s18, 4
          %s512 = scalar_lea.vmem %s3, %s511
          // Predicated region
          $region90: #{cnn_lstm_2d_forward.4} parent=88 // pred_check
            _
          $region91: #{cnn_lstm_2d_forward.4} parent=88 // pred_check_branch
            %514 = sbr.rel (0) target = $region93
          $region92: #{cnn_lstm_2d_forward.4} parent=88 // pred_region
            // Predicated region
            $region94: #{cnn_lstm_2d_forward.4} parent=92 // pred_check
              _
            $region95: #{cnn_lstm_2d_forward.4} parent=92 // pred_check_branch
              %516 = sbr.rel target = $region97
            $region96: #{cnn_lstm_2d_forward.4} parent=92 // pred_region
              // Predicated region
              $region109: #{cnn_lstm_2d_forward.4} parent=96 // pred_check
                _
              $region110: #{cnn_lstm_2d_forward.4} parent=96 // pred_check_branch
                %538 = sbr.rel (0) target = $region112
              $region111: #{cnn_lstm_2d_forward.4} parent=96 // pred_region
                loop: start=0, step=1, limit=1
                $region113: #{cnn_lstm_2d_forward.4} parent=111 // loop_pre_header
                  _
                $region114: #{cnn_lstm_2d_forward.4} parent=111 // loop_header
                  %s540 = sphi 0, %s544
                  %p541 = scmp.ge.s32.totalorder %s540, 1
                  %s545 = sphi %s507, %s507
                  %s546 = sphi %s512, %s512
                $region115: #{cnn_lstm_2d_forward.4} parent=111 // loop_header_branch
                  %543 = sbr.rel (%p541) target = $region119
                $region116: #{cnn_lstm_2d_forward.4} parent=111 // loop_body
                  _
                $region117: #{cnn_lstm_2d_forward.4} parent=111 // loop_footer
                  %s544 = sadd.s32 1, %s540
                $region118: #{cnn_lstm_2d_forward.4} parent=111 // loop_footer_branch
                  %539 = sbr.rel target = $region114
                $region119: #{cnn_lstm_2d_forward.4} parent=111 // loop_exit
                  _
                %s548 = ssub.s32 16, 1
                loop: start=0, step=1, limit=1
                $region120: #{cnn_lstm_2d_forward.4} parent=111 // loop_pre_header
                  _
                $region121: #{cnn_lstm_2d_forward.4} parent=111 // loop_header
                  %s550 = sphi 0, %s554
                  %p551 = scmp.ge.s32.totalorder %s550, 1
                  %s555 = sphi %s507, %s507
                  %s556 = sphi %s512, %s512
                $region122: #{cnn_lstm_2d_forward.4} parent=111 // loop_header_branch
                  %553 = sbr.rel (%p551) target = $region126
                $region123: #{cnn_lstm_2d_forward.4} parent=111 // loop_body
                  %v557 = vld [vmem:[%s555] sm:%s548]
                  %558 = vst [vmem:[%s556] sm:%s548] %v557
                  %v559 = vld [vmem:[%s555 + $0x4] sm:%s548]
                  %560 = vst [vmem:[%s556 + $0x8] sm:%s548] %v559
                  %v561 = vld [vmem:[%s555 + $0x8] sm:%s548]
                  %562 = vst [vmem:[%s556 + $0x10] sm:%s548] %v561
                  %v563 = vld [vmem:[%s555 + $0xc] sm:%s548]
                  %564 = vst [vmem:[%s556 + $0x18] sm:%s548] %v563
                $region124: #{cnn_lstm_2d_forward.4} parent=111 // loop_footer
                  %s554 = sadd.s32 1, %s550
                $region125: #{cnn_lstm_2d_forward.4} parent=111 // loop_footer_branch
                  %549 = sbr.rel target = $region121
                $region126: #{cnn_lstm_2d_forward.4} parent=111 // loop_exit
                  _
              $region112: #{cnn_lstm_2d_forward.4} parent=96 // pred_fallthru
                _
            $region97: #{cnn_lstm_2d_forward.4} parent=92 // pred_fallthru
              _
            // Predicated region
            $region98: #{cnn_lstm_2d_forward.4} parent=92 // pred_check
              _
            $region99: #{cnn_lstm_2d_forward.4} parent=92 // pred_check_branch
              %518 = sbr.rel (0) target = $region101
            $region100: #{cnn_lstm_2d_forward.4} parent=92 // pred_region
              %s520 = ssub.s32 16, 1
              loop: start=0, step=1, limit=1
              $region102: #{cnn_lstm_2d_forward.4} parent=100 // loop_pre_header
                _
              $region103: #{cnn_lstm_2d_forward.4} parent=100 // loop_header
                %s522 = sphi 0, %s526
                %p523 = scmp.ge.s32.totalorder %s522, 1
                %s527 = sphi %s507, %s507
                %s528 = sphi %s512, %s512
              $region104: #{cnn_lstm_2d_forward.4} parent=100 // loop_header_branch
                %525 = sbr.rel (%p523) target = $region108
              $region105: #{cnn_lstm_2d_forward.4} parent=100 // loop_body
                %v529 = vld [vmem:[%s527] sm:%s520]
                %530 = vst [vmem:[%s528] sm:%s520] %v529
                %v531 = vld [vmem:[%s527 + $0x4] sm:%s520]
                %532 = vst [vmem:[%s528 + $0x8] sm:%s520] %v531
                %v533 = vld [vmem:[%s527 + $0x8] sm:%s520]
                %534 = vst [vmem:[%s528 + $0x10] sm:%s520] %v533
                %v535 = vld [vmem:[%s527 + $0xc] sm:%s520]
                %536 = vst [vmem:[%s528 + $0x18] sm:%s520] %v535
              $region106: #{cnn_lstm_2d_forward.4} parent=100 // loop_footer
                %s526 = sadd.s32 1, %s522
              $region107: #{cnn_lstm_2d_forward.4} parent=100 // loop_footer_branch
                %521 = sbr.rel target = $region103
              $region108: #{cnn_lstm_2d_forward.4} parent=100 // loop_exit
                _
            $region101: #{cnn_lstm_2d_forward.4} parent=92 // pred_fallthru
              _
          $region93: #{cnn_lstm_2d_forward.4} parent=88 // pred_fallthru
            _
          %565 = vnop
        $region89: #{cnn_lstm_2d_forward.4} parent=68 // pred_fallthru
          _
      $region69: #{cnn_lstm_2d_forward.4} parent=5 // pred_fallthru
        _
      %p566 = scmp.le.s32.totalorder 2, %s9
      // Predicated region
      $region127: #{cnn_lstm_2d_forward.4} parent=5 // pred_check
        %p567 = pneg %p566
      $region128: #{cnn_lstm_2d_forward.4} parent=5 // pred_check_branch
        %569 = sbr.rel (%p567) target = $region130
      $region129: #{cnn_lstm_2d_forward.4} parent=5 // pred_region
        %s570 = ssub.s32 %s9, 2
        // Predicated region
        $region131: #{cnn_lstm_2d_forward.4} parent=129 // pred_check
          %p571 = pneg %p120
        $region132: #{cnn_lstm_2d_forward.4} parent=129 // pred_check_branch
          %573 = sbr.rel (%p571) target = $region134
        $region133: #{cnn_lstm_2d_forward.4} parent=129 // pred_region
          %s574 = sand.u32 %s105, 1
          %s575 = sand.u32 %s105, 1
          %s576 = smul.addr %s575, 16
          %s577 = scalar_lea.vmem [#allocation4], %s576
        $region134: #{cnn_lstm_2d_forward.4} parent=129 // pred_fallthru
          _
      $region130: #{cnn_lstm_2d_forward.4} parent=5 // pred_fallthru
        _
    $region6: #{cnn_lstm_2d_forward.4} parent=1 // loop_footer
      %s13 = sadd.s32 1, %s9
    $region7: #{cnn_lstm_2d_forward.4} parent=1 // loop_footer_branch
      %8 = sbr.rel target = $region3
    $region8: #{cnn_lstm_2d_forward.4} parent=1 // loop_exit
      _

// kernel: cnn_lstm_2d_forward.5
$region0: #{cnn_lstm_2d_forward.5}
  #allocation0 [shape = 'u32[]', space=smem, size = 0x4, offset = 0x4, fixed_abs, tag = 'smem constant byte address 0x4 - core index']
  #allocation1 [shape = 'u32[72,128]{1,0:T(1,128)}', space=vmem, size = 0x9000, scoped, tag = 'internal scratch']
  %s0 = inlined_call_operand.vmem [shape: bf16[64,512], index: 0, kind: input, shape index: {}]
  %s1 = inlined_call_operand.vmem [shape: bf16[512,256], index: 1, kind: input, shape index: {}]
  %s2 = inlined_call_operand.vmem [shape: f32[1,256], index: 2, kind: input, shape index: {}]
  %s3 = inlined_call_operand.vmem [shape: f32[32,128], index: 3, kind: input, shape index: {}]
  %s4 = inlined_call_operand.vmem [shape: f32[32,128], index: 4, kind: input, shape index: {}]
  %s5 = inlined_call_operand.vmem [shape: f32[64,64], index: 5, kind: input, shape index: {}]
  %s6 = inlined_call_operand.vmem [shape: f32[1,64], index: 6, kind: input, shape index: {}]
  %s7 = inlined_call_operand.vmem [shape: f32[64,2], index: 7, kind: input, shape index: {}]
  %s8 = inlined_call_operand.vmem [shape: f32[1,2], index: 8, kind: input, shape index: {}]
  %s9 = inlined_call_operand.vmem [shape: f32[8,2], index: 9, kind: output, shape index: {}]
  %s10 = sld [smem:[#allocation0]]
  $region46: #{cnn_lstm_2d_forward.5} parent=0
    _
  %s12 = ssub.s32 1, %s10
  %s13 = scalar_select 0, %s12, %s10
  // Predicated region
  $region2: #{cnn_lstm_2d_forward.5} parent=0 // pred_check
    _
  $region3: #{cnn_lstm_2d_forward.5} parent=0 // pred_check_branch
    %15 = sbr.rel (0) target = $region5
  $region4: #{cnn_lstm_2d_forward.5} parent=0 // pred_region
    _
  $region5: #{cnn_lstm_2d_forward.5} parent=0 // pred_fallthru
    _
  // Predicated region
  $region6: #{cnn_lstm_2d_forward.5} parent=0 // pred_check
    _
  $region7: #{cnn_lstm_2d_forward.5} parent=0 // pred_check_branch
    %17 = sbr.rel (0) target = $region9
  $region8: #{cnn_lstm_2d_forward.5} parent=0 // pred_region
    _
  $region9: #{cnn_lstm_2d_forward.5} parent=0 // pred_fallthru
    _
  // Predicated region
  $region10: #{cnn_lstm_2d_forward.5} parent=0 // pred_check
    _
  $region11: #{cnn_lstm_2d_forward.5} parent=0 // pred_check_branch
    %19 = sbr.rel (0) target = $region13
  $region12: #{cnn_lstm_2d_forward.5} parent=0 // pred_region
    _
  $region13: #{cnn_lstm_2d_forward.5} parent=0 // pred_fallthru
    _
  // Predicated region
  $region14: #{cnn_lstm_2d_forward.5} parent=0 // pred_check
    _
  $region15: #{cnn_lstm_2d_forward.5} parent=0 // pred_check_branch
    %21 = sbr.rel (0) target = $region17
  $region16: #{cnn_lstm_2d_forward.5} parent=0 // pred_region
    _
  $region17: #{cnn_lstm_2d_forward.5} parent=0 // pred_fallthru
    _
  // Predicated region
  $region18: #{cnn_lstm_2d_forward.5} parent=0 // pred_check
    _
  $region19: #{cnn_lstm_2d_forward.5} parent=0 // pred_check_branch
    %23 = sbr.rel (0) target = $region21
  $region20: #{cnn_lstm_2d_forward.5} parent=0 // pred_region
    _
  $region21: #{cnn_lstm_2d_forward.5} parent=0 // pred_fallthru
    _
  // Predicated region
  $region22: #{cnn_lstm_2d_forward.5} parent=0 // pred_check
    _
  $region23: #{cnn_lstm_2d_forward.5} parent=0 // pred_check_branch
    %25 = sbr.rel (0) target = $region25
  $region24: #{cnn_lstm_2d_forward.5} parent=0 // pred_region
    _
  $region25: #{cnn_lstm_2d_forward.5} parent=0 // pred_fallthru
    _
  // Predicated region
  $region26: #{cnn_lstm_2d_forward.5} parent=0 // pred_check
    _
  $region27: #{cnn_lstm_2d_forward.5} parent=0 // pred_check_branch
    %27 = sbr.rel (0) target = $region29
  $region28: #{cnn_lstm_2d_forward.5} parent=0 // pred_region
    _
  $region29: #{cnn_lstm_2d_forward.5} parent=0 // pred_fallthru
    _
  // Predicated region
  $region30: #{cnn_lstm_2d_forward.5} parent=0 // pred_check
    _
  $region31: #{cnn_lstm_2d_forward.5} parent=0 // pred_check_branch
    %29 = sbr.rel (0) target = $region33
  $region32: #{cnn_lstm_2d_forward.5} parent=0 // pred_region
    _
  $region33: #{cnn_lstm_2d_forward.5} parent=0 // pred_fallthru
    _
  // Predicated region
  $region34: #{cnn_lstm_2d_forward.5} parent=0 // pred_check
    _
  $region35: #{cnn_lstm_2d_forward.5} parent=0 // pred_check_branch
    %31 = sbr.rel (0) target = $region37
  $region36: #{cnn_lstm_2d_forward.5} parent=0 // pred_region
    _
  $region37: #{cnn_lstm_2d_forward.5} parent=0 // pred_fallthru
    _
  %v32 = vld [vmem:[%s0] sm:$0xff]
  %v33 = vld [vmem:[%s0 + $0x8] sm:$0xff]
  %v34 = vld [vmem:[%s0 + $0x10] sm:$0xff]
  %v35 = vld [vmem:[%s0 + $0x18] sm:$0xff]
  %v36 = vld [vmem:[%s0 + $0x20] sm:$0xff]
  %v37 = vld [vmem:[%s0 + $0x28] sm:$0xff]
  %v38 = vld [vmem:[%s0 + $0x30] sm:$0xff]
  %v39 = vld [vmem:[%s0 + $0x38] sm:$0xff]
  %v40 = vld [vmem:[%s0 + $0x40] sm:$0xff]
  %v41 = vld [vmem:[%s0 + $0x48] sm:$0xff]
  %v42 = vld [vmem:[%s0 + $0x50] sm:$0xff]
  %v43 = vld [vmem:[%s0 + $0x58] sm:$0xff]
  %v44 = vld [vmem:[%s0 + $0x60] sm:$0xff]
  %v45 = vld [vmem:[%s0 + $0x68] sm:$0xff]
  %v46 = vld [vmem:[%s0 + $0x70] sm:$0xff]
  %v47 = vld [vmem:[%s0 + $0x78] sm:$0xff]
  %v48 = vld [vmem:[%s1] sm:$0xff]
  %v49 = vld [vmem:[%s1 + $0x8] sm:$0xff]
  %v50 = vld [vmem:[%s1 + $0x10] sm:$0xff]
  %v51 = vld [vmem:[%s1 + $0x18] sm:$0xff]
  %v52 = vld [vmem:[%s1 + $0x20] sm:$0xff]
  %v53 = vld [vmem:[%s1 + $0x28] sm:$0xff]
  %v54 = vld [vmem:[%s1 + $0x30] sm:$0xff]
  %v55 = vld [vmem:[%s1 + $0x38] sm:$0xff]
  %v56 = vld [vmem:[%s1 + $0x40] sm:$0xff]
  %v57 = vld [vmem:[%s1 + $0x48] sm:$0xff]
  %v58 = vld [vmem:[%s1 + $0x50] sm:$0xff]
  %v59 = vld [vmem:[%s1 + $0x58] sm:$0xff]
  %v60 = vld [vmem:[%s1 + $0x60] sm:$0xff]
  %v61 = vld [vmem:[%s1 + $0x68] sm:$0xff]
  %v62 = vld [vmem:[%s1 + $0x70] sm:$0xff]
  %v63 = vld [vmem:[%s1 + $0x78] sm:$0xff]
  %v64 = vld [vmem:[%s1 + $0x80] sm:$0xff]
  %v65 = vld [vmem:[%s1 + $0x88] sm:$0xff]
  %v66 = vld [vmem:[%s1 + $0x90] sm:$0xff]
  %v67 = vld [vmem:[%s1 + $0x98] sm:$0xff]
  %v68 = vld [vmem:[%s1 + $0xa0] sm:$0xff]
  %v69 = vld [vmem:[%s1 + $0xa8] sm:$0xff]
  %v70 = vld [vmem:[%s1 + $0xb0] sm:$0xff]
  %v71 = vld [vmem:[%s1 + $0xb8] sm:$0xff]
  %v72 = vld [vmem:[%s1 + $0xc0] sm:$0xff]
  %v73 = vld [vmem:[%s1 + $0xc8] sm:$0xff]
  %v74 = vld [vmem:[%s1 + $0xd0] sm:$0xff]
  %v75 = vld [vmem:[%s1 + $0xd8] sm:$0xff]
  %v76 = vld [vmem:[%s1 + $0xe0] sm:$0xff]
  %v77 = vld [vmem:[%s1 + $0xe8] sm:$0xff]
  %v78 = vld [vmem:[%s1 + $0xf0] sm:$0xff]
  %v79 = vld [vmem:[%s1 + $0xf8] sm:$0xff]
  %v80 = vld [vmem:[%s1 + $0x100] sm:$0xff]
  %v81 = vld [vmem:[%s1 + $0x108] sm:$0xff]
  %v82 = vld [vmem:[%s1 + $0x110] sm:$0xff]
  %v83 = vld [vmem:[%s1 + $0x118] sm:$0xff]
  %v84 = vld [vmem:[%s1 + $0x120] sm:$0xff]
  %v85 = vld [vmem:[%s1 + $0x128] sm:$0xff]
  %v86 = vld [vmem:[%s1 + $0x130] sm:$0xff]
  %v87 = vld [vmem:[%s1 + $0x138] sm:$0xff]
  %v88 = vld [vmem:[%s1 + $0x140] sm:$0xff]
  %v89 = vld [vmem:[%s1 + $0x148] sm:$0xff]
  %v90 = vld [vmem:[%s1 + $0x150] sm:$0xff]
  %v91 = vld [vmem:[%s1 + $0x158] sm:$0xff]
  %v92 = vld [vmem:[%s1 + $0x160] sm:$0xff]
  %v93 = vld [vmem:[%s1 + $0x168] sm:$0xff]
  %v94 = vld [vmem:[%s1 + $0x170] sm:$0xff]
  %v95 = vld [vmem:[%s1 + $0x178] sm:$0xff]
  %v96 = vld [vmem:[%s1 + $0x180] sm:$0xff]
  %v97 = vld [vmem:[%s1 + $0x188] sm:$0xff]
  %v98 = vld [vmem:[%s1 + $0x190] sm:$0xff]
  %v99 = vld [vmem:[%s1 + $0x198] sm:$0xff]
  %v100 = vld [vmem:[%s1 + $0x1a0] sm:$0xff]
  %v101 = vld [vmem:[%s1 + $0x1a8] sm:$0xff]
  %v102 = vld [vmem:[%s1 + $0x1b0] sm:$0xff]
  %v103 = vld [vmem:[%s1 + $0x1b8] sm:$0xff]
  %v104 = vld [vmem:[%s1 + $0x1c0] sm:$0xff]
  %v105 = vld [vmem:[%s1 + $0x1c8] sm:$0xff]
  %v106 = vld [vmem:[%s1 + $0x1d0] sm:$0xff]
  %v107 = vld [vmem:[%s1 + $0x1d8] sm:$0xff]
  %v108 = vld [vmem:[%s1 + $0x1e0] sm:$0xff]
  %v109 = vld [vmem:[%s1 + $0x1e8] sm:$0xff]
  %v110 = vld [vmem:[%s1 + $0x1f0] sm:$0xff]
  %v111 = vld [vmem:[%s1 + $0x1f8] sm:$0xff]
  %v112 = vld [vmem:[%s2] sm:$0x3]
  %v114 = vperm.slane %v112, 0
  %v115 = vperm.slane %v112, 1
  %v134 = vunpack.c.l.b16 %v32
  %v135 = vunpack.c.h.b16 %v32
  %v136 = vunpack.c.l.b16 %v33
  %v137 = vunpack.c.h.b16 %v33
  %v138 = vunpack.c.l.b16 %v34
  %v139 = vunpack.c.h.b16 %v34
  %v140 = vunpack.c.l.b16 %v35
  %v141 = vunpack.c.h.b16 %v35
  %v142 = vunpack.c.l.b16 %v36
  %v143 = vunpack.c.h.b16 %v36
  %v144 = vunpack.c.l.b16 %v37
  %v145 = vunpack.c.h.b16 %v37
  %v146 = vunpack.c.l.b16 %v38
  %v147 = vunpack.c.h.b16 %v38
  %v148 = vunpack.c.l.b16 %v39
  %v149 = vunpack.c.h.b16 %v39
  %v150 = vunpack.c.l.b16 %v40
  %v151 = vunpack.c.h.b16 %v40
  %v152 = vunpack.c.l.b16 %v41
  %v153 = vunpack.c.h.b16 %v41
  %v154 = vunpack.c.l.b16 %v42
  %v155 = vunpack.c.h.b16 %v42
  %v156 = vunpack.c.l.b16 %v43
  %v157 = vunpack.c.h.b16 %v43
  %v158 = vunpack.c.l.b16 %v44
  %v159 = vunpack.c.h.b16 %v44
  %v160 = vunpack.c.l.b16 %v45
  %v161 = vunpack.c.h.b16 %v45
  %v162 = vunpack.c.l.b16 %v46
  %v163 = vunpack.c.h.b16 %v46
  %v164 = vunpack.c.l.b16 %v47
  %v165 = vunpack.c.h.b16 %v47
  %v166 = vpack.c.b16 %v138, %v134
  %v167 = vpack.c.b16 %v139, %v135
  %v168 = vpack.c.b16 %v140, %v136
  %v169 = vpack.c.b16 %v141, %v137
  %v170 = vpack.c.b16 %v146, %v142
  %v171 = vpack.c.b16 %v147, %v143
  %v172 = vpack.c.b16 %v148, %v144
  %v173 = vpack.c.b16 %v149, %v145
  %v174 = vpack.c.b16 %v154, %v150
  %v175 = vpack.c.b16 %v155, %v151
  %v176 = vpack.c.b16 %v156, %v152
  %v177 = vpack.c.b16 %v157, %v153
  %v178 = vpack.c.b16 %v162, %v158
  %v179 = vpack.c.b16 %v163, %v159
  %v180 = vpack.c.b16 %v164, %v160
  %v181 = vpack.c.b16 %v165, %v161
  %v262 = vunpack.c.l.b16 %v48
  %v263 = vunpack.c.h.b16 %v48
  %v264 = vunpack.c.l.b16 %v49
  %v265 = vunpack.c.h.b16 %v49
  %v266 = vunpack.c.l.b16 %v50
  %v267 = vunpack.c.h.b16 %v50
  %v268 = vunpack.c.l.b16 %v51
  %v269 = vunpack.c.h.b16 %v51
  %v270 = vunpack.c.l.b16 %v52
  %v271 = vunpack.c.h.b16 %v52
  %v272 = vunpack.c.l.b16 %v53
  %v273 = vunpack.c.h.b16 %v53
  %v274 = vunpack.c.l.b16 %v54
  %v275 = vunpack.c.h.b16 %v54
  %v276 = vunpack.c.l.b16 %v55
  %v277 = vunpack.c.h.b16 %v55
  %v278 = vunpack.c.l.b16 %v56
  %v279 = vunpack.c.h.b16 %v56
  %v280 = vunpack.c.l.b16 %v57
  %v281 = vunpack.c.h.b16 %v57
  %v282 = vunpack.c.l.b16 %v58
  %v283 = vunpack.c.h.b16 %v58
  %v284 = vunpack.c.l.b16 %v59
  %v285 = vunpack.c.h.b16 %v59
  %v286 = vunpack.c.l.b16 %v60
  %v287 = vunpack.c.h.b16 %v60
  %v288 = vunpack.c.l.b16 %v61
  %v289 = vunpack.c.h.b16 %v61
  %v290 = vunpack.c.l.b16 %v62
  %v291 = vunpack.c.h.b16 %v62
  %v292 = vunpack.c.l.b16 %v63
  %v293 = vunpack.c.h.b16 %v63
  %v294 = vunpack.c.l.b16 %v64
  %v295 = vunpack.c.h.b16 %v64
  %v296 = vunpack.c.l.b16 %v65
  %v297 = vunpack.c.h.b16 %v65
  %v298 = vunpack.c.l.b16 %v66
  %v299 = vunpack.c.h.b16 %v66
  %v300 = vunpack.c.l.b16 %v67
  %v301 = vunpack.c.h.b16 %v67
  %v302 = vunpack.c.l.b16 %v68
  %v303 = vunpack.c.h.b16 %v68
  %v304 = vunpack.c.l.b16 %v69
  %v305 = vunpack.c.h.b16 %v69
  %v306 = vunpack.c.l.b16 %v70
  %v307 = vunpack.c.h.b16 %v70
  %v308 = vunpack.c.l.b16 %v71
  %v309 = vunpack.c.h.b16 %v71
  %v310 = vunpack.c.l.b16 %v72
  %v311 = vunpack.c.h.b16 %v72
  %v312 = vunpack.c.l.b16 %v73
  %v313 = vunpack.c.h.b16 %v73
  %v314 = vunpack.c.l.b16 %v74
  %v315 = vunpack.c.h.b16 %v74
  %v316 = vunpack.c.l.b16 %v75
  %v317 = vunpack.c.h.b16 %v75
  %v318 = vunpack.c.l.b16 %v76
  %v319 = vunpack.c.h.b16 %v76
  %v320 = vunpack.c.l.b16 %v77
  %v321 = vunpack.c.h.b16 %v77
  %v322 = vunpack.c.l.b16 %v78
  %v323 = vunpack.c.h.b16 %v78
  %v324 = vunpack.c.l.b16 %v79
  %v325 = vunpack.c.h.b16 %v79
  %v326 = vunpack.c.l.b16 %v80
  %v327 = vunpack.c.h.b16 %v80
  %v328 = vunpack.c.l.b16 %v81
  %v329 = vunpack.c.h.b16 %v81
  %v330 = vunpack.c.l.b16 %v82
  %v331 = vunpack.c.h.b16 %v82
  %v332 = vunpack.c.l.b16 %v83
  %v333 = vunpack.c.h.b16 %v83
  %v334 = vunpack.c.l.b16 %v84
  %v335 = vunpack.c.h.b16 %v84
  %v336 = vunpack.c.l.b16 %v85
  %v337 = vunpack.c.h.b16 %v85
  %v338 = vunpack.c.l.b16 %v86
  %v339 = vunpack.c.h.b16 %v86
  %v340 = vunpack.c.l.b16 %v87
  %v341 = vunpack.c.h.b16 %v87
  %v342 = vunpack.c.l.b16 %v88
  %v343 = vunpack.c.h.b16 %v88
  %v344 = vunpack.c.l.b16 %v89
  %v345 = vunpack.c.h.b16 %v89
  %v346 = vunpack.c.l.b16 %v90
  %v347 = vunpack.c.h.b16 %v90
  %v348 = vunpack.c.l.b16 %v91
  %v349 = vunpack.c.h.b16 %v91
  %v350 = vunpack.c.l.b16 %v92
  %v351 = vunpack.c.h.b16 %v92
  %v352 = vunpack.c.l.b16 %v93
  %v353 = vunpack.c.h.b16 %v93
  %v354 = vunpack.c.l.b16 %v94
  %v355 = vunpack.c.h.b16 %v94
  %v356 = vunpack.c.l.b16 %v95
  %v357 = vunpack.c.h.b16 %v95
  %v358 = vunpack.c.l.b16 %v96
  %v359 = vunpack.c.h.b16 %v96
  %v360 = vunpack.c.l.b16 %v97
  %v361 = vunpack.c.h.b16 %v97
  %v362 = vunpack.c.l.b16 %v98
  %v363 = vunpack.c.h.b16 %v98
  %v364 = vunpack.c.l.b16 %v99
  %v365 = vunpack.c.h.b16 %v99
  %v366 = vunpack.c.l.b16 %v100
  %v367 = vunpack.c.h.b16 %v100
  %v368 = vunpack.c.l.b16 %v101
  %v369 = vunpack.c.h.b16 %v101
  %v370 = vunpack.c.l.b16 %v102
  %v371 = vunpack.c.h.b16 %v102
  %v372 = vunpack.c.l.b16 %v103
  %v373 = vunpack.c.h.b16 %v103
  %v374 = vunpack.c.l.b16 %v104
  %v375 = vunpack.c.h.b16 %v104
  %v376 = vunpack.c.l.b16 %v105
  %v377 = vunpack.c.h.b16 %v105
  %v378 = vunpack.c.l.b16 %v106
  %v379 = vunpack.c.h.b16 %v106
  %v380 = vunpack.c.l.b16 %v107
  %v381 = vunpack.c.h.b16 %v107
  %v382 = vunpack.c.l.b16 %v108
  %v383 = vunpack.c.h.b16 %v108
  %v384 = vunpack.c.l.b16 %v109
  %v385 = vunpack.c.h.b16 %v109
  %v386 = vunpack.c.l.b16 %v110
  %v387 = vunpack.c.h.b16 %v110
  %v388 = vunpack.c.l.b16 %v111
  %v389 = vunpack.c.h.b16 %v111
  %v390 = vpack.c.b16 %v264, %v262
  %v391 = vpack.c.b16 %v265, %v263
  %v392 = vpack.c.b16 %v268, %v266
  %v393 = vpack.c.b16 %v269, %v267
  %v394 = vpack.c.b16 %v272, %v270
  %v395 = vpack.c.b16 %v273, %v271
  %v396 = vpack.c.b16 %v276, %v274
  %v397 = vpack.c.b16 %v277, %v275
  %v398 = vpack.c.b16 %v280, %v278
  %v399 = vpack.c.b16 %v281, %v279
  %v400 = vpack.c.b16 %v284, %v282
  %v401 = vpack.c.b16 %v285, %v283
  %v402 = vpack.c.b16 %v288, %v286
  %v403 = vpack.c.b16 %v289, %v287
  %v404 = vpack.c.b16 %v292, %v290
  %v405 = vpack.c.b16 %v293, %v291
  %v406 = vpack.c.b16 %v296, %v294
  %v407 = vpack.c.b16 %v297, %v295
  %v408 = vpack.c.b16 %v300, %v298
  %v409 = vpack.c.b16 %v301, %v299
  %v410 = vpack.c.b16 %v304, %v302
  %v411 = vpack.c.b16 %v305, %v303
  %v412 = vpack.c.b16 %v308, %v306
  %v413 = vpack.c.b16 %v309, %v307
  %v414 = vpack.c.b16 %v312, %v310
  %v415 = vpack.c.b16 %v313, %v311
  %v416 = vpack.c.b16 %v316, %v314
  %v417 = vpack.c.b16 %v317, %v315
  %v418 = vpack.c.b16 %v320, %v318
  %v419 = vpack.c.b16 %v321, %v319
  %v420 = vpack.c.b16 %v324, %v322
  %v421 = vpack.c.b16 %v325, %v323
  %v422 = vpack.c.b16 %v328, %v326
  %v423 = vpack.c.b16 %v329, %v327
  %v424 = vpack.c.b16 %v332, %v330
  %v425 = vpack.c.b16 %v333, %v331
  %v426 = vpack.c.b16 %v336, %v334
  %v427 = vpack.c.b16 %v337, %v335
  %v428 = vpack.c.b16 %v340, %v338
  %v429 = vpack.c.b16 %v341, %v339
  %v430 = vpack.c.b16 %v344, %v342
  %v431 = vpack.c.b16 %v345, %v343
  %v432 = vpack.c.b16 %v348, %v346
  %v433 = vpack.c.b16 %v349, %v347
  %v434 = vpack.c.b16 %v352, %v350
  %v435 = vpack.c.b16 %v353, %v351
  %v436 = vpack.c.b16 %v356, %v354
  %v437 = vpack.c.b16 %v357, %v355
  %v438 = vpack.c.b16 %v360, %v358
  %v439 = vpack.c.b16 %v361, %v359
  %v440 = vpack.c.b16 %v364, %v362
  %v441 = vpack.c.b16 %v365, %v363
  %v442 = vpack.c.b16 %v368, %v366
  %v443 = vpack.c.b16 %v369, %v367
  %v444 = vpack.c.b16 %v372, %v370
  %v445 = vpack.c.b16 %v373, %v371
  %v446 = vpack.c.b16 %v376, %v374
  %v447 = vpack.c.b16 %v377, %v375
  %v448 = vpack.c.b16 %v380, %v378
  %v449 = vpack.c.b16 %v381, %v379
  %v450 = vpack.c.b16 %v384, %v382
  %v451 = vpack.c.b16 %v385, %v383
  %v452 = vpack.c.b16 %v388, %v386
  %v453 = vpack.c.b16 %v389, %v387
  %518 = vmatpush.bf16.msra.mxu0 %v404
  %519 = vmatpush.bf16.msra.mxu0 %v402
  %520 = vmatpush.bf16.msra.mxu0 %v400
  %521 = vmatpush.bf16.msra.mxu0 %v398
  %522 = vmatpush.bf16.msra.mxu0 %v396
  %523 = vmatpush.bf16.msra.mxu0 %v394
  %524 = vmatpush.bf16.msra.mxu0 %v392
  %525 = vmatpush.bf16.msra.mxu0 %v390
  %526 = vmatmul.bf16.gmra.mxu0 %v166
  %v527 = vpop.f32.mrf.mxu0
  %v528 = vadd.f32 %v114, %v527
  %v529 = vpop.f32.mrf.mxu0
  %v530 = vadd.f32 %v114, %v529
  %531 = vmatmul.bf16.gmra.mxu0 %v170
  %v532 = vpop.f32.mrf.mxu0
  %v533 = vadd.f32 %v114, %v532
  %v534 = vpop.f32.mrf.mxu0
  %v535 = vadd.f32 %v114, %v534
  %536 = vmatmul.bf16.gmra.mxu0 %v174
  %v537 = vpop.f32.mrf.mxu0
  %v538 = vadd.f32 %v114, %v537
  %v539 = vpop.f32.mrf.mxu0
  %v540 = vadd.f32 %v114, %v539
  %541 = vmatmul.bf16.gmra.mxu0 %v178
  %v542 = vpop.f32.mrf.mxu0
  %v543 = vadd.f32 %v114, %v542
  %v544 = vpop.f32.mrf.mxu0
  %v545 = vadd.f32 %v114, %v544
  %546 = vdwg.mxu0
  %547 = vmatpush.bf16.msra.mxu0 %v420
  %548 = vmatpush.bf16.msra.mxu0 %v418
  %549 = vmatpush.bf16.msra.mxu0 %v416
  %550 = vmatpush.bf16.msra.mxu0 %v414
  %551 = vmatpush.bf16.msra.mxu0 %v412
  %552 = vmatpush.bf16.msra.mxu0 %v410
  %553 = vmatpush.bf16.msra.mxu0 %v408
  %554 = vmatpush.bf16.msra.mxu0 %v406
  %555 = vmatmul.bf16.gmra.mxu0 %v167
  %v556 = vpop.f32.mrf.mxu0
  %v557 = vadd.f32 %v528, %v556
  %v558 = vpop.f32.mrf.mxu0
  %v559 = vadd.f32 %v530, %v558
  %560 = vmatmul.bf16.gmra.mxu0 %v171
  %v561 = vpop.f32.mrf.mxu0
  %v562 = vadd.f32 %v533, %v561
  %v563 = vpop.f32.mrf.mxu0
  %v564 = vadd.f32 %v535, %v563
  %565 = vmatmul.bf16.gmra.mxu0 %v175
  %v566 = vpop.f32.mrf.mxu0
  %v567 = vadd.f32 %v538, %v566
  %v568 = vpop.f32.mrf.mxu0
  %v569 = vadd.f32 %v540, %v568
  %570 = vmatmul.bf16.gmra.mxu0 %v179
  %v571 = vpop.f32.mrf.mxu0
  %v572 = vadd.f32 %v543, %v571
  %v573 = vpop.f32.mrf.mxu0
  %v574 = vadd.f32 %v545, %v573
  %575 = vdwg.mxu0
  %576 = vmatpush.bf16.msra.mxu0 %v436
  %577 = vmatpush.bf16.msra.mxu0 %v434
  %578 = vmatpush.bf16.msra.mxu0 %v432
  %579 = vmatpush.bf16.msra.mxu0 %v430
  %580 = vmatpush.bf16.msra.mxu0 %v428
  %581 = vmatpush.bf16.msra.mxu0 %v426
  %582 = vmatpush.bf16.msra.mxu0 %v424
  %583 = vmatpush.bf16.msra.mxu0 %v422
  %584 = vmatmul.bf16.gmra.mxu0 %v168
  %v585 = vpop.f32.mrf.mxu0
  %v586 = vadd.f32 %v557, %v585
  %v587 = vpop.f32.mrf.mxu0
  %v588 = vadd.f32 %v559, %v587
  %589 = vmatmul.bf16.gmra.mxu0 %v172
  %v590 = vpop.f32.mrf.mxu0
  %v591 = vadd.f32 %v562, %v590
  %v592 = vpop.f32.mrf.mxu0
  %v593 = vadd.f32 %v564, %v592
  %594 = vmatmul.bf16.gmra.mxu0 %v176
  %v595 = vpop.f32.mrf.mxu0
  %v596 = vadd.f32 %v567, %v595
  %v597 = vpop.f32.mrf.mxu0
  %v598 = vadd.f32 %v569, %v597
  %599 = vmatmul.bf16.gmra.mxu0 %v180
  %v600 = vpop.f32.mrf.mxu0
  %v601 = vadd.f32 %v572, %v600
  %v602 = vpop.f32.mrf.mxu0
  %v603 = vadd.f32 %v574, %v602
  %604 = vdwg.mxu0
  %605 = vmatpush.bf16.msra.mxu0 %v452
  %606 = vmatpush.bf16.msra.mxu0 %v450
  %607 = vmatpush.bf16.msra.mxu0 %v448
  %608 = vmatpush.bf16.msra.mxu0 %v446
  %609 = vmatpush.bf16.msra.mxu0 %v444
  %610 = vmatpush.bf16.msra.mxu0 %v442
  %611 = vmatpush.bf16.msra.mxu0 %v440
  %612 = vmatpush.bf16.msra.mxu0 %v438
  %613 = vmatmul.bf16.gmra.mxu0 %v169
  %v614 = vpop.f32.mrf.mxu0
  %v615 = vadd.f32 %v586, %v614
  %v616 = vpop.f32.mrf.mxu0
  %v617 = vadd.f32 %v588, %v616
  %618 = vmatmul.bf16.gmra.mxu0 %v173
  %v619 = vpop.f32.mrf.mxu0
  %v620 = vadd.f32 %v591, %v619
  %v621 = vpop.f32.mrf.mxu0
  %v622 = vadd.f32 %v593, %v621
  %623 = vmatmul.bf16.gmra.mxu0 %v177
  %v624 = vpop.f32.mrf.mxu0
  %v625 = vadd.f32 %v596, %v624
  %v626 = vpop.f32.mrf.mxu0
  %v627 = vadd.f32 %v598, %v626
  %628 = vmatmul.bf16.gmra.mxu0 %v181
  %v629 = vpop.f32.mrf.mxu0
  %v630 = vadd.f32 %v601, %v629
  %v631 = vpop.f32.mrf.mxu0
  %v632 = vadd.f32 %v603, %v631
  %633 = vdwg.mxu0
  %634 = vmatpush.bf16.msra.mxu0 %v405
  %635 = vmatpush.bf16.msra.mxu0 %v403
  %636 = vmatpush.bf16.msra.mxu0 %v401
  %637 = vmatpush.bf16.msra.mxu0 %v399
  %638 = vmatpush.bf16.msra.mxu0 %v397
  %639 = vmatpush.bf16.msra.mxu0 %v395
  %640 = vmatpush.bf16.msra.mxu0 %v393
  %641 = vmatpush.bf16.msra.mxu0 %v391
  %642 = vmatmul.bf16.gmra.mxu0 %v166
  %v643 = vpop.f32.mrf.mxu0
  %v644 = vpop.f32.mrf.mxu0
  %645 = vmatmul.bf16.gmra.mxu0 %v170
  %v646 = vpop.f32.mrf.mxu0
  %v647 = vpop.f32.mrf.mxu0
  %648 = vmatmul.bf16.gmra.mxu0 %v174
  %v649 = vpop.f32.mrf.mxu0
  %v650 = vpop.f32.mrf.mxu0
  %651 = vmatmul.bf16.gmra.mxu0 %v178
  %v652 = vpop.f32.mrf.mxu0
  %v653 = vpop.f32.mrf.mxu0
  %v654 = vadd.f32 %v115, %v653
  %655 = vdwg.mxu0
  %656 = vmatpush.bf16.msra.mxu0 %v421
  %657 = vmatpush.bf16.msra.mxu0 %v419
  %658 = vmatpush.bf16.msra.mxu0 %v417
  %659 = vmatpush.bf16.msra.mxu0 %v415
  %660 = vmatpush.bf16.msra.mxu0 %v413
  %661 = vmatpush.bf16.msra.mxu0 %v411
  %662 = vmatpush.bf16.msra.mxu0 %v409
  %663 = vmatpush.bf16.msra.mxu0 %v407
  %664 = vmatmul.bf16.gmra.mxu0 %v167
  %v665 = vpop.f32.mrf.mxu0
  %v666 = vpop.f32.mrf.mxu0
  %667 = vmatmul.bf16.gmra.mxu0 %v171
  %v668 = vpop.f32.mrf.mxu0
  %v669 = vpop.f32.mrf.mxu0
  %670 = vmatmul.bf16.gmra.mxu0 %v175
  %v671 = vpop.f32.mrf.mxu0
  %v672 = vpop.f32.mrf.mxu0
  %673 = vmatmul.bf16.gmra.mxu0 %v179
  %v674 = vpop.f32.mrf.mxu0
  %v675 = vpop.f32.mrf.mxu0
  %v676 = vadd.f32 %v654, %v675
  %677 = vdwg.mxu0
  %678 = vmatpush.bf16.msra.mxu0 %v437
  %679 = vmatpush.bf16.msra.mxu0 %v435
  %680 = vmatpush.bf16.msra.mxu0 %v433
  %681 = vmatpush.bf16.msra.mxu0 %v431
  %682 = vmatpush.bf16.msra.mxu0 %v429
  %683 = vmatpush.bf16.msra.mxu0 %v427
  %684 = vmatpush.bf16.msra.mxu0 %v425
  %685 = vmatpush.bf16.msra.mxu0 %v423
  %686 = vmatmul.bf16.gmra.mxu0 %v168
  %v687 = vpop.f32.mrf.mxu0
  %v688 = vpop.f32.mrf.mxu0
  %689 = vmatmul.bf16.gmra.mxu0 %v172
  %v690 = vpop.f32.mrf.mxu0
  %v691 = vpop.f32.mrf.mxu0
  %692 = vmatmul.bf16.gmra.mxu0 %v176
  %v693 = vpop.f32.mrf.mxu0
  %v694 = vpop.f32.mrf.mxu0
  %695 = vmatmul.bf16.gmra.mxu0 %v180
  %v696 = vpop.f32.mrf.mxu0
  %v697 = vpop.f32.mrf.mxu0
  %v698 = vadd.f32 %v676, %v697
  %699 = vdwg.mxu0
  %700 = vmatpush.bf16.msra.mxu0 %v453
  %701 = vmatpush.bf16.msra.mxu0 %v451
  %702 = vmatpush.bf16.msra.mxu0 %v449
  %703 = vmatpush.bf16.msra.mxu0 %v447
  %704 = vmatpush.bf16.msra.mxu0 %v445
  %705 = vmatpush.bf16.msra.mxu0 %v443
  %706 = vmatpush.bf16.msra.mxu0 %v441
  %707 = vmatpush.bf16.msra.mxu0 %v439
  %708 = vmatmul.bf16.gmra.mxu0 %v169
  %v709 = vpop.f32.mrf.mxu0
  %v710 = vpop.f32.mrf.mxu0
  %711 = vmatmul.bf16.gmra.mxu0 %v173
  %v712 = vpop.f32.mrf.mxu0
  %v713 = vpop.f32.mrf.mxu0
  %714 = vmatmul.bf16.gmra.mxu0 %v177
  %v715 = vpop.f32.mrf.mxu0
  %v716 = vpop.f32.mrf.mxu0
  %717 = vmatmul.bf16.gmra.mxu0 %v181
  %v718 = vpop.f32.mrf.mxu0
  %v719 = vpop.f32.mrf.mxu0
  %v720 = vadd.f32 %v698, %v719
  %721 = vdwg.mxu0
  %v722 = vld [vmem:[%s3] sm:$0xff]
  %v723 = vld [vmem:[%s3 + $0x8] sm:$0xff]
  %v724 = vld [vmem:[%s3 + $0x10] sm:$0xff]
  %v725 = vld [vmem:[%s3 + $0x18] sm:$0xff]
  %vm726 = vcmask 261120
  %v728 = vsel %vm726, 0.0, 0
  %730 = vmatpush.msra.mxu0 0.0
  %731 = vmatpush.msra.mxu0 0.0
  %732 = vmatpush.msra.mxu0 0.0
  %733 = vmatpush.msra.mxu0 0.0
  %734 = vmatpush.msra.mxu0 0.0
  %735 = vmatpush.msra.mxu0 0.0
  %736 = vmatpush.msra.mxu0 0.0
  %737 = vmatpush.msra.mxu0 0.0
  %738 = vmatpush.msra.mxu0 0.0
  %739 = vmatpush.msra.mxu0 0.0
  %740 = vmatpush.msra.mxu0 0.0
  %741 = vmatpush.msra.mxu0 0.0
  %742 = vmatpush.msra.mxu0 %v725
  %743 = vmatpush.msra.mxu0 %v724
  %744 = vmatpush.msra.mxu0 %v723
  %745 = vmatpush.msra.mxu0 %v722
  %746 = vmatmul.f32.gmra.mxu0 %v728
  %v747 = vpop.f32.mrf.mxu0
  %v748 = vadd.f32 0.0, %v747
  %749 = vdwg.mxu0
  %v750 = vadd.f32 %v615, %v748
  %v751 = vsub.f32 0.0, %v750
  %v752 = vmul.f32 %v751, 1.442695
  %v753 = vpow.pop %v752
  %v754 = vadd.f32 %v753, 1.0
  %v755 = vrcp.pop %v754
  %v756 = vmul.f32 %v754, %v755
  %v757 = vsub.f32 1.0, %v756
  %v758 = vmul.f32 %v755, %v757
  %v759 = vadd.f32 %v755, %v758
  %vm760 = vweird.f32 %v754
  %vm761 = vweird.f32 %v755
  %vm762 = vmor %vm760, %vm761
  %v763 = vsel %vm762, %v755, %v759
  %v764 = vand.u32 2147483647, %v754
  %vm765 = vcmp.eq.f32.partialorder %v764, 8.507059e+37
  %v766 = vand.u32 %v754, 2147483648
  %v767 = vor.u32 1.1754944e-38, %v766
  %v768 = vsel %vm765, %v767, %v763
  %v769 = vmul.f32 1.0, %v768
  %v770 = vtanh.pop %v750
  %v771 = vmul.f32 %v769, 0.0
  %773 = vrot.lane.b32.xlu0 %v770, 64
  %v774 = vpop.permute.xlu0 %773
  %v776 = vmul.f32 %v769, %v774
  %778 = vrot.lane.b32.xlu0 %v776, 32
  %v779 = vpop.permute.xlu0 %778
  %v781 = vadd.f32 %v771, %v779
  %v782 = vtanh.pop %v781
  %784 = vrot.lane.b32.xlu0 %v782, 64
  %v785 = vpop.permute.xlu0 %784
  %v787 = vmul.f32 %v769, %v785
  %789 = vrot.lane.b32.xlu0 %v787, 32
  %v790 = vpop.permute.xlu0 %789
  %v791 = vsel %vm726, %v790, 0
  %793 = vmatpush.msra.mxu0 0.0
  %794 = vmatpush.msra.mxu0 0.0
  %795 = vmatpush.msra.mxu0 0.0
  %796 = vmatpush.msra.mxu0 0.0
  %797 = vmatpush.msra.mxu0 0.0
  %798 = vmatpush.msra.mxu0 0.0
  %799 = vmatpush.msra.mxu0 0.0
  %800 = vmatpush.msra.mxu0 0.0
  %801 = vmatpush.msra.mxu0 0.0
  %802 = vmatpush.msra.mxu0 0.0
  %803 = vmatpush.msra.mxu0 0.0
  %804 = vmatpush.msra.mxu0 0.0
  %805 = vmatpush.msra.mxu0 %v725
  %806 = vmatpush.msra.mxu0 %v724
  %807 = vmatpush.msra.mxu0 %v723
  %808 = vmatpush.msra.mxu0 %v722
  %809 = vmatmul.f32.gmra.mxu0 %v791
  %v810 = vpop.f32.mrf.mxu0
  %v811 = vadd.f32 0.0, %v810
  %812 = vdwg.mxu0
  %v813 = vadd.f32 %v617, %v811
  %v814 = vsub.f32 0.0, %v813
  %v815 = vmul.f32 %v814, 1.442695
  %v816 = vpow.pop %v815
  %v817 = vadd.f32 %v816, 1.0
  %v818 = vrcp.pop %v817
  %v819 = vmul.f32 %v817, %v818
  %v820 = vsub.f32 1.0, %v819
  %v821 = vmul.f32 %v818, %v820
  %v822 = vadd.f32 %v818, %v821
  %vm823 = vweird.f32 %v817
  %vm824 = vweird.f32 %v818
  %vm825 = vmor %vm823, %vm824
  %v826 = vsel %vm825, %v818, %v822
  %v827 = vand.u32 2147483647, %v817
  %vm828 = vcmp.eq.f32.partialorder %v827, 8.507059e+37
  %v829 = vand.u32 %v817, 2147483648
  %v830 = vor.u32 1.1754944e-38, %v829
  %v831 = vsel %vm828, %v830, %v826
  %v832 = vmul.f32 1.0, %v831
  %v833 = vtanh.pop %v813
  %v834 = vmul.f32 %v832, %v781
  %836 = vrot.lane.b32.xlu0 %v833, 64
  %v837 = vpop.permute.xlu0 %836
  %v839 = vmul.f32 %v832, %v837
  %841 = vrot.lane.b32.xlu0 %v839, 32
  %v842 = vpop.permute.xlu0 %841
  %v844 = vadd.f32 %v834, %v842
  %v845 = vtanh.pop %v844
  %847 = vrot.lane.b32.xlu0 %v845, 64
  %v848 = vpop.permute.xlu0 %847
  %v850 = vmul.f32 %v832, %v848
  %852 = vrot.lane.b32.xlu0 %v850, 32
  %v853 = vpop.permute.xlu0 %852
  %v854 = vsel %vm726, %v853, 0
  %856 = vmatpush.msra.mxu0 0.0
  %857 = vmatpush.msra.mxu0 0.0
  %858 = vmatpush.msra.mxu0 0.0
  %859 = vmatpush.msra.mxu0 0.0
  %860 = vmatpush.msra.mxu0 0.0
  %861 = vmatpush.msra.mxu0 0.0
  %862 = vmatpush.msra.mxu0 0.0
  %863 = vmatpush.msra.mxu0 0.0
  %864 = vmatpush.msra.mxu0 0.0
  %865 = vmatpush.msra.mxu0 0.0
  %866 = vmatpush.msra.mxu0 0.0
  %867 = vmatpush.msra.mxu0 0.0
  %868 = vmatpush.msra.mxu0 %v725
  %869 = vmatpush.msra.mxu0 %v724
  %870 = vmatpush.msra.mxu0 %v723
  %871 = vmatpush.msra.mxu0 %v722
  %872 = vmatmul.f32.gmra.mxu0 %v854
  %v873 = vpop.f32.mrf.mxu0
  %v874 = vadd.f32 0.0, %v873
  %875 = vdwg.mxu0
  %v876 = vadd.f32 %v620, %v874
  %v877 = vsub.f32 0.0, %v876
  %v878 = vmul.f32 %v877, 1.442695
  %v879 = vpow.pop %v878
  %v880 = vadd.f32 %v879, 1.0
  %v881 = vrcp.pop %v880
  %v882 = vmul.f32 %v880, %v881
  %v883 = vsub.f32 1.0, %v882
  %v884 = vmul.f32 %v881, %v883
  %v885 = vadd.f32 %v881, %v884
  %vm886 = vweird.f32 %v880
  %vm887 = vweird.f32 %v881
  %vm888 = vmor %vm886, %vm887
  %v889 = vsel %vm888, %v881, %v885
  %v890 = vand.u32 2147483647, %v880
  %vm891 = vcmp.eq.f32.partialorder %v890, 8.507059e+37
  %v892 = vand.u32 %v880, 2147483648
  %v893 = vor.u32 1.1754944e-38, %v892
  %v894 = vsel %vm891, %v893, %v889
  %v895 = vmul.f32 1.0, %v894
  %v896 = vtanh.pop %v876
  %v897 = vmul.f32 %v895, %v844
  %899 = vrot.lane.b32.xlu0 %v896, 64
  %v900 = vpop.permute.xlu0 %899
  %v902 = vmul.f32 %v895, %v900
  %904 = vrot.lane.b32.xlu0 %v902, 32
  %v905 = vpop.permute.xlu0 %904
  %v907 = vadd.f32 %v897, %v905
  %v908 = vtanh.pop %v907
  %910 = vrot.lane.b32.xlu0 %v908, 64
  %v911 = vpop.permute.xlu0 %910
  %v913 = vmul.f32 %v895, %v911
  %915 = vrot.lane.b32.xlu0 %v913, 32
  %v916 = vpop.permute.xlu0 %915
  %v917 = vsel %vm726, %v916, 0
  %919 = vmatpush.msra.mxu0 0.0
  %920 = vmatpush.msra.mxu0 0.0
  %921 = vmatpush.msra.mxu0 0.0
  %922 = vmatpush.msra.mxu0 0.0
  %923 = vmatpush.msra.mxu0 0.0
  %924 = vmatpush.msra.mxu0 0.0
  %925 = vmatpush.msra.mxu0 0.0
  %926 = vmatpush.msra.mxu0 0.0
  %927 = vmatpush.msra.mxu0 0.0
  %928 = vmatpush.msra.mxu0 0.0
  %929 = vmatpush.msra.mxu0 0.0
  %930 = vmatpush.msra.mxu0 0.0
  %931 = vmatpush.msra.mxu0 %v725
  %932 = vmatpush.msra.mxu0 %v724
  %933 = vmatpush.msra.mxu0 %v723
  %934 = vmatpush.msra.mxu0 %v722
  %935 = vmatmul.f32.gmra.mxu0 %v917
  %v936 = vpop.f32.mrf.mxu0
  %v937 = vadd.f32 0.0, %v936
  %938 = vdwg.mxu0
  %v939 = vadd.f32 %v622, %v937
  %v940 = vsub.f32 0.0, %v939
  %v941 = vmul.f32 %v940, 1.442695
  %v942 = vpow.pop %v941
  %v943 = vadd.f32 %v942, 1.0
  %v944 = vrcp.pop %v943
  %v945 = vmul.f32 %v943, %v944
  %v946 = vsub.f32 1.0, %v945
  %v947 = vmul.f32 %v944, %v946
  %v948 = vadd.f32 %v944, %v947
  %vm949 = vweird.f32 %v943
  %vm950 = vweird.f32 %v944
  %vm951 = vmor %vm949, %vm950
  %v952 = vsel %vm951, %v944, %v948
  %v953 = vand.u32 2147483647, %v943
  %vm954 = vcmp.eq.f32.partialorder %v953, 8.507059e+37
  %v955 = vand.u32 %v943, 2147483648
  %v956 = vor.u32 1.1754944e-38, %v955
  %v957 = vsel %vm954, %v956, %v952
  %v958 = vmul.f32 1.0, %v957
  %v959 = vtanh.pop %v939
  %v960 = vmul.f32 %v958, %v907
  %962 = vrot.lane.b32.xlu0 %v959, 64
  %v963 = vpop.permute.xlu0 %962
  %v965 = vmul.f32 %v958, %v963
  %967 = vrot.lane.b32.xlu0 %v965, 32
  %v968 = vpop.permute.xlu0 %967
  %v970 = vadd.f32 %v960, %v968
  %v971 = vtanh.pop %v970
  %973 = vrot.lane.b32.xlu0 %v971, 64
  %v974 = vpop.permute.xlu0 %973
  %v976 = vmul.f32 %v958, %v974
  %978 = vrot.lane.b32.xlu0 %v976, 32
  %v979 = vpop.permute.xlu0 %978
  %v980 = vsel %vm726, %v979, 0
  %982 = vmatpush.msra.mxu0 0.0
  %983 = vmatpush.msra.mxu0 0.0
  %984 = vmatpush.msra.mxu0 0.0
  %985 = vmatpush.msra.mxu0 0.0
  %986 = vmatpush.msra.mxu0 0.0
  %987 = vmatpush.msra.mxu0 0.0
  %988 = vmatpush.msra.mxu0 0.0
  %989 = vmatpush.msra.mxu0 0.0
  %990 = vmatpush.msra.mxu0 0.0
  %991 = vmatpush.msra.mxu0 0.0
  %992 = vmatpush.msra.mxu0 0.0
  %993 = vmatpush.msra.mxu0 0.0
  %994 = vmatpush.msra.mxu0 %v725
  %995 = vmatpush.msra.mxu0 %v724
  %996 = vmatpush.msra.mxu0 %v723
  %997 = vmatpush.msra.mxu0 %v722
  %998 = vmatmul.f32.gmra.mxu0 %v980
  %v999 = vpop.f32.mrf.mxu0
  %v1000 = vadd.f32 0.0, %v999
  %1001 = vdwg.mxu0
  %v1002 = vadd.f32 %v625, %v1000
  %v1003 = vsub.f32 0.0, %v1002
  %v1004 = vmul.f32 %v1003, 1.442695
  %v1005 = vpow.pop %v1004
  %v1006 = vadd.f32 %v1005, 1.0
  %v1007 = vrcp.pop %v1006
  %v1008 = vmul.f32 %v1006, %v1007
  %v1009 = vsub.f32 1.0, %v1008
  %v1010 = vmul.f32 %v1007, %v1009
  %v1011 = vadd.f32 %v1007, %v1010
  %vm1012 = vweird.f32 %v1006
  %vm1013 = vweird.f32 %v1007
  %vm1014 = vmor %vm1012, %vm1013
  %v1015 = vsel %vm1014, %v1007, %v1011
  %v1016 = vand.u32 2147483647, %v1006
  %vm1017 = vcmp.eq.f32.partialorder %v1016, 8.507059e+37
  %v1018 = vand.u32 %v1006, 2147483648
  %v1019 = vor.u32 1.1754944e-38, %v1018
  %v1020 = vsel %vm1017, %v1019, %v1015
  %v1021 = vmul.f32 1.0, %v1020
  %v1022 = vtanh.pop %v1002
  %v1023 = vmul.f32 %v1021, %v970
  %1025 = vrot.lane.b32.xlu0 %v1022, 64
  %v1026 = vpop.permute.xlu0 %1025
  %v1028 = vmul.f32 %v1021, %v1026
  %1030 = vrot.lane.b32.xlu0 %v1028, 32
  %v1031 = vpop.permute.xlu0 %1030
  %v1033 = vadd.f32 %v1023, %v1031
  %v1034 = vtanh.pop %v1033
  %1036 = vrot.lane.b32.xlu0 %v1034, 64
  %v1037 = vpop.permute.xlu0 %1036
  %v1039 = vmul.f32 %v1021, %v1037
  %1041 = vrot.lane.b32.xlu0 %v1039, 32
  %v1042 = vpop.permute.xlu0 %1041
  %v1043 = vsel %vm726, %v1042, 0
  %1045 = vmatpush.msra.mxu0 0.0
  %1046 = vmatpush.msra.mxu0 0.0
  %1047 = vmatpush.msra.mxu0 0.0
  %1048 = vmatpush.msra.mxu0 0.0
  %1049 = vmatpush.msra.mxu0 0.0
  %1050 = vmatpush.msra.mxu0 0.0
  %1051 = vmatpush.msra.mxu0 0.0
  %1052 = vmatpush.msra.mxu0 0.0
  %1053 = vmatpush.msra.mxu0 0.0
  %1054 = vmatpush.msra.mxu0 0.0
  %1055 = vmatpush.msra.mxu0 0.0
  %1056 = vmatpush.msra.mxu0 0.0
  %1057 = vmatpush.msra.mxu0 %v725
  %1058 = vmatpush.msra.mxu0 %v724
  %1059 = vmatpush.msra.mxu0 %v723
  %1060 = vmatpush.msra.mxu0 %v722
  %1061 = vmatmul.f32.gmra.mxu0 %v1043
  %v1062 = vpop.f32.mrf.mxu0
  %v1063 = vadd.f32 0.0, %v1062
  %1064 = vdwg.mxu0
  %v1065 = vadd.f32 %v627, %v1063
  %v1066 = vsub.f32 0.0, %v1065
  %v1067 = vmul.f32 %v1066, 1.442695
  %v1068 = vpow.pop %v1067
  %v1069 = vadd.f32 %v1068, 1.0
  %v1070 = vrcp.pop %v1069
  %v1071 = vmul.f32 %v1069, %v1070
  %v1072 = vsub.f32 1.0, %v1071
  %v1073 = vmul.f32 %v1070, %v1072
  %v1074 = vadd.f32 %v1070, %v1073
  %vm1075 = vweird.f32 %v1069
  %vm1076 = vweird.f32 %v1070
  %vm1077 = vmor %vm1075, %vm1076
  %v1078 = vsel %vm1077, %v1070, %v1074
  %v1079 = vand.u32 2147483647, %v1069
  %vm1080 = vcmp.eq.f32.partialorder %v1079, 8.507059e+37
  %v1081 = vand.u32 %v1069, 2147483648
  %v1082 = vor.u32 1.1754944e-38, %v1081
  %v1083 = vsel %vm1080, %v1082, %v1078
  %v1084 = vmul.f32 1.0, %v1083
  %v1085 = vtanh.pop %v1065
  %v1086 = vmul.f32 %v1084, %v1033
  %1088 = vrot.lane.b32.xlu0 %v1085, 64
  %v1089 = vpop.permute.xlu0 %1088
  %v1091 = vmul.f32 %v1084, %v1089
  %1093 = vrot.lane.b32.xlu0 %v1091, 32
  %v1094 = vpop.permute.xlu0 %1093
  %v1096 = vadd.f32 %v1086, %v1094
  %v1097 = vtanh.pop %v1096
  %1099 = vrot.lane.b32.xlu0 %v1097, 64
  %v1100 = vpop.permute.xlu0 %1099
  %v1102 = vmul.f32 %v1084, %v1100
  %1104 = vrot.lane.b32.xlu0 %v1102, 32
  %v1105 = vpop.permute.xlu0 %1104
  %v1106 = vsel %vm726, %v1105, 0
  %1108 = vmatpush.msra.mxu0 0.0
  %1109 = vmatpush.msra.mxu0 0.0
  %1110 = vmatpush.msra.mxu0 0.0
  %1111 = vmatpush.msra.mxu0 0.0
  %1112 = vmatpush.msra.mxu0 0.0
  %1113 = vmatpush.msra.mxu0 0.0
  %1114 = vmatpush.msra.mxu0 0.0
  %1115 = vmatpush.msra.mxu0 0.0
  %1116 = vmatpush.msra.mxu0 0.0
  %1117 = vmatpush.msra.mxu0 0.0
  %1118 = vmatpush.msra.mxu0 0.0
  %1119 = vmatpush.msra.mxu0 0.0
  %1120 = vmatpush.msra.mxu0 %v725
  %1121 = vmatpush.msra.mxu0 %v724
  %1122 = vmatpush.msra.mxu0 %v723
  %1123 = vmatpush.msra.mxu0 %v722
  %1124 = vmatmul.f32.gmra.mxu0 %v1106
  %v1125 = vpop.f32.mrf.mxu0
  %v1126 = vadd.f32 0.0, %v1125
  %1127 = vdwg.mxu0
  %v1128 = vadd.f32 %v630, %v1126
  %v1129 = vsub.f32 0.0, %v1128
  %v1130 = vmul.f32 %v1129, 1.442695
  %v1131 = vpow.pop %v1130
  %v1132 = vadd.f32 %v1131, 1.0
  %v1133 = vrcp.pop %v1132
  %v1134 = vmul.f32 %v1132, %v1133
  %v1135 = vsub.f32 1.0, %v1134
  %v1136 = vmul.f32 %v1133, %v1135
  %v1137 = vadd.f32 %v1133, %v1136
  %vm1138 = vweird.f32 %v1132
  %vm1139 = vweird.f32 %v1133
  %vm1140 = vmor %vm1138, %vm1139
  %v1141 = vsel %vm1140, %v1133, %v1137
  %v1142 = vand.u32 2147483647, %v1132
  %vm1143 = vcmp.eq.f32.partialorder %v1142, 8.507059e+37
  %v1144 = vand.u32 %v1132, 2147483648
  %v1145 = vor.u32 1.1754944e-38, %v1144
  %v1146 = vsel %vm1143, %v1145, %v1141
  %v1147 = vmul.f32 1.0, %v1146
  %v1148 = vtanh.pop %v1128
  %v1149 = vmul.f32 %v1147, %v1096
  %1151 = vrot.lane.b32.xlu0 %v1148, 64
  %v1152 = vpop.permute.xlu0 %1151
  %v1154 = vmul.f32 %v1147, %v1152
  %1156 = vrot.lane.b32.xlu0 %v1154, 32
  %v1157 = vpop.permute.xlu0 %1156
  %v1159 = vadd.f32 %v1149, %v1157
  %v1160 = vtanh.pop %v1159
  %1162 = vrot.lane.b32.xlu0 %v1160, 64
  %v1163 = vpop.permute.xlu0 %1162
  %v1165 = vmul.f32 %v1147, %v1163
  %1167 = vrot.lane.b32.xlu0 %v1165, 32
  %v1168 = vpop.permute.xlu0 %1167
  %v1169 = vsel %vm726, %v1168, 0
  %1171 = vmatpush.msra.mxu0 0.0
  %1172 = vmatpush.msra.mxu0 0.0
  %1173 = vmatpush.msra.mxu0 0.0
  %1174 = vmatpush.msra.mxu0 0.0
  %1175 = vmatpush.msra.mxu0 0.0
  %1176 = vmatpush.msra.mxu0 0.0
  %1177 = vmatpush.msra.mxu0 0.0
  %1178 = vmatpush.msra.mxu0 0.0
  %1179 = vmatpush.msra.mxu0 0.0
  %1180 = vmatpush.msra.mxu0 0.0
  %1181 = vmatpush.msra.mxu0 0.0
  %1182 = vmatpush.msra.mxu0 0.0
  %1183 = vmatpush.msra.mxu0 %v725
  %1184 = vmatpush.msra.mxu0 %v724
  %1185 = vmatpush.msra.mxu0 %v723
  %1186 = vmatpush.msra.mxu0 %v722
  %1187 = vmatmul.f32.gmra.mxu0 %v1169
  %v1188 = vpop.f32.mrf.mxu0
  %v1189 = vadd.f32 0.0, %v1188
  %1190 = vdwg.mxu0
  %v1191 = vadd.f32 %v632, %v1189
  %v1192 = vsub.f32 0.0, %v1191
  %v1193 = vmul.f32 %v1192, 1.442695
  %v1194 = vpow.pop %v1193
  %v1195 = vadd.f32 %v1194, 1.0
  %v1196 = vrcp.pop %v1195
  %v1197 = vmul.f32 %v1195, %v1196
  %v1198 = vsub.f32 1.0, %v1197
  %v1199 = vmul.f32 %v1196, %v1198
  %v1200 = vadd.f32 %v1196, %v1199
  %vm1201 = vweird.f32 %v1195
  %vm1202 = vweird.f32 %v1196
  %vm1203 = vmor %vm1201, %vm1202
  %v1204 = vsel %vm1203, %v1196, %v1200
  %v1205 = vand.u32 2147483647, %v1195
  %vm1206 = vcmp.eq.f32.partialorder %v1205, 8.507059e+37
  %v1207 = vand.u32 %v1195, 2147483648
  %v1208 = vor.u32 1.1754944e-38, %v1207
  %v1209 = vsel %vm1206, %v1208, %v1204
  %v1210 = vmul.f32 1.0, %v1209
  %v1211 = vtanh.pop %v1191
  %v1212 = vmul.f32 %v1210, %v1159
  %1214 = vrot.lane.b32.xlu0 %v1211, 64
  %v1215 = vpop.permute.xlu0 %1214
  %v1217 = vmul.f32 %v1210, %v1215
  %1219 = vrot.lane.b32.xlu0 %v1217, 32
  %v1220 = vpop.permute.xlu0 %1219
  %v1222 = vadd.f32 %v1212, %v1220
  %v1223 = vtanh.pop %v1222
  %1225 = vrot.lane.b32.xlu0 %v1223, 64
  %v1226 = vpop.permute.xlu0 %1225
  %v1228 = vmul.f32 %v1210, %v1226
  %v1229 = vld [vmem:[%s4] sm:$0xff]
  %v1230 = vld [vmem:[%s4 + $0x8] sm:$0xff]
  %v1231 = vld [vmem:[%s4 + $0x10] sm:$0xff]
  %v1232 = vld [vmem:[%s4 + $0x18] sm:$0xff]
  %1233 = vmatpush.msra.mxu0 0.0
  %1234 = vmatpush.msra.mxu0 0.0
  %1235 = vmatpush.msra.mxu0 0.0
  %1236 = vmatpush.msra.mxu0 0.0
  %1237 = vmatpush.msra.mxu0 0.0
  %1238 = vmatpush.msra.mxu0 0.0
  %1239 = vmatpush.msra.mxu0 0.0
  %1240 = vmatpush.msra.mxu0 0.0
  %1241 = vmatpush.msra.mxu0 0.0
  %1242 = vmatpush.msra.mxu0 0.0
  %1243 = vmatpush.msra.mxu0 0.0
  %1244 = vmatpush.msra.mxu0 0.0
  %1245 = vmatpush.msra.mxu0 %v1232
  %1246 = vmatpush.msra.mxu0 %v1231
  %1247 = vmatpush.msra.mxu0 %v1230
  %1248 = vmatpush.msra.mxu0 %v1229
  %1249 = vmatmul.f32.gmra.mxu0 %v728
  %v1250 = vpop.f32.mrf.mxu0
  %v1251 = vadd.f32 0.0, %v1250
  %1252 = vdwg.mxu0
  %v1253 = vadd.f32 %v720, %v1251
  %v1254 = vsub.f32 0.0, %v1253
  %v1255 = vmul.f32 %v1254, 1.442695
  %v1256 = vpow.pop %v1255
  %v1257 = vadd.f32 %v1256, 1.0
  %v1258 = vrcp.pop %v1257
  %v1259 = vmul.f32 %v1257, %v1258
  %v1260 = vsub.f32 1.0, %v1259
  %v1261 = vmul.f32 %v1258, %v1260
  %v1262 = vadd.f32 %v1258, %v1261
  %vm1263 = vweird.f32 %v1257
  %vm1264 = vweird.f32 %v1258
  %vm1265 = vmor %vm1263, %vm1264
  %v1266 = vsel %vm1265, %v1258, %v1262
  %v1267 = vand.u32 2147483647, %v1257
  %vm1268 = vcmp.eq.f32.partialorder %v1267, 8.507059e+37
  %v1269 = vand.u32 %v1257, 2147483648
  %v1270 = vor.u32 1.1754944e-38, %v1269
  %v1271 = vsel %vm1268, %v1270, %v1266
  %v1272 = vmul.f32 1.0, %v1271
  %v1273 = vtanh.pop %v1253
  %v1274 = vmul.f32 %v1272, 0.0
  %1276 = vrot.lane.b32.xlu0 %v1273, 64
  %v1277 = vpop.permute.xlu0 %1276
  %v1279 = vmul.f32 %v1272, %v1277
  %1281 = vrot.lane.b32.xlu0 %v1279, 32
  %v1282 = vpop.permute.xlu0 %1281
  %v1284 = vadd.f32 %v1274, %v1282
  %v1285 = vtanh.pop %v1284
  %1287 = vrot.lane.b32.xlu0 %v1285, 64
  %v1288 = vpop.permute.xlu0 %1287
  %v1290 = vmul.f32 %v1272, %v1288
  %1292 = vrot.lane.b32.xlu0 %v1228, 32
  %v1293 = vpop.permute.xlu0 %1292
  %1296 = vrot.lane.b32.xlu0 %v1290, 64
  %v1297 = vpop.permute.xlu0 %1296
  %v1299 = vsel %vm726, %v1293, %v1297
  %v1300 = vld [vmem:[%s5] sm:$0xff]
  %v1301 = vld [vmem:[%s5 + $0x8] sm:$0xff]
  %v1302 = vld [vmem:[%s5 + $0x10] sm:$0xff]
  %v1303 = vld [vmem:[%s5 + $0x18] sm:$0xff]
  %v1304 = vld [vmem:[%s5 + $0x20] sm:$0xff]
  %v1305 = vld [vmem:[%s5 + $0x28] sm:$0xff]
  %v1306 = vld [vmem:[%s5 + $0x30] sm:$0xff]
  %v1307 = vld [vmem:[%s5 + $0x38] sm:$0xff]
  %v1308 = vld [vmem:[%s6] sm:$0x1]
  %v1310 = vperm.slane %v1308, 0
  %vm1312 = vcmask 523264
  %v1314 = vsel %vm1312, %v1299, 0
  %1316 = vmatpush.msra.mxu0 0.0
  %1317 = vmatpush.msra.mxu0 0.0
  %1318 = vmatpush.msra.mxu0 0.0
  %1319 = vmatpush.msra.mxu0 0.0
  %1320 = vmatpush.msra.mxu0 0.0
  %1321 = vmatpush.msra.mxu0 0.0
  %1322 = vmatpush.msra.mxu0 0.0
  %1323 = vmatpush.msra.mxu0 0.0
  %1324 = vmatpush.msra.mxu0 %v1307
  %1325 = vmatpush.msra.mxu0 %v1306
  %1326 = vmatpush.msra.mxu0 %v1305
  %1327 = vmatpush.msra.mxu0 %v1304
  %1328 = vmatpush.msra.mxu0 %v1303
  %1329 = vmatpush.msra.mxu0 %v1302
  %1330 = vmatpush.msra.mxu0 %v1301
  %1331 = vmatpush.msra.mxu0 %v1300
  %1332 = vmatmul.f32.gmra.mxu0 %v1314
  %v1333 = vpop.f32.mrf.mxu0
  %v1334 = vadd.f32 %v1310, %v1333
  %1335 = vdwg.mxu0
  %v1336 = vmax.f32 %v1334, 0.0
  %v1337 = vld [vmem:[%s7] sm:$0xff]
  %v1338 = vld [vmem:[%s7 + $0x8] sm:$0xff]
  %v1339 = vld [vmem:[%s7 + $0x10] sm:$0xff]
  %v1340 = vld [vmem:[%s7 + $0x18] sm:$0xff]
  %v1341 = vld [vmem:[%s7 + $0x20] sm:$0xff]
  %v1342 = vld [vmem:[%s7 + $0x28] sm:$0xff]
  %v1343 = vld [vmem:[%s7 + $0x30] sm:$0xff]
  %v1344 = vld [vmem:[%s7 + $0x38] sm:$0xff]
  %v1345 = vld [vmem:[%s8] sm:$0x1]
  %v1347 = vperm.slane %v1345, 0
  %v1350 = vsel %vm1312, %v1336, 0
  %1352 = vmatpush.msra.mxu0 0.0
  %1353 = vmatpush.msra.mxu0 0.0
  %1354 = vmatpush.msra.mxu0 0.0
  %1355 = vmatpush.msra.mxu0 0.0
  %1356 = vmatpush.msra.mxu0 0.0
  %1357 = vmatpush.msra.mxu0 0.0
  %1358 = vmatpush.msra.mxu0 0.0
  %1359 = vmatpush.msra.mxu0 0.0
  %1360 = vmatpush.msra.mxu0 %v1344
  %1361 = vmatpush.msra.mxu0 %v1343
  %1362 = vmatpush.msra.mxu0 %v1342
  %1363 = vmatpush.msra.mxu0 %v1341
  %1364 = vmatpush.msra.mxu0 %v1340
  %1365 = vmatpush.msra.mxu0 %v1339
  %1366 = vmatpush.msra.mxu0 %v1338
  %1367 = vmatpush.msra.mxu0 %v1337
  %1368 = vmatmul.f32.gmra.mxu0 %v1350
  %v1369 = vpop.f32.mrf.mxu0
  %v1370 = vadd.f32 %v1347, %v1369
  %1371 = vdwg.mxu0
  %vm1372 = vcmask 15360
  %1373 = vst.msk [vmem:[%s9] sm:$0xff] %vm1372, %v1370
  // Predicated region
  $region38: #{cnn_lstm_2d_forward.5} parent=0 // pred_check
    _
  $region39: #{cnn_lstm_2d_forward.5} parent=0 // pred_check_branch
    %1375 = sbr.rel (0) target = $region41
  $region40: #{cnn_lstm_2d_forward.5} parent=0 // pred_region
    _
  $region41: #{cnn_lstm_2d_forward.5} parent=0 // pred_fallthru
    _
  // Predicated region
  $region42: #{cnn_lstm_2d_forward.5} parent=0 // pred_check
    _
  $region43: #{cnn_lstm_2d_forward.5} parent=0 // pred_check_branch
    %1377 = sbr.rel (0) target = $region45
  $region44: #{cnn_lstm_2d_forward.5} parent=0 // pred_region
    _
  $region45: #{cnn_lstm_2d_forward.5} parent=0 // pred_fallthru
    _

</llo_original>
